<compile_context>
chip_gen: v6e
topology: v6e:2x2x1
jax: 0.10.0
libtpu: 0.0.40
codegen_flags: <defaults>
</compile_context>

<pallas_src>
import numpy as np
import jax
import jax.numpy as jnp
from jax.experimental import pallas as pl
from jax.experimental.pallas import tpu as pltpu

# Hyper-parameters fixed by the PyTorch module's __init__
INPUT_DIM = 1
HIDDEN_DIM = 4
OUTPUT_DIM = 1
N_LAYERS = 3


# ----------------------------------------------------------------------------
# Pallas kernel: full stacked-LSTM recurrence + output projection
# ----------------------------------------------------------------------------
def _lstm_kernel(x_ref, h0_ref, c0_ref, w0_ref, b0_ref, wih_ref, whh_ref,
                 b_ref, gmul_ref, goff_ref, wout_ref, bout_ref,
                 out_ref, hn_ref, cn_ref):
    # x_ref   : (B, T)          raw input sequence (input_dim == 1)
    # h0/c0   : (L, B, H)
    # w0_ref  : (1, 4H)         layer-0 W_ih, fused [i|f|g|o], gate-pre-scaled
    # b0_ref  : (1, 4H)         layer-0 b_ih+b_hh, fused, gate-pre-scaled
    # wih_ref : ((L-1)*H, 4H)   layers>=1 input weights; row (l-1)*H+k
    # whh_ref : (L*H, 4H)       recurrent weights; row l*H+k
    # b_ref   : (L-1, 4H)       layers>=1 fused biases, gate-pre-scaled
    # gmul/goff : (1, 4H)       post-tanh scale / offset (0.5/0.5 on i,f,o; 1/0 on g)
    # wout    : (1, H), bout : (1, 1)
    # out_ref : (B, 1), hn/cn : (L, B, H)
    L, B, H = hn_ref.shape
    T = x_ref.shape[1]
    G = 4 * H                                  # fused gate width: [i | f | g | o]

    def tree_sum(terms):
        # balanced pairwise add: halves VALU dependency depth vs a linear chain
        while len(terms) > 1:
            nxt = [terms[i] + terms[i + 1] for i in range(0, len(terms) - 1, 2)]
            if len(terms) % 2:
                nxt.append(terms[-1])
            terms = nxt
        return terms[0]

    def col_bcast(v):
        # lane-broadcast each of the H columns of (B, H) v to a (B, G) operand,
        # computed ONCE per cell and shared by all 4 gates and both consumers
        # (same-layer recurrence at t+1 and the next layer's input at t).
        return [jnp.broadcast_to(v[:, k:k + 1], (B, G)) for k in range(H)]

    # ---- t-invariant loads / precomputes (hoisted out of the time loop) ----
    gmul = gmul_ref[...]                       # (1, G)
    goff = goff_ref[...]                       # (1, G)

    # Layer-0 input projection (input_dim == 1) is recurrence-independent:
    # precompute b0 + x_t * w0 for every timestep before the recurrent loop.
    xv = x_ref[...]                            # (B, T)
    w0 = w0_ref[...]                           # (1, G) pre-scaled at pack time
    b0 = b0_ref[...]                           # (1, G) pre-scaled at pack time
    x0 = [b0 + jnp.broadcast_to(xv[:, t:t + 1], (B, G)) * w0 for t in range(T)]

    # ---- recurrent state lives in registers across the unrolled time loop --
    h = [h0_ref[l] for l in range(L)]          # (B, H) each
    c = [c0_ref[l] for l in range(L)]
    h_bc = [col_bcast(h[l]) for l in range(L)]

    # TODO(synk): for long sequences (T >~ 32) switch the fully unrolled loop
    # to a lax.fori_loop (unroll=2-4) carrying (h, c) to bound trace size.
    for t in range(T):
        for l in range(L):
            # ---- fused (B, 4H) pre-activation ------------------------------
            # input-side terms (off the same-layer recurrent chain); weight /
            # bias rows are read straight from VMEM at point of use (cheap
            # vlds, 3 slots/cycle, keeps vreg pressure low).
            if l == 0:
                in_terms = [x0[t]]
            else:
                base = (l - 1) * H
                in_terms = [h_bc[l - 1][k] * wih_ref[base + k:base + k + 1, :]
                            for k in range(H)]
                in_terms.append(b_ref[l - 1:l, :])
            # recurrent-side terms (on the serial chain)
            base = l * H
            rec_terms = [h_bc[l][k] * whh_ref[base + k:base + k + 1, :]
                         for k in range(H)]
            pre = tree_sum(rec_terms) + tree_sum(in_terms)

            # ---- single fused gate activation (2 EUP pushes per cell) ------
            # weights/biases were pre-scaled so that
            #   sigmoid(z) = 0.5 * tanh(0.5 * z) + 0.5   (i, f, o lanes)
            #   tanh(z)                                   (g lanes)
            act = jnp.tanh(pre) * gmul + goff            # (B, G)
            i_g = act[:, 0 * H:1 * H]
            f_g = act[:, 1 * H:2 * H]
            g_g = act[:, 2 * H:3 * H]
            o_g = act[:, 3 * H:4 * H]

            c_new = f_g * c[l] + i_g * g_g
            h_new = o_g * jnp.tanh(c_new)
            c[l] = c_new
            h[l] = h_new
            if (t + 1 < T) or (l + 1 < L):     # skip the one dead broadcast set
                h_bc[l] = col_bcast(h_new)

    # ---- write the final state exactly once --------------------------------
    for l in range(L):
        hn_ref[l] = h[l]
        cn_ref[l] = c[l]

    # ---- output head: VPU multiply + lane reduce (OUTPUT_DIM == 1), +1e-8 ---
    wout = wout_ref[...]                       # (1, H)
    bout = bout_ref[...]                       # (1, 1)
    y = jnp.sum(h[L - 1] * wout, axis=1, keepdims=True) + bout
    out_ref[...] = y + 1e-8


# ----------------------------------------------------------------------------
# Wrapper (glue: pallas_call plumbing; no padding / heavy preprocessing)
# ----------------------------------------------------------------------------
def model_forward(x, hidden, packed_params):
    """x: (B, T, input_dim) batch-first (PyTorch convention)."""
    h0, c0 = hidden
    B, T, _ = x.shape
    assert INPUT_DIM == 1
    x2 = x.astype(jnp.float32)[:, :, 0]        # (B, T): free reshape, no pad

    out, hn, cn = pl.pallas_call(
        _lstm_kernel,
        out_shape=(
            jax.ShapeDtypeStruct((B, OUTPUT_DIM), jnp.float32),
            jax.ShapeDtypeStruct((N_LAYERS, B, HIDDEN_DIM), jnp.float32),
            jax.ShapeDtypeStruct((N_LAYERS, B, HIDDEN_DIM), jnp.float32),
        ),
        in_specs=[pl.BlockSpec(memory_space=pltpu.MemorySpace.VMEM)] * 12,
        out_specs=(pl.BlockSpec(memory_space=pltpu.MemorySpace.VMEM),) * 3,
        # TODO(synk): for non-toy batch sizes add a grid axis over B with
        # dimension_semantics=("parallel",) (v7x 2-TC sharding) and, for
        # B >= 64, switch to a lane-dense B layout with an MXU (B,4)@(4,16)
        # gate matmul per cell.
    )(x2, h0, c0, *packed_params)

    # torch: out.view(B, -1)[:, -1] + 1e-8  (output_dim == 1 -> last timestep)
    return out[:, -1], (hn, cn)


# ----------------------------------------------------------------------------
# Deterministic parameter initialization (matches PyTorch LSTM param shapes)
# ----------------------------------------------------------------------------
def init_params(key):
    k = 1.0 / float(np.sqrt(HIDDEN_DIM))
    keys = jax.random.split(key, 4 * N_LAYERS + 2)
    layers = []
    idx = 0
    for l in range(N_LAYERS):
        in_dim = INPUT_DIM if l == 0 else HIDDEN_DIM
        w_ih = jax.random.uniform(keys[idx], (4 * HIDDEN_DIM, in_dim),
                                  minval=-k, maxval=k); idx += 1
        w_hh = jax.random.uniform(keys[idx], (4 * HIDDEN_DIM, HIDDEN_DIM),
                                  minval=-k, maxval=k); idx += 1
        b_ih = jax.random.uniform(keys[idx], (4 * HIDDEN_DIM,),
                                  minval=-k, maxval=k); idx += 1
        b_hh = jax.random.uniform(keys[idx], (4 * HIDDEN_DIM,),
                                  minval=-k, maxval=k); idx += 1
        layers.append((w_ih, w_hh, b_ih, b_hh))
    w_out = jax.random.uniform(keys[idx], (OUTPUT_DIM, HIDDEN_DIM),
                               minval=-k, maxval=k); idx += 1
    b_out = jax.random.uniform(keys[idx], (OUTPUT_DIM,), minval=-k, maxval=k)
    return layers, (w_out, b_out)


def pack_params(layers, out_params):
    """Pack weights into the fused [i|f|g|o] layout (zero kernel cost).

    * torch (4H, in) weights become (in, 4H): row k holds the fused-gate
      weights for input/hidden unit k, so each cell needs only H broadcast
      MACs per source.
    * b_ih + b_hh are fused per layer; layer-0's bias is folded into the
      precomputed x-projection.
    * The 0.5 pre-scale of the sigmoid-via-tanh trick is folded into the
      i/f/o columns of every weight/bias; gmul/goff apply the matching
      post-scale/offset after the single fused tanh.
    """
    H, G = HIDDEN_DIM, 4 * HIDDEN_DIM
    pre_scale = np.concatenate([np.full(H, 0.5), np.full(H, 0.5),
                                np.ones(H), np.full(H, 0.5)]).astype(np.float32)
    gmul = pre_scale.reshape(1, G).copy()                       # 0.5 / 1.0
    goff = np.concatenate([np.full(H, 0.5), np.full(H, 0.5),
                           np.zeros(H), np.full(H, 0.5)]
                          ).astype(np.float32).reshape(1, G)    # 0.5 / 0.0

    def fuse_w(w):                     # torch (4H, in) -> (in, 4H), scaled
        return (jnp.asarray(w, jnp.float32).T * pre_scale[None, :]).astype(jnp.float32)

    def fuse_b(b_ih, b_hh):            # -> (1, 4H), scaled
        b = (jnp.asarray(b_ih, jnp.float32) + jnp.asarray(b_hh, jnp.float32))
        return (b * pre_scale).reshape(1, G).astype(jnp.float32)

    w0f = fuse_w(layers[0][0])                                            # (1, G)
    b0f = fuse_b(layers[0][2], layers[0][3])                              # (1, G)
    wih = jnp.concatenate([fuse_w(layers[l][0]) for l in range(1, N_LAYERS)],
                          axis=0)                                         # ((L-1)*H, G)
    whh = jnp.concatenate([fuse_w(layers[l][1]) for l in range(N_LAYERS)],
                          axis=0)                                         # (L*H, G)
    b = jnp.concatenate([fuse_b(layers[l][2], layers[l][3])
                         for l in range(1, N_LAYERS)], axis=0)            # (L-1, G)
    w_out, b_out = out_params
    return (w0f, b0f, wih, whh, b,
            jnp.asarray(gmul), jnp.asarray(goff),
            w_out.astype(jnp.float32),                                    # (1, H)
            b_out.reshape(1, 1).astype(jnp.float32))                      # (1, 1)


# ----------------------------------------------------------------------------
# Pure-JAX reference (mirrors the PyTorch forward) for correctness check
# ----------------------------------------------------------------------------
def reference_forward(x, hidden, layers, out_params):
    H = HIDDEN_DIM
    h = [hidden[0][l] for l in range(N_LAYERS)]
    c = [hidden[1][l] for l in range(N_LAYERS)]
    B, T, _ = x.shape
    last = None
    for t in range(T):
        inp = x[:, t, :]
        for l, (w_ih, w_hh, b_ih, b_hh) in enumerate(layers):
            gates = inp @ w_ih.T + h[l] @ w_hh.T + b_ih + b_hh
            i = jax.nn.sigmoid(gates[:, 0 * H:1 * H])
            f = jax.nn.sigmoid(gates[:, 1 * H:2 * H])
            g = jnp.tanh(gates[:, 2 * H:3 * H])
            o = jax.nn.sigmoid(gates[:, 3 * H:4 * H])
            c[l] = f * c[l] + i * g
            h[l] = o * jnp.tanh(c[l])
            inp = h[l]
        last = inp
    w_out, b_out = out_params
    y = last @ w_out.T + b_out                               # (B, OUT)
    out = y.reshape(B, -1)[:, -1] + 1e-8
    return out, (jnp.stack(h), jnp.stack(c))


if __name__ == "__main__":
    B, T = 2, 8                                              # small example shapes
    key = jax.random.PRNGKey(0)
    kx, kp = jax.random.split(key)

    x = jax.random.normal(kx, (B, T, INPUT_DIM), jnp.float32)
    # init_hidden(): zeros of shape (n_layers, batch, hidden_dim)
    h0 = jnp.zeros((N_LAYERS, B, HIDDEN_DIM), jnp.float32)
    c0 = jnp.zeros_like(h0)

    layers, out_params = init_params(kp)
    packed = pack_params(layers, out_params)

    out, (hn, cn) = model_forward(x, (h0, c0), packed)
    jax.block_until_ready((out, hn, cn))

    ref_out, (ref_hn, ref_cn) = reference_forward(x, (h0, c0), layers, out_params)
    np.testing.assert_allclose(np.asarray(out), np.asarray(ref_out), rtol=5e-5, atol=5e-5)
    np.testing.assert_allclose(np.asarray(hn), np.asarray(ref_hn), rtol=5e-5, atol=5e-5)
    np.testing.assert_allclose(np.asarray(cn), np.asarray(ref_cn), rtol=5e-5, atol=5e-5)

    print("KERNEL_OK")
</pallas_src>

<mosaic_0001>
module attributes {stable_mosaic.version = 11 : i64} {
  func.func @_lstm_kernel(%arg0: memref<2x8xf32, #tpu.memory_space<vmem>>, %arg1: memref<3x2x4xf32, #tpu.memory_space<vmem>>, %arg2: memref<3x2x4xf32, #tpu.memory_space<vmem>>, %arg3: memref<1x16xf32, #tpu.memory_space<vmem>>, %arg4: memref<1x16xf32, #tpu.memory_space<vmem>>, %arg5: memref<8x16xf32, #tpu.memory_space<vmem>>, %arg6: memref<12x16xf32, #tpu.memory_space<vmem>>, %arg7: memref<2x16xf32, #tpu.memory_space<vmem>>, %arg8: memref<1x16xf32, #tpu.memory_space<vmem>>, %arg9: memref<1x16xf32, #tpu.memory_space<vmem>>, %arg10: memref<1x4xf32, #tpu.memory_space<vmem>>, %arg11: memref<1x1xf32, #tpu.memory_space<vmem>>, %arg12: memref<2x1xf32, #tpu.memory_space<vmem>>, %arg13: memref<3x2x4xf32, #tpu.memory_space<vmem>>, %arg14: memref<3x2x4xf32, #tpu.memory_space<vmem>>) attributes {dimension_semantics = [], scalar_prefetch = 0 : i64, scratch_operands = 0 : i64, tpu.core_type = #tpu.core_type<tc>} {
    %c0 = arith.constant 0 : index
    %c0_0 = arith.constant 0 : index
    %0 = vector.load %arg8[%c0, %c0_0] : memref<1x16xf32, #tpu.memory_space<vmem>>, vector<1x16xf32>
    %c0_1 = arith.constant 0 : index
    %c0_2 = arith.constant 0 : index
    %1 = vector.load %arg9[%c0_1, %c0_2] : memref<1x16xf32, #tpu.memory_space<vmem>>, vector<1x16xf32>
    %c0_3 = arith.constant 0 : index
    %c0_4 = arith.constant 0 : index
    %2 = vector.load %arg0[%c0_3, %c0_4] : memref<2x8xf32, #tpu.memory_space<vmem>>, vector<2x8xf32>
    %c0_5 = arith.constant 0 : index
    %c0_6 = arith.constant 0 : index
    %3 = vector.load %arg3[%c0_5, %c0_6] : memref<1x16xf32, #tpu.memory_space<vmem>>, vector<1x16xf32>
    %c0_7 = arith.constant 0 : index
    %c0_8 = arith.constant 0 : index
    %4 = vector.load %arg4[%c0_7, %c0_8] : memref<1x16xf32, #tpu.memory_space<vmem>>, vector<1x16xf32>
    %5 = vector.extract_strided_slice %2 {offsets = [0, 0], sizes = [2, 1], strides = [1, 1]} : vector<2x8xf32> to vector<2x1xf32>
    %6 = vector.shape_cast %5 : vector<2x1xf32> to vector<2x1xf32>
    %7 = vector.broadcast %6 : vector<2x1xf32> to vector<2x16xf32>
    %8 = vector.broadcast %3 : vector<1x16xf32> to vector<2x16xf32>
    %9 = arith.mulf %7, %8 : vector<2x16xf32>
    %10 = vector.broadcast %4 : vector<1x16xf32> to vector<2x16xf32>
    %11 = arith.addf %10, %9 : vector<2x16xf32>
    %12 = vector.extract_strided_slice %2 {offsets = [0, 1], sizes = [2, 1], strides = [1, 1]} : vector<2x8xf32> to vector<2x1xf32>
    %13 = vector.shape_cast %12 : vector<2x1xf32> to vector<2x1xf32>
    %14 = vector.broadcast %13 : vector<2x1xf32> to vector<2x16xf32>
    %15 = vector.broadcast %3 : vector<1x16xf32> to vector<2x16xf32>
    %16 = arith.mulf %14, %15 : vector<2x16xf32>
    %17 = vector.broadcast %4 : vector<1x16xf32> to vector<2x16xf32>
    %18 = arith.addf %17, %16 : vector<2x16xf32>
    %19 = vector.extract_strided_slice %2 {offsets = [0, 2], sizes = [2, 1], strides = [1, 1]} : vector<2x8xf32> to vector<2x1xf32>
    %20 = vector.shape_cast %19 : vector<2x1xf32> to vector<2x1xf32>
    %21 = vector.broadcast %20 : vector<2x1xf32> to vector<2x16xf32>
    %22 = vector.broadcast %3 : vector<1x16xf32> to vector<2x16xf32>
    %23 = arith.mulf %21, %22 : vector<2x16xf32>
    %24 = vector.broadcast %4 : vector<1x16xf32> to vector<2x16xf32>
    %25 = arith.addf %24, %23 : vector<2x16xf32>
    %26 = vector.extract_strided_slice %2 {offsets = [0, 3], sizes = [2, 1], strides = [1, 1]} : vector<2x8xf32> to vector<2x1xf32>
    %27 = vector.shape_cast %26 : vector<2x1xf32> to vector<2x1xf32>
    %28 = vector.broadcast %27 : vector<2x1xf32> to vector<2x16xf32>
    %29 = vector.broadcast %3 : vector<1x16xf32> to vector<2x16xf32>
    %30 = arith.mulf %28, %29 : vector<2x16xf32>
    %31 = vector.broadcast %4 : vector<1x16xf32> to vector<2x16xf32>
    %32 = arith.addf %31, %30 : vector<2x16xf32>
    %33 = vector.extract_strided_slice %2 {offsets = [0, 4], sizes = [2, 1], strides = [1, 1]} : vector<2x8xf32> to vector<2x1xf32>
    %34 = vector.shape_cast %33 : vector<2x1xf32> to vector<2x1xf32>
    %35 = vector.broadcast %34 : vector<2x1xf32> to vector<2x16xf32>
    %36 = vector.broadcast %3 : vector<1x16xf32> to vector<2x16xf32>
    %37 = arith.mulf %35, %36 : vector<2x16xf32>
    %38 = vector.broadcast %4 : vector<1x16xf32> to vector<2x16xf32>
    %39 = arith.addf %38, %37 : vector<2x16xf32>
    %40 = vector.extract_strided_slice %2 {offsets = [0, 5], sizes = [2, 1], strides = [1, 1]} : vector<2x8xf32> to vector<2x1xf32>
    %41 = vector.shape_cast %40 : vector<2x1xf32> to vector<2x1xf32>
    %42 = vector.broadcast %41 : vector<2x1xf32> to vector<2x16xf32>
    %43 = vector.broadcast %3 : vector<1x16xf32> to vector<2x16xf32>
    %44 = arith.mulf %42, %43 : vector<2x16xf32>
    %45 = vector.broadcast %4 : vector<1x16xf32> to vector<2x16xf32>
    %46 = arith.addf %45, %44 : vector<2x16xf32>
    %47 = vector.extract_strided_slice %2 {offsets = [0, 6], sizes = [2, 1], strides = [1, 1]} : vector<2x8xf32> to vector<2x1xf32>
    %48 = vector.shape_cast %47 : vector<2x1xf32> to vector<2x1xf32>
    %49 = vector.broadcast %48 : vector<2x1xf32> to vector<2x16xf32>
    %50 = vector.broadcast %3 : vector<1x16xf32> to vector<2x16xf32>
    %51 = arith.mulf %49, %50 : vector<2x16xf32>
    %52 = vector.broadcast %4 : vector<1x16xf32> to vector<2x16xf32>
    %53 = arith.addf %52, %51 : vector<2x16xf32>
    %54 = vector.extract_strided_slice %2 {offsets = [0, 7], sizes = [2, 1], strides = [1, 1]} : vector<2x8xf32> to vector<2x1xf32>
    %55 = vector.shape_cast %54 : vector<2x1xf32> to vector<2x1xf32>
    %56 = vector.broadcast %55 : vector<2x1xf32> to vector<2x16xf32>
    %57 = vector.broadcast %3 : vector<1x16xf32> to vector<2x16xf32>
    %58 = arith.mulf %56, %57 : vector<2x16xf32>
    %59 = vector.broadcast %4 : vector<1x16xf32> to vector<2x16xf32>
    %60 = arith.addf %59, %58 : vector<2x16xf32>
    %c0_9 = arith.constant 0 : index
    %c0_10 = arith.constant 0 : index
    %c0_11 = arith.constant 0 : index
    %61 = vector.load %arg1[%c0_9, %c0_10, %c0_11] : memref<3x2x4xf32, #tpu.memory_space<vmem>>, vector<1x2x4xf32>
    %62 = vector.shape_cast %61 : vector<1x2x4xf32> to vector<2x4xf32>
    %c1 = arith.constant 1 : index
    %c0_12 = arith.constant 0 : index
    %c0_13 = arith.constant 0 : index
    %63 = vector.load %arg1[%c1, %c0_12, %c0_13] : memref<3x2x4xf32, #tpu.memory_space<vmem>>, vector<1x2x4xf32>
    %64 = vector.shape_cast %63 : vector<1x2x4xf32> to vector<2x4xf32>
    %c2 = arith.constant 2 : index
    %c0_14 = arith.constant 0 : index
    %c0_15 = arith.constant 0 : index
    %65 = vector.load %arg1[%c2, %c0_14, %c0_15] : memref<3x2x4xf32, #tpu.memory_space<vmem>>, vector<1x2x4xf32>
    %66 = vector.shape_cast %65 : vector<1x2x4xf32> to vector<2x4xf32>
    %c0_16 = arith.constant 0 : index
    %c0_17 = arith.constant 0 : index
    %c0_18 = arith.constant 0 : index
    %67 = vector.load %arg2[%c0_16, %c0_17, %c0_18] : memref<3x2x4xf32, #tpu.memory_space<vmem>>, vector<1x2x4xf32>
    %68 = vector.shape_cast %67 : vector<1x2x4xf32> to vector<2x4xf32>
    %c1_19 = arith.constant 1 : index
    %c0_20 = arith.constant 0 : index
    %c0_21 = arith.constant 0 : index
    %69 = vector.load %arg2[%c1_19, %c0_20, %c0_21] : memref<3x2x4xf32, #tpu.memory_space<vmem>>, vector<1x2x4xf32>
    %70 = vector.shape_cast %69 : vector<1x2x4xf32> to vector<2x4xf32>
    %c2_22 = arith.constant 2 : index
    %c0_23 = arith.constant 0 : index
    %c0_24 = arith.constant 0 : index
    %71 = vector.load %arg2[%c2_22, %c0_23, %c0_24] : memref<3x2x4xf32, #tpu.memory_space<vmem>>, vector<1x2x4xf32>
    %72 = vector.shape_cast %71 : vector<1x2x4xf32> to vector<2x4xf32>
    %73 = vector.extract_strided_slice %62 {offsets = [0, 0], sizes = [2, 1], strides = [1, 1]} : vector<2x4xf32> to vector<2x1xf32>
    %74 = vector.shape_cast %73 : vector<2x1xf32> to vector<2x1xf32>
    %75 = vector.broadcast %74 : vector<2x1xf32> to vector<2x16xf32>
    %76 = vector.extract_strided_slice %62 {offsets = [0, 1], sizes = [2, 1], strides = [1, 1]} : vector<2x4xf32> to vector<2x1xf32>
    %77 = vector.shape_cast %76 : vector<2x1xf32> to vector<2x1xf32>
    %78 = vector.broadcast %77 : vector<2x1xf32> to vector<2x16xf32>
    %79 = vector.extract_strided_slice %62 {offsets = [0, 2], sizes = [2, 1], strides = [1, 1]} : vector<2x4xf32> to vector<2x1xf32>
    %80 = vector.shape_cast %79 : vector<2x1xf32> to vector<2x1xf32>
    %81 = vector.broadcast %80 : vector<2x1xf32> to vector<2x16xf32>
    %82 = vector.extract_strided_slice %62 {offsets = [0, 3], sizes = [2, 1], strides = [1, 1]} : vector<2x4xf32> to vector<2x1xf32>
    %83 = vector.shape_cast %82 : vector<2x1xf32> to vector<2x1xf32>
    %84 = vector.broadcast %83 : vector<2x1xf32> to vector<2x16xf32>
    %85 = vector.extract_strided_slice %64 {offsets = [0, 0], sizes = [2, 1], strides = [1, 1]} : vector<2x4xf32> to vector<2x1xf32>
    %86 = vector.shape_cast %85 : vector<2x1xf32> to vector<2x1xf32>
    %87 = vector.broadcast %86 : vector<2x1xf32> to vector<2x16xf32>
    %88 = vector.extract_strided_slice %64 {offsets = [0, 1], sizes = [2, 1], strides = [1, 1]} : vector<2x4xf32> to vector<2x1xf32>
    %89 = vector.shape_cast %88 : vector<2x1xf32> to vector<2x1xf32>
    %90 = vector.broadcast %89 : vector<2x1xf32> to vector<2x16xf32>
    %91 = vector.extract_strided_slice %64 {offsets = [0, 2], sizes = [2, 1], strides = [1, 1]} : vector<2x4xf32> to vector<2x1xf32>
    %92 = vector.shape_cast %91 : vector<2x1xf32> to vector<2x1xf32>
    %93 = vector.broadcast %92 : vector<2x1xf32> to vector<2x16xf32>
    %94 = vector.extract_strided_slice %64 {offsets = [0, 3], sizes = [2, 1], strides = [1, 1]} : vector<2x4xf32> to vector<2x1xf32>
    %95 = vector.shape_cast %94 : vector<2x1xf32> to vector<2x1xf32>
    %96 = vector.broadcast %95 : vector<2x1xf32> to vector<2x16xf32>
    %97 = vector.extract_strided_slice %66 {offsets = [0, 0], sizes = [2, 1], strides = [1, 1]} : vector<2x4xf32> to vector<2x1xf32>
    %98 = vector.shape_cast %97 : vector<2x1xf32> to vector<2x1xf32>
    %99 = vector.broadcast %98 : vector<2x1xf32> to vector<2x16xf32>
    %100 = vector.extract_strided_slice %66 {offsets = [0, 1], sizes = [2, 1], strides = [1, 1]} : vector<2x4xf32> to vector<2x1xf32>
    %101 = vector.shape_cast %100 : vector<2x1xf32> to vector<2x1xf32>
    %102 = vector.broadcast %101 : vector<2x1xf32> to vector<2x16xf32>
    %103 = vector.extract_strided_slice %66 {offsets = [0, 2], sizes = [2, 1], strides = [1, 1]} : vector<2x4xf32> to vector<2x1xf32>
    %104 = vector.shape_cast %103 : vector<2x1xf32> to vector<2x1xf32>
    %105 = vector.broadcast %104 : vector<2x1xf32> to vector<2x16xf32>
    %106 = vector.extract_strided_slice %66 {offsets = [0, 3], sizes = [2, 1], strides = [1, 1]} : vector<2x4xf32> to vector<2x1xf32>
    %107 = vector.shape_cast %106 : vector<2x1xf32> to vector<2x1xf32>
    %108 = vector.broadcast %107 : vector<2x1xf32> to vector<2x16xf32>
    %c0_25 = arith.constant 0 : index
    %c0_26 = arith.constant 0 : index
    %109 = vector.load %arg6[%c0_25, %c0_26] : memref<12x16xf32, #tpu.memory_space<vmem>>, vector<1x16xf32>
    %110 = vector.broadcast %109 : vector<1x16xf32> to vector<2x16xf32>
    %111 = arith.mulf %75, %110 : vector<2x16xf32>
    %c1_27 = arith.constant 1 : index
    %c0_28 = arith.constant 0 : index
    %112 = vector.load %arg6[%c1_27, %c0_28] : memref<12x16xf32, #tpu.memory_space<vmem>>, vector<1x16xf32>
    %113 = vector.broadcast %112 : vector<1x16xf32> to vector<2x16xf32>
    %114 = arith.mulf %78, %113 : vector<2x16xf32>
    %c2_29 = arith.constant 2 : index
    %c0_30 = arith.constant 0 : index
    %115 = vector.load %arg6[%c2_29, %c0_30] : memref<12x16xf32, #tpu.memory_space<vmem>>, vector<1x16xf32>
    %116 = vector.broadcast %115 : vector<1x16xf32> to vector<2x16xf32>
    %117 = arith.mulf %81, %116 : vector<2x16xf32>
    %c3 = arith.constant 3 : index
    %c0_31 = arith.constant 0 : index
    %118 = vector.load %arg6[%c3, %c0_31] : memref<12x16xf32, #tpu.memory_space<vmem>>, vector<1x16xf32>
    %119 = vector.broadcast %118 : vector<1x16xf32> to vector<2x16xf32>
    %120 = arith.mulf %84, %119 : vector<2x16xf32>
    %121 = arith.addf %111, %114 : vector<2x16xf32>
    %122 = arith.addf %117, %120 : vector<2x16xf32>
    %123 = arith.addf %121, %122 : vector<2x16xf32>
    %124 = arith.addf %123, %11 : vector<2x16xf32>
    %125 = math.tanh %124 : vector<2x16xf32>
    %126 = vector.broadcast %0 : vector<1x16xf32> to vector<2x16xf32>
    %127 = arith.mulf %125, %126 : vector<2x16xf32>
    %128 = vector.broadcast %1 : vector<1x16xf32> to vector<2x16xf32>
    %129 = arith.addf %127, %128 : vector<2x16xf32>
    %130 = vector.extract_strided_slice %129 {offsets = [0, 0], sizes = [2, 4], strides = [1, 1]} : vector<2x16xf32> to vector<2x4xf32>
    %131 = vector.extract_strided_slice %129 {offsets = [0, 4], sizes = [2, 4], strides = [1, 1]} : vector<2x16xf32> to vector<2x4xf32>
    %132 = vector.extract_strided_slice %129 {offsets = [0, 8], sizes = [2, 4], strides = [1, 1]} : vector<2x16xf32> to vector<2x4xf32>
    %133 = vector.extract_strided_slice %129 {offsets = [0, 12], sizes = [2, 4], strides = [1, 1]} : vector<2x16xf32> to vector<2x4xf32>
    %134 = arith.mulf %131, %68 : vector<2x4xf32>
    %135 = arith.mulf %130, %132 : vector<2x4xf32>
    %136 = arith.addf %134, %135 : vector<2x4xf32>
    %137 = math.tanh %136 : vector<2x4xf32>
    %138 = arith.mulf %133, %137 : vector<2x4xf32>
    %139 = vector.extract_strided_slice %138 {offsets = [0, 0], sizes = [2, 1], strides = [1, 1]} : vector<2x4xf32> to vector<2x1xf32>
    %140 = vector.shape_cast %139 : vector<2x1xf32> to vector<2x1xf32>
    %141 = vector.broadcast %140 : vector<2x1xf32> to vector<2x16xf32>
    %142 = vector.extract_strided_slice %138 {offsets = [0, 1], sizes = [2, 1], strides = [1, 1]} : vector<2x4xf32> to vector<2x1xf32>
    %143 = vector.shape_cast %142 : vector<2x1xf32> to vector<2x1xf32>
    %144 = vector.broadcast %143 : vector<2x1xf32> to vector<2x16xf32>
    %145 = vector.extract_strided_slice %138 {offsets = [0, 2], sizes = [2, 1], strides = [1, 1]} : vector<2x4xf32> to vector<2x1xf32>
    %146 = vector.shape_cast %145 : vector<2x1xf32> to vector<2x1xf32>
    %147 = vector.broadcast %146 : vector<2x1xf32> to vector<2x16xf32>
    %148 = vector.extract_strided_slice %138 {offsets = [0, 3], sizes = [2, 1], strides = [1, 1]} : vector<2x4xf32> to vector<2x1xf32>
    %149 = vector.shape_cast %148 : vector<2x1xf32> to vector<2x1xf32>
    %150 = vector.broadcast %149 : vector<2x1xf32> to vector<2x16xf32>
    %c0_32 = arith.constant 0 : index
    %c0_33 = arith.constant 0 : index
    %151 = vector.load %arg5[%c0_32, %c0_33] : memref<8x16xf32, #tpu.memory_space<vmem>>, vector<1x16xf32>
    %152 = vector.broadcast %151 : vector<1x16xf32> to vector<2x16xf32>
    %153 = arith.mulf %141, %152 : vector<2x16xf32>
    %c1_34 = arith.constant 1 : index
    %c0_35 = arith.constant 0 : index
    %154 = vector.load %arg5[%c1_34, %c0_35] : memref<8x16xf32, #tpu.memory_space<vmem>>, vector<1x16xf32>
    %155 = vector.broadcast %154 : vector<1x16xf32> to vector<2x16xf32>
    %156 = arith.mulf %144, %155 : vector<2x16xf32>
    %c2_36 = arith.constant 2 : index
    %c0_37 = arith.constant 0 : index
    %157 = vector.load %arg5[%c2_36, %c0_37] : memref<8x16xf32, #tpu.memory_space<vmem>>, vector<1x16xf32>
    %158 = vector.broadcast %157 : vector<1x16xf32> to vector<2x16xf32>
    %159 = arith.mulf %147, %158 : vector<2x16xf32>
    %c3_38 = arith.constant 3 : index
    %c0_39 = arith.constant 0 : index
    %160 = vector.load %arg5[%c3_38, %c0_39] : memref<8x16xf32, #tpu.memory_space<vmem>>, vector<1x16xf32>
    %161 = vector.broadcast %160 : vector<1x16xf32> to vector<2x16xf32>
    %162 = arith.mulf %150, %161 : vector<2x16xf32>
    %c0_40 = arith.constant 0 : index
    %c0_41 = arith.constant 0 : index
    %163 = vector.load %arg7[%c0_40, %c0_41] : memref<2x16xf32, #tpu.memory_space<vmem>>, vector<1x16xf32>
    %c4 = arith.constant 4 : index
    %c0_42 = arith.constant 0 : index
    %164 = vector.load %arg6[%c4, %c0_42] : memref<12x16xf32, #tpu.memory_space<vmem>>, vector<1x16xf32>
    %165 = vector.broadcast %164 : vector<1x16xf32> to vector<2x16xf32>
    %166 = arith.mulf %87, %165 : vector<2x16xf32>
    %c5 = arith.constant 5 : index
    %c0_43 = arith.constant 0 : index
    %167 = vector.load %arg6[%c5, %c0_43] : memref<12x16xf32, #tpu.memory_space<vmem>>, vector<1x16xf32>
    %168 = vector.broadcast %167 : vector<1x16xf32> to vector<2x16xf32>
    %169 = arith.mulf %90, %168 : vector<2x16xf32>
    %c6 = arith.constant 6 : index
    %c0_44 = arith.constant 0 : index
    %170 = vector.load %arg6[%c6, %c0_44] : memref<12x16xf32, #tpu.memory_space<vmem>>, vector<1x16xf32>
    %171 = vector.broadcast %170 : vector<1x16xf32> to vector<2x16xf32>
    %172 = arith.mulf %93, %171 : vector<2x16xf32>
    %c7 = arith.constant 7 : index
    %c0_45 = arith.constant 0 : index
    %173 = vector.load %arg6[%c7, %c0_45] : memref<12x16xf32, #tpu.memory_space<vmem>>, vector<1x16xf32>
    %174 = vector.broadcast %173 : vector<1x16xf32> to vector<2x16xf32>
    %175 = arith.mulf %96, %174 : vector<2x16xf32>
    %176 = arith.addf %166, %169 : vector<2x16xf32>
    %177 = arith.addf %172, %175 : vector<2x16xf32>
    %178 = arith.addf %176, %177 : vector<2x16xf32>
    %179 = arith.addf %153, %156 : vector<2x16xf32>
    %180 = arith.addf %159, %162 : vector<2x16xf32>
    %181 = arith.addf %179, %180 : vector<2x16xf32>
    %182 = vector.broadcast %163 : vector<1x16xf32> to vector<2x16xf32>
    %183 = arith.addf %181, %182 : vector<2x16xf32>
    %184 = arith.addf %178, %183 : vector<2x16xf32>
    %185 = math.tanh %184 : vector<2x16xf32>
    %186 = vector.broadcast %0 : vector<1x16xf32> to vector<2x16xf32>
    %187 = arith.mulf %185, %186 : vector<2x16xf32>
    %188 = vector.broadcast %1 : vector<1x16xf32> to vector<2x16xf32>
    %189 = arith.addf %187, %188 : vector<2x16xf32>
    %190 = vector.extract_strided_slice %189 {offsets = [0, 0], sizes = [2, 4], strides = [1, 1]} : vector<2x16xf32> to vector<2x4xf32>
    %191 = vector.extract_strided_slice %189 {offsets = [0, 4], sizes = [2, 4], strides = [1, 1]} : vector<2x16xf32> to vector<2x4xf32>
    %192 = vector.extract_strided_slice %189 {offsets = [0, 8], sizes = [2, 4], strides = [1, 1]} : vector<2x16xf32> to vector<2x4xf32>
    %193 = vector.extract_strided_slice %189 {offsets = [0, 12], sizes = [2, 4], strides = [1, 1]} : vector<2x16xf32> to vector<2x4xf32>
    %194 = arith.mulf %191, %70 : vector<2x4xf32>
    %195 = arith.mulf %190, %192 : vector<2x4xf32>
    %196 = arith.addf %194, %195 : vector<2x4xf32>
    %197 = math.tanh %196 : vector<2x4xf32>
    %198 = arith.mulf %193, %197 : vector<2x4xf32>
    %199 = vector.extract_strided_slice %198 {offsets = [0, 0], sizes = [2, 1], strides = [1, 1]} : vector<2x4xf32> to vector<2x1xf32>
    %200 = vector.shape_cast %199 : vector<2x1xf32> to vector<2x1xf32>
    %201 = vector.broadcast %200 : vector<2x1xf32> to vector<2x16xf32>
    %202 = vector.extract_strided_slice %198 {offsets = [0, 1], sizes = [2, 1], strides = [1, 1]} : vector<2x4xf32> to vector<2x1xf32>
    %203 = vector.shape_cast %202 : vector<2x1xf32> to vector<2x1xf32>
    %204 = vector.broadcast %203 : vector<2x1xf32> to vector<2x16xf32>
    %205 = vector.extract_strided_slice %198 {offsets = [0, 2], sizes = [2, 1], strides = [1, 1]} : vector<2x4xf32> to vector<2x1xf32>
    %206 = vector.shape_cast %205 : vector<2x1xf32> to vector<2x1xf32>
    %207 = vector.broadcast %206 : vector<2x1xf32> to vector<2x16xf32>
    %208 = vector.extract_strided_slice %198 {offsets = [0, 3], sizes = [2, 1], strides = [1, 1]} : vector<2x4xf32> to vector<2x1xf32>
    %209 = vector.shape_cast %208 : vector<2x1xf32> to vector<2x1xf32>
    %210 = vector.broadcast %209 : vector<2x1xf32> to vector<2x16xf32>
    %c4_46 = arith.constant 4 : index
    %c0_47 = arith.constant 0 : index
    %211 = vector.load %arg5[%c4_46, %c0_47] : memref<8x16xf32, #tpu.memory_space<vmem>>, vector<1x16xf32>
    %212 = vector.broadcast %211 : vector<1x16xf32> to vector<2x16xf32>
    %213 = arith.mulf %201, %212 : vector<2x16xf32>
    %c5_48 = arith.constant 5 : index
    %c0_49 = arith.constant 0 : index
    %214 = vector.load %arg5[%c5_48, %c0_49] : memref<8x16xf32, #tpu.memory_space<vmem>>, vector<1x16xf32>
    %215 = vector.broadcast %214 : vector<1x16xf32> to vector<2x16xf32>
    %216 = arith.mulf %204, %215 : vector<2x16xf32>
    %c6_50 = arith.constant 6 : index
    %c0_51 = arith.constant 0 : index
    %217 = vector.load %arg5[%c6_50, %c0_51] : memref<8x16xf32, #tpu.memory_space<vmem>>, vector<1x16xf32>
    %218 = vector.broadcast %217 : vector<1x16xf32> to vector<2x16xf32>
    %219 = arith.mulf %207, %218 : vector<2x16xf32>
    %c7_52 = arith.constant 7 : index
    %c0_53 = arith.constant 0 : index
    %220 = vector.load %arg5[%c7_52, %c0_53] : memref<8x16xf32, #tpu.memory_space<vmem>>, vector<1x16xf32>
    %221 = vector.broadcast %220 : vector<1x16xf32> to vector<2x16xf32>
    %222 = arith.mulf %210, %221 : vector<2x16xf32>
    %c1_54 = arith.constant 1 : index
    %c0_55 = arith.constant 0 : index
    %223 = vector.load %arg7[%c1_54, %c0_55] : memref<2x16xf32, #tpu.memory_space<vmem>>, vector<1x16xf32>
    %c8 = arith.constant 8 : index
    %c0_56 = arith.constant 0 : index
    %224 = vector.load %arg6[%c8, %c0_56] : memref<12x16xf32, #tpu.memory_space<vmem>>, vector<1x16xf32>
    %225 = vector.broadcast %224 : vector<1x16xf32> to vector<2x16xf32>
    %226 = arith.mulf %99, %225 : vector<2x16xf32>
    %c9 = arith.constant 9 : index
    %c0_57 = arith.constant 0 : index
    %227 = vector.load %arg6[%c9, %c0_57] : memref<12x16xf32, #tpu.memory_space<vmem>>, vector<1x16xf32>
    %228 = vector.broadcast %227 : vector<1x16xf32> to vector<2x16xf32>
    %229 = arith.mulf %102, %228 : vector<2x16xf32>
    %c10 = arith.constant 10 : index
    %c0_58 = arith.constant 0 : index
    %230 = vector.load %arg6[%c10, %c0_58] : memref<12x16xf32, #tpu.memory_space<vmem>>, vector<1x16xf32>
    %231 = vector.broadcast %230 : vector<1x16xf32> to vector<2x16xf32>
    %232 = arith.mulf %105, %231 : vector<2x16xf32>
    %c11 = arith.constant 11 : index
    %c0_59 = arith.constant 0 : index
    %233 = vector.load %arg6[%c11, %c0_59] : memref<12x16xf32, #tpu.memory_space<vmem>>, vector<1x16xf32>
    %234 = vector.broadcast %233 : vector<1x16xf32> to vector<2x16xf32>
    %235 = arith.mulf %108, %234 : vector<2x16xf32>
    %236 = arith.addf %226, %229 : vector<2x16xf32>
    %237 = arith.addf %232, %235 : vector<2x16xf32>
    %238 = arith.addf %236, %237 : vector<2x16xf32>
    %239 = arith.addf %213, %216 : vector<2x16xf32>
    %240 = arith.addf %219, %222 : vector<2x16xf32>
    %241 = arith.addf %239, %240 : vector<2x16xf32>
    %242 = vector.broadcast %223 : vector<1x16xf32> to vector<2x16xf32>
    %243 = arith.addf %241, %242 : vector<2x16xf32>
    %244 = arith.addf %238, %243 : vector<2x16xf32>
    %245 = math.tanh %244 : vector<2x16xf32>
    %246 = vector.broadcast %0 : vector<1x16xf32> to vector<2x16xf32>
    %247 = arith.mulf %245, %246 : vector<2x16xf32>
    %248 = vector.broadcast %1 : vector<1x16xf32> to vector<2x16xf32>
    %249 = arith.addf %247, %248 : vector<2x16xf32>
    %250 = vector.extract_strided_slice %249 {offsets = [0, 0], sizes = [2, 4], strides = [1, 1]} : vector<2x16xf32> to vector<2x4xf32>
    %251 = vector.extract_strided_slice %249 {offsets = [0, 4], sizes = [2, 4], strides = [1, 1]} : vector<2x16xf32> to vector<2x4xf32>
    %252 = vector.extract_strided_slice %249 {offsets = [0, 8], sizes = [2, 4], strides = [1, 1]} : vector<2x16xf32> to vector<2x4xf32>
    %253 = vector.extract_strided_slice %249 {offsets = [0, 12], sizes = [2, 4], strides = [1, 1]} : vector<2x16xf32> to vector<2x4xf32>
    %254 = arith.mulf %251, %72 : vector<2x4xf32>
    %255 = arith.mulf %250, %252 : vector<2x4xf32>
    %256 = arith.addf %254, %255 : vector<2x4xf32>
    %257 = math.tanh %256 : vector<2x4xf32>
    %258 = arith.mulf %253, %257 : vector<2x4xf32>
    %259 = vector.extract_strided_slice %258 {offsets = [0, 0], sizes = [2, 1], strides = [1, 1]} : vector<2x4xf32> to vector<2x1xf32>
    %260 = vector.shape_cast %259 : vector<2x1xf32> to vector<2x1xf32>
    %261 = vector.broadcast %260 : vector<2x1xf32> to vector<2x16xf32>
    %262 = vector.extract_strided_slice %258 {offsets = [0, 1], sizes = [2, 1], strides = [1, 1]} : vector<2x4xf32> to vector<2x1xf32>
    %263 = vector.shape_cast %262 : vector<2x1xf32> to vector<2x1xf32>
    %264 = vector.broadcast %263 : vector<2x1xf32> to vector<2x16xf32>
    %265 = vector.extract_strided_slice %258 {offsets = [0, 2], sizes = [2, 1], strides = [1, 1]} : vector<2x4xf32> to vector<2x1xf32>
    %266 = vector.shape_cast %265 : vector<2x1xf32> to vector<2x1xf32>
    %267 = vector.broadcast %266 : vector<2x1xf32> to vector<2x16xf32>
    %268 = vector.extract_strided_slice %258 {offsets = [0, 3], sizes = [2, 1], strides = [1, 1]} : vector<2x4xf32> to vector<2x1xf32>
    %269 = vector.shape_cast %268 : vector<2x1xf32> to vector<2x1xf32>
    %270 = vector.broadcast %269 : vector<2x1xf32> to vector<2x16xf32>
    %c0_60 = arith.constant 0 : index
    %c0_61 = arith.constant 0 : index
    %271 = vector.load %arg6[%c0_60, %c0_61] : memref<12x16xf32, #tpu.memory_space<vmem>>, vector<1x16xf32>
    %272 = vector.broadcast %271 : vector<1x16xf32> to vector<2x16xf32>
    %273 = arith.mulf %141, %272 : vector<2x16xf32>
    %c1_62 = arith.constant 1 : index
    %c0_63 = arith.constant 0 : index
    %274 = vector.load %arg6[%c1_62, %c0_63] : memref<12x16xf32, #tpu.memory_space<vmem>>, vector<1x16xf32>
    %275 = vector.broadcast %274 : vector<1x16xf32> to vector<2x16xf32>
    %276 = arith.mulf %144, %275 : vector<2x16xf32>
    %c2_64 = arith.constant 2 : index
    %c0_65 = arith.constant 0 : index
    %277 = vector.load %arg6[%c2_64, %c0_65] : memref<12x16xf32, #tpu.memory_space<vmem>>, vector<1x16xf32>
    %278 = vector.broadcast %277 : vector<1x16xf32> to vector<2x16xf32>
    %279 = arith.mulf %147, %278 : vector<2x16xf32>
    %c3_66 = arith.constant 3 : index
    %c0_67 = arith.constant 0 : index
    %280 = vector.load %arg6[%c3_66, %c0_67] : memref<12x16xf32, #tpu.memory_space<vmem>>, vector<1x16xf32>
    %281 = vector.broadcast %280 : vector<1x16xf32> to vector<2x16xf32>
    %282 = arith.mulf %150, %281 : vector<2x16xf32>
    %283 = arith.addf %273, %276 : vector<2x16xf32>
    %284 = arith.addf %279, %282 : vector<2x16xf32>
    %285 = arith.addf %283, %284 : vector<2x16xf32>
    %286 = arith.addf %285, %18 : vector<2x16xf32>
    %287 = math.tanh %286 : vector<2x16xf32>
    %288 = vector.broadcast %0 : vector<1x16xf32> to vector<2x16xf32>
    %289 = arith.mulf %287, %288 : vector<2x16xf32>
    %290 = vector.broadcast %1 : vector<1x16xf32> to vector<2x16xf32>
    %291 = arith.addf %289, %290 : vector<2x16xf32>
    %292 = vector.extract_strided_slice %291 {offsets = [0, 0], sizes = [2, 4], strides = [1, 1]} : vector<2x16xf32> to vector<2x4xf32>
    %293 = vector.extract_strided_slice %291 {offsets = [0, 4], sizes = [2, 4], strides = [1, 1]} : vector<2x16xf32> to vector<2x4xf32>
    %294 = vector.extract_strided_slice %291 {offsets = [0, 8], sizes = [2, 4], strides = [1, 1]} : vector<2x16xf32> to vector<2x4xf32>
    %295 = vector.extract_strided_slice %291 {offsets = [0, 12], sizes = [2, 4], strides = [1, 1]} : vector<2x16xf32> to vector<2x4xf32>
    %296 = arith.mulf %293, %136 : vector<2x4xf32>
    %297 = arith.mulf %292, %294 : vector<2x4xf32>
    %298 = arith.addf %296, %297 : vector<2x4xf32>
    %299 = math.tanh %298 : vector<2x4xf32>
    %300 = arith.mulf %295, %299 : vector<2x4xf32>
    %301 = vector.extract_strided_slice %300 {offsets = [0, 0], sizes = [2, 1], strides = [1, 1]} : vector<2x4xf32> to vector<2x1xf32>
    %302 = vector.shape_cast %301 : vector<2x1xf32> to vector<2x1xf32>
    %303 = vector.broadcast %302 : vector<2x1xf32> to vector<2x16xf32>
    %304 = vector.extract_strided_slice %300 {offsets = [0, 1], sizes = [2, 1], strides = [1, 1]} : vector<2x4xf32> to vector<2x1xf32>
    %305 = vector.shape_cast %304 : vector<2x1xf32> to vector<2x1xf32>
    %306 = vector.broadcast %305 : vector<2x1xf32> to vector<2x16xf32>
    %307 = vector.extract_strided_slice %300 {offsets = [0, 2], sizes = [2, 1], strides = [1, 1]} : vector<2x4xf32> to vector<2x1xf32>
    %308 = vector.shape_cast %307 : vector<2x1xf32> to vector<2x1xf32>
    %309 = vector.broadcast %308 : vector<2x1xf32> to vector<2x16xf32>
    %310 = vector.extract_strided_slice %300 {offsets = [0, 3], sizes = [2, 1], strides = [1, 1]} : vector<2x4xf32> to vector<2x1xf32>
    %311 = vector.shape_cast %310 : vector<2x1xf32> to vector<2x1xf32>
    %312 = vector.broadcast %311 : vector<2x1xf32> to vector<2x16xf32>
    %c0_68 = arith.constant 0 : index
    %c0_69 = arith.constant 0 : index
    %313 = vector.load %arg5[%c0_68, %c0_69] : memref<8x16xf32, #tpu.memory_space<vmem>>, vector<1x16xf32>
    %314 = vector.broadcast %313 : vector<1x16xf32> to vector<2x16xf32>
    %315 = arith.mulf %303, %314 : vector<2x16xf32>
    %c1_70 = arith.constant 1 : index
    %c0_71 = arith.constant 0 : index
    %316 = vector.load %arg5[%c1_70, %c0_71] : memref<8x16xf32, #tpu.memory_space<vmem>>, vector<1x16xf32>
    %317 = vector.broadcast %316 : vector<1x16xf32> to vector<2x16xf32>
    %318 = arith.mulf %306, %317 : vector<2x16xf32>
    %c2_72 = arith.constant 2 : index
    %c0_73 = arith.constant 0 : index
    %319 = vector.load %arg5[%c2_72, %c0_73] : memref<8x16xf32, #tpu.memory_space<vmem>>, vector<1x16xf32>
    %320 = vector.broadcast %319 : vector<1x16xf32> to vector<2x16xf32>
    %321 = arith.mulf %309, %320 : vector<2x16xf32>
    %c3_74 = arith.constant 3 : index
    %c0_75 = arith.constant 0 : index
    %322 = vector.load %arg5[%c3_74, %c0_75] : memref<8x16xf32, #tpu.memory_space<vmem>>, vector<1x16xf32>
    %323 = vector.broadcast %322 : vector<1x16xf32> to vector<2x16xf32>
    %324 = arith.mulf %312, %323 : vector<2x16xf32>
    %c0_76 = arith.constant 0 : index
    %c0_77 = arith.constant 0 : index
    %325 = vector.load %arg7[%c0_76, %c0_77] : memref<2x16xf32, #tpu.memory_space<vmem>>, vector<1x16xf32>
    %c4_78 = arith.constant 4 : index
    %c0_79 = arith.constant 0 : index
    %326 = vector.load %arg6[%c4_78, %c0_79] : memref<12x16xf32, #tpu.memory_space<vmem>>, vector<1x16xf32>
    %327 = vector.broadcast %326 : vector<1x16xf32> to vector<2x16xf32>
    %328 = arith.mulf %201, %327 : vector<2x16xf32>
    %c5_80 = arith.constant 5 : index
    %c0_81 = arith.constant 0 : index
    %329 = vector.load %arg6[%c5_80, %c0_81] : memref<12x16xf32, #tpu.memory_space<vmem>>, vector<1x16xf32>
    %330 = vector.broadcast %329 : vector<1x16xf32> to vector<2x16xf32>
    %331 = arith.mulf %204, %330 : vector<2x16xf32>
    %c6_82 = arith.constant 6 : index
    %c0_83 = arith.constant 0 : index
    %332 = vector.load %arg6[%c6_82, %c0_83] : memref<12x16xf32, #tpu.memory_space<vmem>>, vector<1x16xf32>
    %333 = vector.broadcast %332 : vector<1x16xf32> to vector<2x16xf32>
    %334 = arith.mulf %207, %333 : vector<2x16xf32>
    %c7_84 = arith.constant 7 : index
    %c0_85 = arith.constant 0 : index
    %335 = vector.load %arg6[%c7_84, %c0_85] : memref<12x16xf32, #tpu.memory_space<vmem>>, vector<1x16xf32>
    %336 = vector.broadcast %335 : vector<1x16xf32> to vector<2x16xf32>
    %337 = arith.mulf %210, %336 : vector<2x16xf32>
    %338 = arith.addf %328, %331 : vector<2x16xf32>
    %339 = arith.addf %334, %337 : vector<2x16xf32>
    %340 = arith.addf %338, %339 : vector<2x16xf32>
    %341 = arith.addf %315, %318 : vector<2x16xf32>
    %342 = arith.addf %321, %324 : vector<2x16xf32>
    %343 = arith.addf %341, %342 : vector<2x16xf32>
    %344 = vector.broadcast %325 : vector<1x16xf32> to vector<2x16xf32>
    %345 = arith.addf %343, %344 : vector<2x16xf32>
    %346 = arith.addf %340, %345 : vector<2x16xf32>
    %347 = math.tanh %346 : vector<2x16xf32>
    %348 = vector.broadcast %0 : vector<1x16xf32> to vector<2x16xf32>
    %349 = arith.mulf %347, %348 : vector<2x16xf32>
    %350 = vector.broadcast %1 : vector<1x16xf32> to vector<2x16xf32>
    %351 = arith.addf %349, %350 : vector<2x16xf32>
    %352 = vector.extract_strided_slice %351 {offsets = [0, 0], sizes = [2, 4], strides = [1, 1]} : vector<2x16xf32> to vector<2x4xf32>
    %353 = vector.extract_strided_slice %351 {offsets = [0, 4], sizes = [2, 4], strides = [1, 1]} : vector<2x16xf32> to vector<2x4xf32>
    %354 = vector.extract_strided_slice %351 {offsets = [0, 8], sizes = [2, 4], strides = [1, 1]} : vector<2x16xf32> to vector<2x4xf32>
    %355 = vector.extract_strided_slice %351 {offsets = [0, 12], sizes = [2, 4], strides = [1, 1]} : vector<2x16xf32> to vector<2x4xf32>
    %356 = arith.mulf %353, %196 : vector<2x4xf32>
    %357 = arith.mulf %352, %354 : vector<2x4xf32>
    %358 = arith.addf %356, %357 : vector<2x4xf32>
    %359 = math.tanh %358 : vector<2x4xf32>
    %360 = arith.mulf %355, %359 : vector<2x4xf32>
    %361 = vector.extract_strided_slice %360 {offsets = [0, 0], sizes = [2, 1], strides = [1, 1]} : vector<2x4xf32> to vector<2x1xf32>
    %362 = vector.shape_cast %361 : vector<2x1xf32> to vector<2x1xf32>
    %363 = vector.broadcast %362 : vector<2x1xf32> to vector<2x16xf32>
    %364 = vector.extract_strided_slice %360 {offsets = [0, 1], sizes = [2, 1], strides = [1, 1]} : vector<2x4xf32> to vector<2x1xf32>
    %365 = vector.shape_cast %364 : vector<2x1xf32> to vector<2x1xf32>
    %366 = vector.broadcast %365 : vector<2x1xf32> to vector<2x16xf32>
    %367 = vector.extract_strided_slice %360 {offsets = [0, 2], sizes = [2, 1], strides = [1, 1]} : vector<2x4xf32> to vector<2x1xf32>
    %368 = vector.shape_cast %367 : vector<2x1xf32> to vector<2x1xf32>
    %369 = vector.broadcast %368 : vector<2x1xf32> to vector<2x16xf32>
    %370 = vector.extract_strided_slice %360 {offsets = [0, 3], sizes = [2, 1], strides = [1, 1]} : vector<2x4xf32> to vector<2x1xf32>
    %371 = vector.shape_cast %370 : vector<2x1xf32> to vector<2x1xf32>
    %372 = vector.broadcast %371 : vector<2x1xf32> to vector<2x16xf32>
    %c4_86 = arith.constant 4 : index
    %c0_87 = arith.constant 0 : index
    %373 = vector.load %arg5[%c4_86, %c0_87] : memref<8x16xf32, #tpu.memory_space<vmem>>, vector<1x16xf32>
    %374 = vector.broadcast %373 : vector<1x16xf32> to vector<2x16xf32>
    %375 = arith.mulf %363, %374 : vector<2x16xf32>
    %c5_88 = arith.constant 5 : index
    %c0_89 = arith.constant 0 : index
    %376 = vector.load %arg5[%c5_88, %c0_89] : memref<8x16xf32, #tpu.memory_space<vmem>>, vector<1x16xf32>
    %377 = vector.broadcast %376 : vector<1x16xf32> to vector<2x16xf32>
    %378 = arith.mulf %366, %377 : vector<2x16xf32>
    %c6_90 = arith.constant 6 : index
    %c0_91 = arith.constant 0 : index
    %379 = vector.load %arg5[%c6_90, %c0_91] : memref<8x16xf32, #tpu.memory_space<vmem>>, vector<1x16xf32>
    %380 = vector.broadcast %379 : vector<1x16xf32> to vector<2x16xf32>
    %381 = arith.mulf %369, %380 : vector<2x16xf32>
    %c7_92 = arith.constant 7 : index
    %c0_93 = arith.constant 0 : index
    %382 = vector.load %arg5[%c7_92, %c0_93] : memref<8x16xf32, #tpu.memory_space<vmem>>, vector<1x16xf32>
    %383 = vector.broadcast %382 : vector<1x16xf32> to vector<2x16xf32>
    %384 = arith.mulf %372, %383 : vector<2x16xf32>
    %c1_94 = arith.constant 1 : index
    %c0_95 = arith.constant 0 : index
    %385 = vector.load %arg7[%c1_94, %c0_95] : memref<2x16xf32, #tpu.memory_space<vmem>>, vector<1x16xf32>
    %c8_96 = arith.constant 8 : index
    %c0_97 = arith.constant 0 : index
    %386 = vector.load %arg6[%c8_96, %c0_97] : memref<12x16xf32, #tpu.memory_space<vmem>>, vector<1x16xf32>
    %387 = vector.broadcast %386 : vector<1x16xf32> to vector<2x16xf32>
    %388 = arith.mulf %261, %387 : vector<2x16xf32>
    %c9_98 = arith.constant 9 : index
    %c0_99 = arith.constant 0 : index
    %389 = vector.load %arg6[%c9_98, %c0_99] : memref<12x16xf32, #tpu.memory_space<vmem>>, vector<1x16xf32>
    %390 = vector.broadcast %389 : vector<1x16xf32> to vector<2x16xf32>
    %391 = arith.mulf %264, %390 : vector<2x16xf32>
    %c10_100 = arith.constant 10 : index
    %c0_101 = arith.constant 0 : index
    %392 = vector.load %arg6[%c10_100, %c0_101] : memref<12x16xf32, #tpu.memory_space<vmem>>, vector<1x16xf32>
    %393 = vector.broadcast %392 : vector<1x16xf32> to vector<2x16xf32>
    %394 = arith.mulf %267, %393 : vector<2x16xf32>
    %c11_102 = arith.constant 11 : index
    %c0_103 = arith.constant 0 : index
    %395 = vector.load %arg6[%c11_102, %c0_103] : memref<12x16xf32, #tpu.memory_space<vmem>>, vector<1x16xf32>
    %396 = vector.broadcast %395 : vector<1x16xf32> to vector<2x16xf32>
    %397 = arith.mulf %270, %396 : vector<2x16xf32>
    %398 = arith.addf %388, %391 : vector<2x16xf32>
    %399 = arith.addf %394, %397 : vector<2x16xf32>
    %400 = arith.addf %398, %399 : vector<2x16xf32>
    %401 = arith.addf %375, %378 : vector<2x16xf32>
    %402 = arith.addf %381, %384 : vector<2x16xf32>
    %403 = arith.addf %401, %402 : vector<2x16xf32>
    %404 = vector.broadcast %385 : vector<1x16xf32> to vector<2x16xf32>
    %405 = arith.addf %403, %404 : vector<2x16xf32>
    %406 = arith.addf %400, %405 : vector<2x16xf32>
    %407 = math.tanh %406 : vector<2x16xf32>
    %408 = vector.broadcast %0 : vector<1x16xf32> to vector<2x16xf32>
    %409 = arith.mulf %407, %408 : vector<2x16xf32>
    %410 = vector.broadcast %1 : vector<1x16xf32> to vector<2x16xf32>
    %411 = arith.addf %409, %410 : vector<2x16xf32>
    %412 = vector.extract_strided_slice %411 {offsets = [0, 0], sizes = [2, 4], strides = [1, 1]} : vector<2x16xf32> to vector<2x4xf32>
    %413 = vector.extract_strided_slice %411 {offsets = [0, 4], sizes = [2, 4], strides = [1, 1]} : vector<2x16xf32> to vector<2x4xf32>
    %414 = vector.extract_strided_slice %411 {offsets = [0, 8], sizes = [2, 4], strides = [1, 1]} : vector<2x16xf32> to vector<2x4xf32>
    %415 = vector.extract_strided_slice %411 {offsets = [0, 12], sizes = [2, 4], strides = [1, 1]} : vector<2x16xf32> to vector<2x4xf32>
    %416 = arith.mulf %413, %256 : vector<2x4xf32>
    %417 = arith.mulf %412, %414 : vector<2x4xf32>
    %418 = arith.addf %416, %417 : vector<2x4xf32>
    %419 = math.tanh %418 : vector<2x4xf32>
    %420 = arith.mulf %415, %419 : vector<2x4xf32>
    %421 = vector.extract_strided_slice %420 {offsets = [0, 0], sizes = [2, 1], strides = [1, 1]} : vector<2x4xf32> to vector<2x1xf32>
    %422 = vector.shape_cast %421 : vector<2x1xf32> to vector<2x1xf32>
    %423 = vector.broadcast %422 : vector<2x1xf32> to vector<2x16xf32>
    %424 = vector.extract_strided_slice %420 {offsets = [0, 1], sizes = [2, 1], strides = [1, 1]} : vector<2x4xf32> to vector<2x1xf32>
    %425 = vector.shape_cast %424 : vector<2x1xf32> to vector<2x1xf32>
    %426 = vector.broadcast %425 : vector<2x1xf32> to vector<2x16xf32>
    %427 = vector.extract_strided_slice %420 {offsets = [0, 2], sizes = [2, 1], strides = [1, 1]} : vector<2x4xf32> to vector<2x1xf32>
    %428 = vector.shape_cast %427 : vector<2x1xf32> to vector<2x1xf32>
    %429 = vector.broadcast %428 : vector<2x1xf32> to vector<2x16xf32>
    %430 = vector.extract_strided_slice %420 {offsets = [0, 3], sizes = [2, 1], strides = [1, 1]} : vector<2x4xf32> to vector<2x1xf32>
    %431 = vector.shape_cast %430 : vector<2x1xf32> to vector<2x1xf32>
    %432 = vector.broadcast %431 : vector<2x1xf32> to vector<2x16xf32>
    %c0_104 = arith.constant 0 : index
    %c0_105 = arith.constant 0 : index
    %433 = vector.load %arg6[%c0_104, %c0_105] : memref<12x16xf32, #tpu.memory_space<vmem>>, vector<1x16xf32>
    %434 = vector.broadcast %433 : vector<1x16xf32> to vector<2x16xf32>
    %435 = arith.mulf %303, %434 : vector<2x16xf32>
    %c1_106 = arith.constant 1 : index
    %c0_107 = arith.constant 0 : index
    %436 = vector.load %arg6[%c1_106, %c0_107] : memref<12x16xf32, #tpu.memory_space<vmem>>, vector<1x16xf32>
    %437 = vector.broadcast %436 : vector<1x16xf32> to vector<2x16xf32>
    %438 = arith.mulf %306, %437 : vector<2x16xf32>
    %c2_108 = arith.constant 2 : index
    %c0_109 = arith.constant 0 : index
    %439 = vector.load %arg6[%c2_108, %c0_109] : memref<12x16xf32, #tpu.memory_space<vmem>>, vector<1x16xf32>
    %440 = vector.broadcast %439 : vector<1x16xf32> to vector<2x16xf32>
    %441 = arith.mulf %309, %440 : vector<2x16xf32>
    %c3_110 = arith.constant 3 : index
    %c0_111 = arith.constant 0 : index
    %442 = vector.load %arg6[%c3_110, %c0_111] : memref<12x16xf32, #tpu.memory_space<vmem>>, vector<1x16xf32>
    %443 = vector.broadcast %442 : vector<1x16xf32> to vector<2x16xf32>
    %444 = arith.mulf %312, %443 : vector<2x16xf32>
    %445 = arith.addf %435, %438 : vector<2x16xf32>
    %446 = arith.addf %441, %444 : vector<2x16xf32>
    %447 = arith.addf %445, %446 : vector<2x16xf32>
    %448 = arith.addf %447, %25 : vector<2x16xf32>
    %449 = math.tanh %448 : vector<2x16xf32>
    %450 = vector.broadcast %0 : vector<1x16xf32> to vector<2x16xf32>
    %451 = arith.mulf %449, %450 : vector<2x16xf32>
    %452 = vector.broadcast %1 : vector<1x16xf32> to vector<2x16xf32>
    %453 = arith.addf %451, %452 : vector<2x16xf32>
    %454 = vector.extract_strided_slice %453 {offsets = [0, 0], sizes = [2, 4], strides = [1, 1]} : vector<2x16xf32> to vector<2x4xf32>
    %455 = vector.extract_strided_slice %453 {offsets = [0, 4], sizes = [2, 4], strides = [1, 1]} : vector<2x16xf32> to vector<2x4xf32>
    %456 = vector.extract_strided_slice %453 {offsets = [0, 8], sizes = [2, 4], strides = [1, 1]} : vector<2x16xf32> to vector<2x4xf32>
    %457 = vector.extract_strided_slice %453 {offsets = [0, 12], sizes = [2, 4], strides = [1, 1]} : vector<2x16xf32> to vector<2x4xf32>
    %458 = arith.mulf %455, %298 : vector<2x4xf32>
    %459 = arith.mulf %454, %456 : vector<2x4xf32>
    %460 = arith.addf %458, %459 : vector<2x4xf32>
    %461 = math.tanh %460 : vector<2x4xf32>
    %462 = arith.mulf %457, %461 : vector<2x4xf32>
    %463 = vector.extract_strided_slice %462 {offsets = [0, 0], sizes = [2, 1], strides = [1, 1]} : vector<2x4xf32> to vector<2x1xf32>
    %464 = vector.shape_cast %463 : vector<2x1xf32> to vector<2x1xf32>
    %465 = vector.broadcast %464 : vector<2x1xf32> to vector<2x16xf32>
    %466 = vector.extract_strided_slice %462 {offsets = [0, 1], sizes = [2, 1], strides = [1, 1]} : vector<2x4xf32> to vector<2x1xf32>
    %467 = vector.shape_cast %466 : vector<2x1xf32> to vector<2x1xf32>
    %468 = vector.broadcast %467 : vector<2x1xf32> to vector<2x16xf32>
    %469 = vector.extract_strided_slice %462 {offsets = [0, 2], sizes = [2, 1], strides = [1, 1]} : vector<2x4xf32> to vector<2x1xf32>
    %470 = vector.shape_cast %469 : vector<2x1xf32> to vector<2x1xf32>
    %471 = vector.broadcast %470 : vector<2x1xf32> to vector<2x16xf32>
    %472 = vector.extract_strided_slice %462 {offsets = [0, 3], sizes = [2, 1], strides = [1, 1]} : vector<2x4xf32> to vector<2x1xf32>
    %473 = vector.shape_cast %472 : vector<2x1xf32> to vector<2x1xf32>
    %474 = vector.broadcast %473 : vector<2x1xf32> to vector<2x16xf32>
    %c0_112 = arith.constant 0 : index
    %c0_113 = arith.constant 0 : index
    %475 = vector.load %arg5[%c0_112, %c0_113] : memref<8x16xf32, #tpu.memory_space<vmem>>, vector<1x16xf32>
    %476 = vector.broadcast %475 : vector<1x16xf32> to vector<2x16xf32>
    %477 = arith.mulf %465, %476 : vector<2x16xf32>
    %c1_114 = arith.constant 1 : index
    %c0_115 = arith.constant 0 : index
    %478 = vector.load %arg5[%c1_114, %c0_115] : memref<8x16xf32, #tpu.memory_space<vmem>>, vector<1x16xf32>
    %479 = vector.broadcast %478 : vector<1x16xf32> to vector<2x16xf32>
    %480 = arith.mulf %468, %479 : vector<2x16xf32>
    %c2_116 = arith.constant 2 : index
    %c0_117 = arith.constant 0 : index
    %481 = vector.load %arg5[%c2_116, %c0_117] : memref<8x16xf32, #tpu.memory_space<vmem>>, vector<1x16xf32>
    %482 = vector.broadcast %481 : vector<1x16xf32> to vector<2x16xf32>
    %483 = arith.mulf %471, %482 : vector<2x16xf32>
    %c3_118 = arith.constant 3 : index
    %c0_119 = arith.constant 0 : index
    %484 = vector.load %arg5[%c3_118, %c0_119] : memref<8x16xf32, #tpu.memory_space<vmem>>, vector<1x16xf32>
    %485 = vector.broadcast %484 : vector<1x16xf32> to vector<2x16xf32>
    %486 = arith.mulf %474, %485 : vector<2x16xf32>
    %c0_120 = arith.constant 0 : index
    %c0_121 = arith.constant 0 : index
    %487 = vector.load %arg7[%c0_120, %c0_121] : memref<2x16xf32, #tpu.memory_space<vmem>>, vector<1x16xf32>
    %c4_122 = arith.constant 4 : index
    %c0_123 = arith.constant 0 : index
    %488 = vector.load %arg6[%c4_122, %c0_123] : memref<12x16xf32, #tpu.memory_space<vmem>>, vector<1x16xf32>
    %489 = vector.broadcast %488 : vector<1x16xf32> to vector<2x16xf32>
    %490 = arith.mulf %363, %489 : vector<2x16xf32>
    %c5_124 = arith.constant 5 : index
    %c0_125 = arith.constant 0 : index
    %491 = vector.load %arg6[%c5_124, %c0_125] : memref<12x16xf32, #tpu.memory_space<vmem>>, vector<1x16xf32>
    %492 = vector.broadcast %491 : vector<1x16xf32> to vector<2x16xf32>
    %493 = arith.mulf %366, %492 : vector<2x16xf32>
    %c6_126 = arith.constant 6 : index
    %c0_127 = arith.constant 0 : index
    %494 = vector.load %arg6[%c6_126, %c0_127] : memref<12x16xf32, #tpu.memory_space<vmem>>, vector<1x16xf32>
    %495 = vector.broadcast %494 : vector<1x16xf32> to vector<2x16xf32>
    %496 = arith.mulf %369, %495 : vector<2x16xf32>
    %c7_128 = arith.constant 7 : index
    %c0_129 = arith.constant 0 : index
    %497 = vector.load %arg6[%c7_128, %c0_129] : memref<12x16xf32, #tpu.memory_space<vmem>>, vector<1x16xf32>
    %498 = vector.broadcast %497 : vector<1x16xf32> to vector<2x16xf32>
    %499 = arith.mulf %372, %498 : vector<2x16xf32>
    %500 = arith.addf %490, %493 : vector<2x16xf32>
    %501 = arith.addf %496, %499 : vector<2x16xf32>
    %502 = arith.addf %500, %501 : vector<2x16xf32>
    %503 = arith.addf %477, %480 : vector<2x16xf32>
    %504 = arith.addf %483, %486 : vector<2x16xf32>
    %505 = arith.addf %503, %504 : vector<2x16xf32>
    %506 = vector.broadcast %487 : vector<1x16xf32> to vector<2x16xf32>
    %507 = arith.addf %505, %506 : vector<2x16xf32>
    %508 = arith.addf %502, %507 : vector<2x16xf32>
    %509 = math.tanh %508 : vector<2x16xf32>
    %510 = vector.broadcast %0 : vector<1x16xf32> to vector<2x16xf32>
    %511 = arith.mulf %509, %510 : vector<2x16xf32>
    %512 = vector.broadcast %1 : vector<1x16xf32> to vector<2x16xf32>
    %513 = arith.addf %511, %512 : vector<2x16xf32>
    %514 = vector.extract_strided_slice %513 {offsets = [0, 0], sizes = [2, 4], strides = [1, 1]} : vector<2x16xf32> to vector<2x4xf32>
    %515 = vector.extract_strided_slice %513 {offsets = [0, 4], sizes = [2, 4], strides = [1, 1]} : vector<2x16xf32> to vector<2x4xf32>
    %516 = vector.extract_strided_slice %513 {offsets = [0, 8], sizes = [2, 4], strides = [1, 1]} : vector<2x16xf32> to vector<2x4xf32>
    %517 = vector.extract_strided_slice %513 {offsets = [0, 12], sizes = [2, 4], strides = [1, 1]} : vector<2x16xf32> to vector<2x4xf32>
    %518 = arith.mulf %515, %358 : vector<2x4xf32>
    %519 = arith.mulf %514, %516 : vector<2x4xf32>
    %520 = arith.addf %518, %519 : vector<2x4xf32>
    %521 = math.tanh %520 : vector<2x4xf32>
    %522 = arith.mulf %517, %521 : vector<2x4xf32>
    %523 = vector.extract_strided_slice %522 {offsets = [0, 0], sizes = [2, 1], strides = [1, 1]} : vector<2x4xf32> to vector<2x1xf32>
    %524 = vector.shape_cast %523 : vector<2x1xf32> to vector<2x1xf32>
    %525 = vector.broadcast %524 : vector<2x1xf32> to vector<2x16xf32>
    %526 = vector.extract_strided_slice %522 {offsets = [0, 1], sizes = [2, 1], strides = [1, 1]} : vector<2x4xf32> to vector<2x1xf32>
    %527 = vector.shape_cast %526 : vector<2x1xf32> to vector<2x1xf32>
    %528 = vector.broadcast %527 : vector<2x1xf32> to vector<2x16xf32>
    %529 = vector.extract_strided_slice %522 {offsets = [0, 2], sizes = [2, 1], strides = [1, 1]} : vector<2x4xf32> to vector<2x1xf32>
    %530 = vector.shape_cast %529 : vector<2x1xf32> to vector<2x1xf32>
    %531 = vector.broadcast %530 : vector<2x1xf32> to vector<2x16xf32>
    %532 = vector.extract_strided_slice %522 {offsets = [0, 3], sizes = [2, 1], strides = [1, 1]} : vector<2x4xf32> to vector<2x1xf32>
    %533 = vector.shape_cast %532 : vector<2x1xf32> to vector<2x1xf32>
    %534 = vector.broadcast %533 : vector<2x1xf32> to vector<2x16xf32>
    %c4_130 = arith.constant 4 : index
    %c0_131 = arith.constant 0 : index
    %535 = vector.load %arg5[%c4_130, %c0_131] : memref<8x16xf32, #tpu.memory_space<vmem>>, vector<1x16xf32>
    %536 = vector.broadcast %535 : vector<1x16xf32> to vector<2x16xf32>
    %537 = arith.mulf %525, %536 : vector<2x16xf32>
    %c5_132 = arith.constant 5 : index
    %c0_133 = arith.constant 0 : index
    %538 = vector.load %arg5[%c5_132, %c0_133] : memref<8x16xf32, #tpu.memory_space<vmem>>, vector<1x16xf32>
    %539 = vector.broadcast %538 : vector<1x16xf32> to vector<2x16xf32>
    %540 = arith.mulf %528, %539 : vector<2x16xf32>
    %c6_134 = arith.constant 6 : index
    %c0_135 = arith.constant 0 : index
    %541 = vector.load %arg5[%c6_134, %c0_135] : memref<8x16xf32, #tpu.memory_space<vmem>>, vector<1x16xf32>
    %542 = vector.broadcast %541 : vector<1x16xf32> to vector<2x16xf32>
    %543 = arith.mulf %531, %542 : vector<2x16xf32>
    %c7_136 = arith.constant 7 : index
    %c0_137 = arith.constant 0 : index
    %544 = vector.load %arg5[%c7_136, %c0_137] : memref<8x16xf32, #tpu.memory_space<vmem>>, vector<1x16xf32>
    %545 = vector.broadcast %544 : vector<1x16xf32> to vector<2x16xf32>
    %546 = arith.mulf %534, %545 : vector<2x16xf32>
    %c1_138 = arith.constant 1 : index
    %c0_139 = arith.constant 0 : index
    %547 = vector.load %arg7[%c1_138, %c0_139] : memref<2x16xf32, #tpu.memory_space<vmem>>, vector<1x16xf32>
    %c8_140 = arith.constant 8 : index
    %c0_141 = arith.constant 0 : index
    %548 = vector.load %arg6[%c8_140, %c0_141] : memref<12x16xf32, #tpu.memory_space<vmem>>, vector<1x16xf32>
    %549 = vector.broadcast %548 : vector<1x16xf32> to vector<2x16xf32>
    %550 = arith.mulf %423, %549 : vector<2x16xf32>
    %c9_142 = arith.constant 9 : index
    %c0_143 = arith.constant 0 : index
    %551 = vector.load %arg6[%c9_142, %c0_143] : memref<12x16xf32, #tpu.memory_space<vmem>>, vector<1x16xf32>
    %552 = vector.broadcast %551 : vector<1x16xf32> to vector<2x16xf32>
    %553 = arith.mulf %426, %552 : vector<2x16xf32>
    %c10_144 = arith.constant 10 : index
    %c0_145 = arith.constant 0 : index
    %554 = vector.load %arg6[%c10_144, %c0_145] : memref<12x16xf32, #tpu.memory_space<vmem>>, vector<1x16xf32>
    %555 = vector.broadcast %554 : vector<1x16xf32> to vector<2x16xf32>
    %556 = arith.mulf %429, %555 : vector<2x16xf32>
    %c11_146 = arith.constant 11 : index
    %c0_147 = arith.constant 0 : index
    %557 = vector.load %arg6[%c11_146, %c0_147] : memref<12x16xf32, #tpu.memory_space<vmem>>, vector<1x16xf32>
    %558 = vector.broadcast %557 : vector<1x16xf32> to vector<2x16xf32>
    %559 = arith.mulf %432, %558 : vector<2x16xf32>
    %560 = arith.addf %550, %553 : vector<2x16xf32>
    %561 = arith.addf %556, %559 : vector<2x16xf32>
    %562 = arith.addf %560, %561 : vector<2x16xf32>
    %563 = arith.addf %537, %540 : vector<2x16xf32>
    %564 = arith.addf %543, %546 : vector<2x16xf32>
    %565 = arith.addf %563, %564 : vector<2x16xf32>
    %566 = vector.broadcast %547 : vector<1x16xf32> to vector<2x16xf32>
    %567 = arith.addf %565, %566 : vector<2x16xf32>
    %568 = arith.addf %562, %567 : vector<2x16xf32>
    %569 = math.tanh %568 : vector<2x16xf32>
    %570 = vector.broadcast %0 : vector<1x16xf32> to vector<2x16xf32>
    %571 = arith.mulf %569, %570 : vector<2x16xf32>
    %572 = vector.broadcast %1 : vector<1x16xf32> to vector<2x16xf32>
    %573 = arith.addf %571, %572 : vector<2x16xf32>
    %574 = vector.extract_strided_slice %573 {offsets = [0, 0], sizes = [2, 4], strides = [1, 1]} : vector<2x16xf32> to vector<2x4xf32>
    %575 = vector.extract_strided_slice %573 {offsets = [0, 4], sizes = [2, 4], strides = [1, 1]} : vector<2x16xf32> to vector<2x4xf32>
    %576 = vector.extract_strided_slice %573 {offsets = [0, 8], sizes = [2, 4], strides = [1, 1]} : vector<2x16xf32> to vector<2x4xf32>
    %577 = vector.extract_strided_slice %573 {offsets = [0, 12], sizes = [2, 4], strides = [1, 1]} : vector<2x16xf32> to vector<2x4xf32>
    %578 = arith.mulf %575, %418 : vector<2x4xf32>
    %579 = arith.mulf %574, %576 : vector<2x4xf32>
    %580 = arith.addf %578, %579 : vector<2x4xf32>
    %581 = math.tanh %580 : vector<2x4xf32>
    %582 = arith.mulf %577, %581 : vector<2x4xf32>
    %583 = vector.extract_strided_slice %582 {offsets = [0, 0], sizes = [2, 1], strides = [1, 1]} : vector<2x4xf32> to vector<2x1xf32>
    %584 = vector.shape_cast %583 : vector<2x1xf32> to vector<2x1xf32>
    %585 = vector.broadcast %584 : vector<2x1xf32> to vector<2x16xf32>
    %586 = vector.extract_strided_slice %582 {offsets = [0, 1], sizes = [2, 1], strides = [1, 1]} : vector<2x4xf32> to vector<2x1xf32>
    %587 = vector.shape_cast %586 : vector<2x1xf32> to vector<2x1xf32>
    %588 = vector.broadcast %587 : vector<2x1xf32> to vector<2x16xf32>
    %589 = vector.extract_strided_slice %582 {offsets = [0, 2], sizes = [2, 1], strides = [1, 1]} : vector<2x4xf32> to vector<2x1xf32>
    %590 = vector.shape_cast %589 : vector<2x1xf32> to vector<2x1xf32>
    %591 = vector.broadcast %590 : vector<2x1xf32> to vector<2x16xf32>
    %592 = vector.extract_strided_slice %582 {offsets = [0, 3], sizes = [2, 1], strides = [1, 1]} : vector<2x4xf32> to vector<2x1xf32>
    %593 = vector.shape_cast %592 : vector<2x1xf32> to vector<2x1xf32>
    %594 = vector.broadcast %593 : vector<2x1xf32> to vector<2x16xf32>
    %c0_148 = arith.constant 0 : index
    %c0_149 = arith.constant 0 : index
    %595 = vector.load %arg6[%c0_148, %c0_149] : memref<12x16xf32, #tpu.memory_space<vmem>>, vector<1x16xf32>
    %596 = vector.broadcast %595 : vector<1x16xf32> to vector<2x16xf32>
    %597 = arith.mulf %465, %596 : vector<2x16xf32>
    %c1_150 = arith.constant 1 : index
    %c0_151 = arith.constant 0 : index
    %598 = vector.load %arg6[%c1_150, %c0_151] : memref<12x16xf32, #tpu.memory_space<vmem>>, vector<1x16xf32>
    %599 = vector.broadcast %598 : vector<1x16xf32> to vector<2x16xf32>
    %600 = arith.mulf %468, %599 : vector<2x16xf32>
    %c2_152 = arith.constant 2 : index
    %c0_153 = arith.constant 0 : index
    %601 = vector.load %arg6[%c2_152, %c0_153] : memref<12x16xf32, #tpu.memory_space<vmem>>, vector<1x16xf32>
    %602 = vector.broadcast %601 : vector<1x16xf32> to vector<2x16xf32>
    %603 = arith.mulf %471, %602 : vector<2x16xf32>
    %c3_154 = arith.constant 3 : index
    %c0_155 = arith.constant 0 : index
    %604 = vector.load %arg6[%c3_154, %c0_155] : memref<12x16xf32, #tpu.memory_space<vmem>>, vector<1x16xf32>
    %605 = vector.broadcast %604 : vector<1x16xf32> to vector<2x16xf32>
    %606 = arith.mulf %474, %605 : vector<2x16xf32>
    %607 = arith.addf %597, %600 : vector<2x16xf32>
    %608 = arith.addf %603, %606 : vector<2x16xf32>
    %609 = arith.addf %607, %608 : vector<2x16xf32>
    %610 = arith.addf %609, %32 : vector<2x16xf32>
    %611 = math.tanh %610 : vector<2x16xf32>
    %612 = vector.broadcast %0 : vector<1x16xf32> to vector<2x16xf32>
    %613 = arith.mulf %611, %612 : vector<2x16xf32>
    %614 = vector.broadcast %1 : vector<1x16xf32> to vector<2x16xf32>
    %615 = arith.addf %613, %614 : vector<2x16xf32>
    %616 = vector.extract_strided_slice %615 {offsets = [0, 0], sizes = [2, 4], strides = [1, 1]} : vector<2x16xf32> to vector<2x4xf32>
    %617 = vector.extract_strided_slice %615 {offsets = [0, 4], sizes = [2, 4], strides = [1, 1]} : vector<2x16xf32> to vector<2x4xf32>
    %618 = vector.extract_strided_slice %615 {offsets = [0, 8], sizes = [2, 4], strides = [1, 1]} : vector<2x16xf32> to vector<2x4xf32>
    %619 = vector.extract_strided_slice %615 {offsets = [0, 12], sizes = [2, 4], strides = [1, 1]} : vector<2x16xf32> to vector<2x4xf32>
    %620 = arith.mulf %617, %460 : vector<2x4xf32>
    %621 = arith.mulf %616, %618 : vector<2x4xf32>
    %622 = arith.addf %620, %621 : vector<2x4xf32>
    %623 = math.tanh %622 : vector<2x4xf32>
    %624 = arith.mulf %619, %623 : vector<2x4xf32>
    %625 = vector.extract_strided_slice %624 {offsets = [0, 0], sizes = [2, 1], strides = [1, 1]} : vector<2x4xf32> to vector<2x1xf32>
    %626 = vector.shape_cast %625 : vector<2x1xf32> to vector<2x1xf32>
    %627 = vector.broadcast %626 : vector<2x1xf32> to vector<2x16xf32>
    %628 = vector.extract_strided_slice %624 {offsets = [0, 1], sizes = [2, 1], strides = [1, 1]} : vector<2x4xf32> to vector<2x1xf32>
    %629 = vector.shape_cast %628 : vector<2x1xf32> to vector<2x1xf32>
    %630 = vector.broadcast %629 : vector<2x1xf32> to vector<2x16xf32>
    %631 = vector.extract_strided_slice %624 {offsets = [0, 2], sizes = [2, 1], strides = [1, 1]} : vector<2x4xf32> to vector<2x1xf32>
    %632 = vector.shape_cast %631 : vector<2x1xf32> to vector<2x1xf32>
    %633 = vector.broadcast %632 : vector<2x1xf32> to vector<2x16xf32>
    %634 = vector.extract_strided_slice %624 {offsets = [0, 3], sizes = [2, 1], strides = [1, 1]} : vector<2x4xf32> to vector<2x1xf32>
    %635 = vector.shape_cast %634 : vector<2x1xf32> to vector<2x1xf32>
    %636 = vector.broadcast %635 : vector<2x1xf32> to vector<2x16xf32>
    %c0_156 = arith.constant 0 : index
    %c0_157 = arith.constant 0 : index
    %637 = vector.load %arg5[%c0_156, %c0_157] : memref<8x16xf32, #tpu.memory_space<vmem>>, vector<1x16xf32>
    %638 = vector.broadcast %637 : vector<1x16xf32> to vector<2x16xf32>
    %639 = arith.mulf %627, %638 : vector<2x16xf32>
    %c1_158 = arith.constant 1 : index
    %c0_159 = arith.constant 0 : index
    %640 = vector.load %arg5[%c1_158, %c0_159] : memref<8x16xf32, #tpu.memory_space<vmem>>, vector<1x16xf32>
    %641 = vector.broadcast %640 : vector<1x16xf32> to vector<2x16xf32>
    %642 = arith.mulf %630, %641 : vector<2x16xf32>
    %c2_160 = arith.constant 2 : index
    %c0_161 = arith.constant 0 : index
    %643 = vector.load %arg5[%c2_160, %c0_161] : memref<8x16xf32, #tpu.memory_space<vmem>>, vector<1x16xf32>
    %644 = vector.broadcast %643 : vector<1x16xf32> to vector<2x16xf32>
    %645 = arith.mulf %633, %644 : vector<2x16xf32>
    %c3_162 = arith.constant 3 : index
    %c0_163 = arith.constant 0 : index
    %646 = vector.load %arg5[%c3_162, %c0_163] : memref<8x16xf32, #tpu.memory_space<vmem>>, vector<1x16xf32>
    %647 = vector.broadcast %646 : vector<1x16xf32> to vector<2x16xf32>
    %648 = arith.mulf %636, %647 : vector<2x16xf32>
    %c0_164 = arith.constant 0 : index
    %c0_165 = arith.constant 0 : index
    %649 = vector.load %arg7[%c0_164, %c0_165] : memref<2x16xf32, #tpu.memory_space<vmem>>, vector<1x16xf32>
    %c4_166 = arith.constant 4 : index
    %c0_167 = arith.constant 0 : index
    %650 = vector.load %arg6[%c4_166, %c0_167] : memref<12x16xf32, #tpu.memory_space<vmem>>, vector<1x16xf32>
    %651 = vector.broadcast %650 : vector<1x16xf32> to vector<2x16xf32>
    %652 = arith.mulf %525, %651 : vector<2x16xf32>
    %c5_168 = arith.constant 5 : index
    %c0_169 = arith.constant 0 : index
    %653 = vector.load %arg6[%c5_168, %c0_169] : memref<12x16xf32, #tpu.memory_space<vmem>>, vector<1x16xf32>
    %654 = vector.broadcast %653 : vector<1x16xf32> to vector<2x16xf32>
    %655 = arith.mulf %528, %654 : vector<2x16xf32>
    %c6_170 = arith.constant 6 : index
    %c0_171 = arith.constant 0 : index
    %656 = vector.load %arg6[%c6_170, %c0_171] : memref<12x16xf32, #tpu.memory_space<vmem>>, vector<1x16xf32>
    %657 = vector.broadcast %656 : vector<1x16xf32> to vector<2x16xf32>
    %658 = arith.mulf %531, %657 : vector<2x16xf32>
    %c7_172 = arith.constant 7 : index
    %c0_173 = arith.constant 0 : index
    %659 = vector.load %arg6[%c7_172, %c0_173] : memref<12x16xf32, #tpu.memory_space<vmem>>, vector<1x16xf32>
    %660 = vector.broadcast %659 : vector<1x16xf32> to vector<2x16xf32>
    %661 = arith.mulf %534, %660 : vector<2x16xf32>
    %662 = arith.addf %652, %655 : vector<2x16xf32>
    %663 = arith.addf %658, %661 : vector<2x16xf32>
    %664 = arith.addf %662, %663 : vector<2x16xf32>
    %665 = arith.addf %639, %642 : vector<2x16xf32>
    %666 = arith.addf %645, %648 : vector<2x16xf32>
    %667 = arith.addf %665, %666 : vector<2x16xf32>
    %668 = vector.broadcast %649 : vector<1x16xf32> to vector<2x16xf32>
    %669 = arith.addf %667, %668 : vector<2x16xf32>
    %670 = arith.addf %664, %669 : vector<2x16xf32>
    %671 = math.tanh %670 : vector<2x16xf32>
    %672 = vector.broadcast %0 : vector<1x16xf32> to vector<2x16xf32>
    %673 = arith.mulf %671, %672 : vector<2x16xf32>
    %674 = vector.broadcast %1 : vector<1x16xf32> to vector<2x16xf32>
    %675 = arith.addf %673, %674 : vector<2x16xf32>
    %676 = vector.extract_strided_slice %675 {offsets = [0, 0], sizes = [2, 4], strides = [1, 1]} : vector<2x16xf32> to vector<2x4xf32>
    %677 = vector.extract_strided_slice %675 {offsets = [0, 4], sizes = [2, 4], strides = [1, 1]} : vector<2x16xf32> to vector<2x4xf32>
    %678 = vector.extract_strided_slice %675 {offsets = [0, 8], sizes = [2, 4], strides = [1, 1]} : vector<2x16xf32> to vector<2x4xf32>
    %679 = vector.extract_strided_slice %675 {offsets = [0, 12], sizes = [2, 4], strides = [1, 1]} : vector<2x16xf32> to vector<2x4xf32>
    %680 = arith.mulf %677, %520 : vector<2x4xf32>
    %681 = arith.mulf %676, %678 : vector<2x4xf32>
    %682 = arith.addf %680, %681 : vector<2x4xf32>
    %683 = math.tanh %682 : vector<2x4xf32>
    %684 = arith.mulf %679, %683 : vector<2x4xf32>
    %685 = vector.extract_strided_slice %684 {offsets = [0, 0], sizes = [2, 1], strides = [1, 1]} : vector<2x4xf32> to vector<2x1xf32>
    %686 = vector.shape_cast %685 : vector<2x1xf32> to vector<2x1xf32>
    %687 = vector.broadcast %686 : vector<2x1xf32> to vector<2x16xf32>
    %688 = vector.extract_strided_slice %684 {offsets = [0, 1], sizes = [2, 1], strides = [1, 1]} : vector<2x4xf32> to vector<2x1xf32>
    %689 = vector.shape_cast %688 : vector<2x1xf32> to vector<2x1xf32>
    %690 = vector.broadcast %689 : vector<2x1xf32> to vector<2x16xf32>
    %691 = vector.extract_strided_slice %684 {offsets = [0, 2], sizes = [2, 1], strides = [1, 1]} : vector<2x4xf32> to vector<2x1xf32>
    %692 = vector.shape_cast %691 : vector<2x1xf32> to vector<2x1xf32>
    %693 = vector.broadcast %692 : vector<2x1xf32> to vector<2x16xf32>
    %694 = vector.extract_strided_slice %684 {offsets = [0, 3], sizes = [2, 1], strides = [1, 1]} : vector<2x4xf32> to vector<2x1xf32>
    %695 = vector.shape_cast %694 : vector<2x1xf32> to vector<2x1xf32>
    %696 = vector.broadcast %695 : vector<2x1xf32> to vector<2x16xf32>
    %c4_174 = arith.constant 4 : index
    %c0_175 = arith.constant 0 : index
    %697 = vector.load %arg5[%c4_174, %c0_175] : memref<8x16xf32, #tpu.memory_space<vmem>>, vector<1x16xf32>
    %698 = vector.broadcast %697 : vector<1x16xf32> to vector<2x16xf32>
    %699 = arith.mulf %687, %698 : vector<2x16xf32>
    %c5_176 = arith.constant 5 : index
    %c0_177 = arith.constant 0 : index
    %700 = vector.load %arg5[%c5_176, %c0_177] : memref<8x16xf32, #tpu.memory_space<vmem>>, vector<1x16xf32>
    %701 = vector.broadcast %700 : vector<1x16xf32> to vector<2x16xf32>
    %702 = arith.mulf %690, %701 : vector<2x16xf32>
    %c6_178 = arith.constant 6 : index
    %c0_179 = arith.constant 0 : index
    %703 = vector.load %arg5[%c6_178, %c0_179] : memref<8x16xf32, #tpu.memory_space<vmem>>, vector<1x16xf32>
    %704 = vector.broadcast %703 : vector<1x16xf32> to vector<2x16xf32>
    %705 = arith.mulf %693, %704 : vector<2x16xf32>
    %c7_180 = arith.constant 7 : index
    %c0_181 = arith.constant 0 : index
    %706 = vector.load %arg5[%c7_180, %c0_181] : memref<8x16xf32, #tpu.memory_space<vmem>>, vector<1x16xf32>
    %707 = vector.broadcast %706 : vector<1x16xf32> to vector<2x16xf32>
    %708 = arith.mulf %696, %707 : vector<2x16xf32>
    %c1_182 = arith.constant 1 : index
    %c0_183 = arith.constant 0 : index
    %709 = vector.load %arg7[%c1_182, %c0_183] : memref<2x16xf32, #tpu.memory_space<vmem>>, vector<1x16xf32>
    %c8_184 = arith.constant 8 : index
    %c0_185 = arith.constant 0 : index
    %710 = vector.load %arg6[%c8_184, %c0_185] : memref<12x16xf32, #tpu.memory_space<vmem>>, vector<1x16xf32>
    %711 = vector.broadcast %710 : vector<1x16xf32> to vector<2x16xf32>
    %712 = arith.mulf %585, %711 : vector<2x16xf32>
    %c9_186 = arith.constant 9 : index
    %c0_187 = arith.constant 0 : index
    %713 = vector.load %arg6[%c9_186, %c0_187] : memref<12x16xf32, #tpu.memory_space<vmem>>, vector<1x16xf32>
    %714 = vector.broadcast %713 : vector<1x16xf32> to vector<2x16xf32>
    %715 = arith.mulf %588, %714 : vector<2x16xf32>
    %c10_188 = arith.constant 10 : index
    %c0_189 = arith.constant 0 : index
    %716 = vector.load %arg6[%c10_188, %c0_189] : memref<12x16xf32, #tpu.memory_space<vmem>>, vector<1x16xf32>
    %717 = vector.broadcast %716 : vector<1x16xf32> to vector<2x16xf32>
    %718 = arith.mulf %591, %717 : vector<2x16xf32>
    %c11_190 = arith.constant 11 : index
    %c0_191 = arith.constant 0 : index
    %719 = vector.load %arg6[%c11_190, %c0_191] : memref<12x16xf32, #tpu.memory_space<vmem>>, vector<1x16xf32>
    %720 = vector.broadcast %719 : vector<1x16xf32> to vector<2x16xf32>
    %721 = arith.mulf %594, %720 : vector<2x16xf32>
    %722 = arith.addf %712, %715 : vector<2x16xf32>
    %723 = arith.addf %718, %721 : vector<2x16xf32>
    %724 = arith.addf %722, %723 : vector<2x16xf32>
    %725 = arith.addf %699, %702 : vector<2x16xf32>
    %726 = arith.addf %705, %708 : vector<2x16xf32>
    %727 = arith.addf %725, %726 : vector<2x16xf32>
    %728 = vector.broadcast %709 : vector<1x16xf32> to vector<2x16xf32>
    %729 = arith.addf %727, %728 : vector<2x16xf32>
    %730 = arith.addf %724, %729 : vector<2x16xf32>
    %731 = math.tanh %730 : vector<2x16xf32>
    %732 = vector.broadcast %0 : vector<1x16xf32> to vector<2x16xf32>
    %733 = arith.mulf %731, %732 : vector<2x16xf32>
    %734 = vector.broadcast %1 : vector<1x16xf32> to vector<2x16xf32>
    %735 = arith.addf %733, %734 : vector<2x16xf32>
    %736 = vector.extract_strided_slice %735 {offsets = [0, 0], sizes = [2, 4], strides = [1, 1]} : vector<2x16xf32> to vector<2x4xf32>
    %737 = vector.extract_strided_slice %735 {offsets = [0, 4], sizes = [2, 4], strides = [1, 1]} : vector<2x16xf32> to vector<2x4xf32>
    %738 = vector.extract_strided_slice %735 {offsets = [0, 8], sizes = [2, 4], strides = [1, 1]} : vector<2x16xf32> to vector<2x4xf32>
    %739 = vector.extract_strided_slice %735 {offsets = [0, 12], sizes = [2, 4], strides = [1, 1]} : vector<2x16xf32> to vector<2x4xf32>
    %740 = arith.mulf %737, %580 : vector<2x4xf32>
    %741 = arith.mulf %736, %738 : vector<2x4xf32>
    %742 = arith.addf %740, %741 : vector<2x4xf32>
    %743 = math.tanh %742 : vector<2x4xf32>
    %744 = arith.mulf %739, %743 : vector<2x4xf32>
    %745 = vector.extract_strided_slice %744 {offsets = [0, 0], sizes = [2, 1], strides = [1, 1]} : vector<2x4xf32> to vector<2x1xf32>
    %746 = vector.shape_cast %745 : vector<2x1xf32> to vector<2x1xf32>
    %747 = vector.broadcast %746 : vector<2x1xf32> to vector<2x16xf32>
    %748 = vector.extract_strided_slice %744 {offsets = [0, 1], sizes = [2, 1], strides = [1, 1]} : vector<2x4xf32> to vector<2x1xf32>
    %749 = vector.shape_cast %748 : vector<2x1xf32> to vector<2x1xf32>
    %750 = vector.broadcast %749 : vector<2x1xf32> to vector<2x16xf32>
    %751 = vector.extract_strided_slice %744 {offsets = [0, 2], sizes = [2, 1], strides = [1, 1]} : vector<2x4xf32> to vector<2x1xf32>
    %752 = vector.shape_cast %751 : vector<2x1xf32> to vector<2x1xf32>
    %753 = vector.broadcast %752 : vector<2x1xf32> to vector<2x16xf32>
    %754 = vector.extract_strided_slice %744 {offsets = [0, 3], sizes = [2, 1], strides = [1, 1]} : vector<2x4xf32> to vector<2x1xf32>
    %755 = vector.shape_cast %754 : vector<2x1xf32> to vector<2x1xf32>
    %756 = vector.broadcast %755 : vector<2x1xf32> to vector<2x16xf32>
    %c0_192 = arith.constant 0 : index
    %c0_193 = arith.constant 0 : index
    %757 = vector.load %arg6[%c0_192, %c0_193] : memref<12x16xf32, #tpu.memory_space<vmem>>, vector<1x16xf32>
    %758 = vector.broadcast %757 : vector<1x16xf32> to vector<2x16xf32>
    %759 = arith.mulf %627, %758 : vector<2x16xf32>
    %c1_194 = arith.constant 1 : index
    %c0_195 = arith.constant 0 : index
    %760 = vector.load %arg6[%c1_194, %c0_195] : memref<12x16xf32, #tpu.memory_space<vmem>>, vector<1x16xf32>
    %761 = vector.broadcast %760 : vector<1x16xf32> to vector<2x16xf32>
    %762 = arith.mulf %630, %761 : vector<2x16xf32>
    %c2_196 = arith.constant 2 : index
    %c0_197 = arith.constant 0 : index
    %763 = vector.load %arg6[%c2_196, %c0_197] : memref<12x16xf32, #tpu.memory_space<vmem>>, vector<1x16xf32>
    %764 = vector.broadcast %763 : vector<1x16xf32> to vector<2x16xf32>
    %765 = arith.mulf %633, %764 : vector<2x16xf32>
    %c3_198 = arith.constant 3 : index
    %c0_199 = arith.constant 0 : index
    %766 = vector.load %arg6[%c3_198, %c0_199] : memref<12x16xf32, #tpu.memory_space<vmem>>, vector<1x16xf32>
    %767 = vector.broadcast %766 : vector<1x16xf32> to vector<2x16xf32>
    %768 = arith.mulf %636, %767 : vector<2x16xf32>
    %769 = arith.addf %759, %762 : vector<2x16xf32>
    %770 = arith.addf %765, %768 : vector<2x16xf32>
    %771 = arith.addf %769, %770 : vector<2x16xf32>
    %772 = arith.addf %771, %39 : vector<2x16xf32>
    %773 = math.tanh %772 : vector<2x16xf32>
    %774 = vector.broadcast %0 : vector<1x16xf32> to vector<2x16xf32>
    %775 = arith.mulf %773, %774 : vector<2x16xf32>
    %776 = vector.broadcast %1 : vector<1x16xf32> to vector<2x16xf32>
    %777 = arith.addf %775, %776 : vector<2x16xf32>
    %778 = vector.extract_strided_slice %777 {offsets = [0, 0], sizes = [2, 4], strides = [1, 1]} : vector<2x16xf32> to vector<2x4xf32>
    %779 = vector.extract_strided_slice %777 {offsets = [0, 4], sizes = [2, 4], strides = [1, 1]} : vector<2x16xf32> to vector<2x4xf32>
    %780 = vector.extract_strided_slice %777 {offsets = [0, 8], sizes = [2, 4], strides = [1, 1]} : vector<2x16xf32> to vector<2x4xf32>
    %781 = vector.extract_strided_slice %777 {offsets = [0, 12], sizes = [2, 4], strides = [1, 1]} : vector<2x16xf32> to vector<2x4xf32>
    %782 = arith.mulf %779, %622 : vector<2x4xf32>
    %783 = arith.mulf %778, %780 : vector<2x4xf32>
    %784 = arith.addf %782, %783 : vector<2x4xf32>
    %785 = math.tanh %784 : vector<2x4xf32>
    %786 = arith.mulf %781, %785 : vector<2x4xf32>
    %787 = vector.extract_strided_slice %786 {offsets = [0, 0], sizes = [2, 1], strides = [1, 1]} : vector<2x4xf32> to vector<2x1xf32>
    %788 = vector.shape_cast %787 : vector<2x1xf32> to vector<2x1xf32>
    %789 = vector.broadcast %788 : vector<2x1xf32> to vector<2x16xf32>
    %790 = vector.extract_strided_slice %786 {offsets = [0, 1], sizes = [2, 1], strides = [1, 1]} : vector<2x4xf32> to vector<2x1xf32>
    %791 = vector.shape_cast %790 : vector<2x1xf32> to vector<2x1xf32>
    %792 = vector.broadcast %791 : vector<2x1xf32> to vector<2x16xf32>
    %793 = vector.extract_strided_slice %786 {offsets = [0, 2], sizes = [2, 1], strides = [1, 1]} : vector<2x4xf32> to vector<2x1xf32>
    %794 = vector.shape_cast %793 : vector<2x1xf32> to vector<2x1xf32>
    %795 = vector.broadcast %794 : vector<2x1xf32> to vector<2x16xf32>
    %796 = vector.extract_strided_slice %786 {offsets = [0, 3], sizes = [2, 1], strides = [1, 1]} : vector<2x4xf32> to vector<2x1xf32>
    %797 = vector.shape_cast %796 : vector<2x1xf32> to vector<2x1xf32>
    %798 = vector.broadcast %797 : vector<2x1xf32> to vector<2x16xf32>
    %c0_200 = arith.constant 0 : index
    %c0_201 = arith.constant 0 : index
    %799 = vector.load %arg5[%c0_200, %c0_201] : memref<8x16xf32, #tpu.memory_space<vmem>>, vector<1x16xf32>
    %800 = vector.broadcast %799 : vector<1x16xf32> to vector<2x16xf32>
    %801 = arith.mulf %789, %800 : vector<2x16xf32>
    %c1_202 = arith.constant 1 : index
    %c0_203 = arith.constant 0 : index
    %802 = vector.load %arg5[%c1_202, %c0_203] : memref<8x16xf32, #tpu.memory_space<vmem>>, vector<1x16xf32>
    %803 = vector.broadcast %802 : vector<1x16xf32> to vector<2x16xf32>
    %804 = arith.mulf %792, %803 : vector<2x16xf32>
    %c2_204 = arith.constant 2 : index
    %c0_205 = arith.constant 0 : index
    %805 = vector.load %arg5[%c2_204, %c0_205] : memref<8x16xf32, #tpu.memory_space<vmem>>, vector<1x16xf32>
    %806 = vector.broadcast %805 : vector<1x16xf32> to vector<2x16xf32>
    %807 = arith.mulf %795, %806 : vector<2x16xf32>
    %c3_206 = arith.constant 3 : index
    %c0_207 = arith.constant 0 : index
    %808 = vector.load %arg5[%c3_206, %c0_207] : memref<8x16xf32, #tpu.memory_space<vmem>>, vector<1x16xf32>
    %809 = vector.broadcast %808 : vector<1x16xf32> to vector<2x16xf32>
    %810 = arith.mulf %798, %809 : vector<2x16xf32>
    %c0_208 = arith.constant 0 : index
    %c0_209 = arith.constant 0 : index
    %811 = vector.load %arg7[%c0_208, %c0_209] : memref<2x16xf32, #tpu.memory_space<vmem>>, vector<1x16xf32>
    %c4_210 = arith.constant 4 : index
    %c0_211 = arith.constant 0 : index
    %812 = vector.load %arg6[%c4_210, %c0_211] : memref<12x16xf32, #tpu.memory_space<vmem>>, vector<1x16xf32>
    %813 = vector.broadcast %812 : vector<1x16xf32> to vector<2x16xf32>
    %814 = arith.mulf %687, %813 : vector<2x16xf32>
    %c5_212 = arith.constant 5 : index
    %c0_213 = arith.constant 0 : index
    %815 = vector.load %arg6[%c5_212, %c0_213] : memref<12x16xf32, #tpu.memory_space<vmem>>, vector<1x16xf32>
    %816 = vector.broadcast %815 : vector<1x16xf32> to vector<2x16xf32>
    %817 = arith.mulf %690, %816 : vector<2x16xf32>
    %c6_214 = arith.constant 6 : index
    %c0_215 = arith.constant 0 : index
    %818 = vector.load %arg6[%c6_214, %c0_215] : memref<12x16xf32, #tpu.memory_space<vmem>>, vector<1x16xf32>
    %819 = vector.broadcast %818 : vector<1x16xf32> to vector<2x16xf32>
    %820 = arith.mulf %693, %819 : vector<2x16xf32>
    %c7_216 = arith.constant 7 : index
    %c0_217 = arith.constant 0 : index
    %821 = vector.load %arg6[%c7_216, %c0_217] : memref<12x16xf32, #tpu.memory_space<vmem>>, vector<1x16xf32>
    %822 = vector.broadcast %821 : vector<1x16xf32> to vector<2x16xf32>
    %823 = arith.mulf %696, %822 : vector<2x16xf32>
    %824 = arith.addf %814, %817 : vector<2x16xf32>
    %825 = arith.addf %820, %823 : vector<2x16xf32>
    %826 = arith.addf %824, %825 : vector<2x16xf32>
    %827 = arith.addf %801, %804 : vector<2x16xf32>
    %828 = arith.addf %807, %810 : vector<2x16xf32>
    %829 = arith.addf %827, %828 : vector<2x16xf32>
    %830 = vector.broadcast %811 : vector<1x16xf32> to vector<2x16xf32>
    %831 = arith.addf %829, %830 : vector<2x16xf32>
    %832 = arith.addf %826, %831 : vector<2x16xf32>
    %833 = math.tanh %832 : vector<2x16xf32>
    %834 = vector.broadcast %0 : vector<1x16xf32> to vector<2x16xf32>
    %835 = arith.mulf %833, %834 : vector<2x16xf32>
    %836 = vector.broadcast %1 : vector<1x16xf32> to vector<2x16xf32>
    %837 = arith.addf %835, %836 : vector<2x16xf32>
    %838 = vector.extract_strided_slice %837 {offsets = [0, 0], sizes = [2, 4], strides = [1, 1]} : vector<2x16xf32> to vector<2x4xf32>
    %839 = vector.extract_strided_slice %837 {offsets = [0, 4], sizes = [2, 4], strides = [1, 1]} : vector<2x16xf32> to vector<2x4xf32>
    %840 = vector.extract_strided_slice %837 {offsets = [0, 8], sizes = [2, 4], strides = [1, 1]} : vector<2x16xf32> to vector<2x4xf32>
    %841 = vector.extract_strided_slice %837 {offsets = [0, 12], sizes = [2, 4], strides = [1, 1]} : vector<2x16xf32> to vector<2x4xf32>
    %842 = arith.mulf %839, %682 : vector<2x4xf32>
    %843 = arith.mulf %838, %840 : vector<2x4xf32>
    %844 = arith.addf %842, %843 : vector<2x4xf32>
    %845 = math.tanh %844 : vector<2x4xf32>
    %846 = arith.mulf %841, %845 : vector<2x4xf32>
    %847 = vector.extract_strided_slice %846 {offsets = [0, 0], sizes = [2, 1], strides = [1, 1]} : vector<2x4xf32> to vector<2x1xf32>
    %848 = vector.shape_cast %847 : vector<2x1xf32> to vector<2x1xf32>
    %849 = vector.broadcast %848 : vector<2x1xf32> to vector<2x16xf32>
    %850 = vector.extract_strided_slice %846 {offsets = [0, 1], sizes = [2, 1], strides = [1, 1]} : vector<2x4xf32> to vector<2x1xf32>
    %851 = vector.shape_cast %850 : vector<2x1xf32> to vector<2x1xf32>
    %852 = vector.broadcast %851 : vector<2x1xf32> to vector<2x16xf32>
    %853 = vector.extract_strided_slice %846 {offsets = [0, 2], sizes = [2, 1], strides = [1, 1]} : vector<2x4xf32> to vector<2x1xf32>
    %854 = vector.shape_cast %853 : vector<2x1xf32> to vector<2x1xf32>
    %855 = vector.broadcast %854 : vector<2x1xf32> to vector<2x16xf32>
    %856 = vector.extract_strided_slice %846 {offsets = [0, 3], sizes = [2, 1], strides = [1, 1]} : vector<2x4xf32> to vector<2x1xf32>
    %857 = vector.shape_cast %856 : vector<2x1xf32> to vector<2x1xf32>
    %858 = vector.broadcast %857 : vector<2x1xf32> to vector<2x16xf32>
    %c4_218 = arith.constant 4 : index
    %c0_219 = arith.constant 0 : index
    %859 = vector.load %arg5[%c4_218, %c0_219] : memref<8x16xf32, #tpu.memory_space<vmem>>, vector<1x16xf32>
    %860 = vector.broadcast %859 : vector<1x16xf32> to vector<2x16xf32>
    %861 = arith.mulf %849, %860 : vector<2x16xf32>
    %c5_220 = arith.constant 5 : index
    %c0_221 = arith.constant 0 : index
    %862 = vector.load %arg5[%c5_220, %c0_221] : memref<8x16xf32, #tpu.memory_space<vmem>>, vector<1x16xf32>
    %863 = vector.broadcast %862 : vector<1x16xf32> to vector<2x16xf32>
    %864 = arith.mulf %852, %863 : vector<2x16xf32>
    %c6_222 = arith.constant 6 : index
    %c0_223 = arith.constant 0 : index
    %865 = vector.load %arg5[%c6_222, %c0_223] : memref<8x16xf32, #tpu.memory_space<vmem>>, vector<1x16xf32>
    %866 = vector.broadcast %865 : vector<1x16xf32> to vector<2x16xf32>
    %867 = arith.mulf %855, %866 : vector<2x16xf32>
    %c7_224 = arith.constant 7 : index
    %c0_225 = arith.constant 0 : index
    %868 = vector.load %arg5[%c7_224, %c0_225] : memref<8x16xf32, #tpu.memory_space<vmem>>, vector<1x16xf32>
    %869 = vector.broadcast %868 : vector<1x16xf32> to vector<2x16xf32>
    %870 = arith.mulf %858, %869 : vector<2x16xf32>
    %c1_226 = arith.constant 1 : index
    %c0_227 = arith.constant 0 : index
    %871 = vector.load %arg7[%c1_226, %c0_227] : memref<2x16xf32, #tpu.memory_space<vmem>>, vector<1x16xf32>
    %c8_228 = arith.constant 8 : index
    %c0_229 = arith.constant 0 : index
    %872 = vector.load %arg6[%c8_228, %c0_229] : memref<12x16xf32, #tpu.memory_space<vmem>>, vector<1x16xf32>
    %873 = vector.broadcast %872 : vector<1x16xf32> to vector<2x16xf32>
    %874 = arith.mulf %747, %873 : vector<2x16xf32>
    %c9_230 = arith.constant 9 : index
    %c0_231 = arith.constant 0 : index
    %875 = vector.load %arg6[%c9_230, %c0_231] : memref<12x16xf32, #tpu.memory_space<vmem>>, vector<1x16xf32>
    %876 = vector.broadcast %875 : vector<1x16xf32> to vector<2x16xf32>
    %877 = arith.mulf %750, %876 : vector<2x16xf32>
    %c10_232 = arith.constant 10 : index
    %c0_233 = arith.constant 0 : index
    %878 = vector.load %arg6[%c10_232, %c0_233] : memref<12x16xf32, #tpu.memory_space<vmem>>, vector<1x16xf32>
    %879 = vector.broadcast %878 : vector<1x16xf32> to vector<2x16xf32>
    %880 = arith.mulf %753, %879 : vector<2x16xf32>
    %c11_234 = arith.constant 11 : index
    %c0_235 = arith.constant 0 : index
    %881 = vector.load %arg6[%c11_234, %c0_235] : memref<12x16xf32, #tpu.memory_space<vmem>>, vector<1x16xf32>
    %882 = vector.broadcast %881 : vector<1x16xf32> to vector<2x16xf32>
    %883 = arith.mulf %756, %882 : vector<2x16xf32>
    %884 = arith.addf %874, %877 : vector<2x16xf32>
    %885 = arith.addf %880, %883 : vector<2x16xf32>
    %886 = arith.addf %884, %885 : vector<2x16xf32>
    %887 = arith.addf %861, %864 : vector<2x16xf32>
    %888 = arith.addf %867, %870 : vector<2x16xf32>
    %889 = arith.addf %887, %888 : vector<2x16xf32>
    %890 = vector.broadcast %871 : vector<1x16xf32> to vector<2x16xf32>
    %891 = arith.addf %889, %890 : vector<2x16xf32>
    %892 = arith.addf %886, %891 : vector<2x16xf32>
    %893 = math.tanh %892 : vector<2x16xf32>
    %894 = vector.broadcast %0 : vector<1x16xf32> to vector<2x16xf32>
    %895 = arith.mulf %893, %894 : vector<2x16xf32>
    %896 = vector.broadcast %1 : vector<1x16xf32> to vector<2x16xf32>
    %897 = arith.addf %895, %896 : vector<2x16xf32>
    %898 = vector.extract_strided_slice %897 {offsets = [0, 0], sizes = [2, 4], strides = [1, 1]} : vector<2x16xf32> to vector<2x4xf32>
    %899 = vector.extract_strided_slice %897 {offsets = [0, 4], sizes = [2, 4], strides = [1, 1]} : vector<2x16xf32> to vector<2x4xf32>
    %900 = vector.extract_strided_slice %897 {offsets = [0, 8], sizes = [2, 4], strides = [1, 1]} : vector<2x16xf32> to vector<2x4xf32>
    %901 = vector.extract_strided_slice %897 {offsets = [0, 12], sizes = [2, 4], strides = [1, 1]} : vector<2x16xf32> to vector<2x4xf32>
    %902 = arith.mulf %899, %742 : vector<2x4xf32>
    %903 = arith.mulf %898, %900 : vector<2x4xf32>
    %904 = arith.addf %902, %903 : vector<2x4xf32>
    %905 = math.tanh %904 : vector<2x4xf32>
    %906 = arith.mulf %901, %905 : vector<2x4xf32>
    %907 = vector.extract_strided_slice %906 {offsets = [0, 0], sizes = [2, 1], strides = [1, 1]} : vector<2x4xf32> to vector<2x1xf32>
    %908 = vector.shape_cast %907 : vector<2x1xf32> to vector<2x1xf32>
    %909 = vector.broadcast %908 : vector<2x1xf32> to vector<2x16xf32>
    %910 = vector.extract_strided_slice %906 {offsets = [0, 1], sizes = [2, 1], strides = [1, 1]} : vector<2x4xf32> to vector<2x1xf32>
    %911 = vector.shape_cast %910 : vector<2x1xf32> to vector<2x1xf32>
    %912 = vector.broadcast %911 : vector<2x1xf32> to vector<2x16xf32>
    %913 = vector.extract_strided_slice %906 {offsets = [0, 2], sizes = [2, 1], strides = [1, 1]} : vector<2x4xf32> to vector<2x1xf32>
    %914 = vector.shape_cast %913 : vector<2x1xf32> to vector<2x1xf32>
    %915 = vector.broadcast %914 : vector<2x1xf32> to vector<2x16xf32>
    %916 = vector.extract_strided_slice %906 {offsets = [0, 3], sizes = [2, 1], strides = [1, 1]} : vector<2x4xf32> to vector<2x1xf32>
    %917 = vector.shape_cast %916 : vector<2x1xf32> to vector<2x1xf32>
    %918 = vector.broadcast %917 : vector<2x1xf32> to vector<2x16xf32>
    %c0_236 = arith.constant 0 : index
    %c0_237 = arith.constant 0 : index
    %919 = vector.load %arg6[%c0_236, %c0_237] : memref<12x16xf32, #tpu.memory_space<vmem>>, vector<1x16xf32>
    %920 = vector.broadcast %919 : vector<1x16xf32> to vector<2x16xf32>
    %921 = arith.mulf %789, %920 : vector<2x16xf32>
    %c1_238 = arith.constant 1 : index
    %c0_239 = arith.constant 0 : index
    %922 = vector.load %arg6[%c1_238, %c0_239] : memref<12x16xf32, #tpu.memory_space<vmem>>, vector<1x16xf32>
    %923 = vector.broadcast %922 : vector<1x16xf32> to vector<2x16xf32>
    %924 = arith.mulf %792, %923 : vector<2x16xf32>
    %c2_240 = arith.constant 2 : index
    %c0_241 = arith.constant 0 : index
    %925 = vector.load %arg6[%c2_240, %c0_241] : memref<12x16xf32, #tpu.memory_space<vmem>>, vector<1x16xf32>
    %926 = vector.broadcast %925 : vector<1x16xf32> to vector<2x16xf32>
    %927 = arith.mulf %795, %926 : vector<2x16xf32>
    %c3_242 = arith.constant 3 : index
    %c0_243 = arith.constant 0 : index
    %928 = vector.load %arg6[%c3_242, %c0_243] : memref<12x16xf32, #tpu.memory_space<vmem>>, vector<1x16xf32>
    %929 = vector.broadcast %928 : vector<1x16xf32> to vector<2x16xf32>
    %930 = arith.mulf %798, %929 : vector<2x16xf32>
    %931 = arith.addf %921, %924 : vector<2x16xf32>
    %932 = arith.addf %927, %930 : vector<2x16xf32>
    %933 = arith.addf %931, %932 : vector<2x16xf32>
    %934 = arith.addf %933, %46 : vector<2x16xf32>
    %935 = math.tanh %934 : vector<2x16xf32>
    %936 = vector.broadcast %0 : vector<1x16xf32> to vector<2x16xf32>
    %937 = arith.mulf %935, %936 : vector<2x16xf32>
    %938 = vector.broadcast %1 : vector<1x16xf32> to vector<2x16xf32>
    %939 = arith.addf %937, %938 : vector<2x16xf32>
    %940 = vector.extract_strided_slice %939 {offsets = [0, 0], sizes = [2, 4], strides = [1, 1]} : vector<2x16xf32> to vector<2x4xf32>
    %941 = vector.extract_strided_slice %939 {offsets = [0, 4], sizes = [2, 4], strides = [1, 1]} : vector<2x16xf32> to vector<2x4xf32>
    %942 = vector.extract_strided_slice %939 {offsets = [0, 8], sizes = [2, 4], strides = [1, 1]} : vector<2x16xf32> to vector<2x4xf32>
    %943 = vector.extract_strided_slice %939 {offsets = [0, 12], sizes = [2, 4], strides = [1, 1]} : vector<2x16xf32> to vector<2x4xf32>
    %944 = arith.mulf %941, %784 : vector<2x4xf32>
    %945 = arith.mulf %940, %942 : vector<2x4xf32>
    %946 = arith.addf %944, %945 : vector<2x4xf32>
    %947 = math.tanh %946 : vector<2x4xf32>
    %948 = arith.mulf %943, %947 : vector<2x4xf32>
    %949 = vector.extract_strided_slice %948 {offsets = [0, 0], sizes = [2, 1], strides = [1, 1]} : vector<2x4xf32> to vector<2x1xf32>
    %950 = vector.shape_cast %949 : vector<2x1xf32> to vector<2x1xf32>
    %951 = vector.broadcast %950 : vector<2x1xf32> to vector<2x16xf32>
    %952 = vector.extract_strided_slice %948 {offsets = [0, 1], sizes = [2, 1], strides = [1, 1]} : vector<2x4xf32> to vector<2x1xf32>
    %953 = vector.shape_cast %952 : vector<2x1xf32> to vector<2x1xf32>
    %954 = vector.broadcast %953 : vector<2x1xf32> to vector<2x16xf32>
    %955 = vector.extract_strided_slice %948 {offsets = [0, 2], sizes = [2, 1], strides = [1, 1]} : vector<2x4xf32> to vector<2x1xf32>
    %956 = vector.shape_cast %955 : vector<2x1xf32> to vector<2x1xf32>
    %957 = vector.broadcast %956 : vector<2x1xf32> to vector<2x16xf32>
    %958 = vector.extract_strided_slice %948 {offsets = [0, 3], sizes = [2, 1], strides = [1, 1]} : vector<2x4xf32> to vector<2x1xf32>
    %959 = vector.shape_cast %958 : vector<2x1xf32> to vector<2x1xf32>
    %960 = vector.broadcast %959 : vector<2x1xf32> to vector<2x16xf32>
    %c0_244 = arith.constant 0 : index
    %c0_245 = arith.constant 0 : index
    %961 = vector.load %arg5[%c0_244, %c0_245] : memref<8x16xf32, #tpu.memory_space<vmem>>, vector<1x16xf32>
    %962 = vector.broadcast %961 : vector<1x16xf32> to vector<2x16xf32>
    %963 = arith.mulf %951, %962 : vector<2x16xf32>
    %c1_246 = arith.constant 1 : index
    %c0_247 = arith.constant 0 : index
    %964 = vector.load %arg5[%c1_246, %c0_247] : memref<8x16xf32, #tpu.memory_space<vmem>>, vector<1x16xf32>
    %965 = vector.broadcast %964 : vector<1x16xf32> to vector<2x16xf32>
    %966 = arith.mulf %954, %965 : vector<2x16xf32>
    %c2_248 = arith.constant 2 : index
    %c0_249 = arith.constant 0 : index
    %967 = vector.load %arg5[%c2_248, %c0_249] : memref<8x16xf32, #tpu.memory_space<vmem>>, vector<1x16xf32>
    %968 = vector.broadcast %967 : vector<1x16xf32> to vector<2x16xf32>
    %969 = arith.mulf %957, %968 : vector<2x16xf32>
    %c3_250 = arith.constant 3 : index
    %c0_251 = arith.constant 0 : index
    %970 = vector.load %arg5[%c3_250, %c0_251] : memref<8x16xf32, #tpu.memory_space<vmem>>, vector<1x16xf32>
    %971 = vector.broadcast %970 : vector<1x16xf32> to vector<2x16xf32>
    %972 = arith.mulf %960, %971 : vector<2x16xf32>
    %c0_252 = arith.constant 0 : index
    %c0_253 = arith.constant 0 : index
    %973 = vector.load %arg7[%c0_252, %c0_253] : memref<2x16xf32, #tpu.memory_space<vmem>>, vector<1x16xf32>
    %c4_254 = arith.constant 4 : index
    %c0_255 = arith.constant 0 : index
    %974 = vector.load %arg6[%c4_254, %c0_255] : memref<12x16xf32, #tpu.memory_space<vmem>>, vector<1x16xf32>
    %975 = vector.broadcast %974 : vector<1x16xf32> to vector<2x16xf32>
    %976 = arith.mulf %849, %975 : vector<2x16xf32>
    %c5_256 = arith.constant 5 : index
    %c0_257 = arith.constant 0 : index
    %977 = vector.load %arg6[%c5_256, %c0_257] : memref<12x16xf32, #tpu.memory_space<vmem>>, vector<1x16xf32>
    %978 = vector.broadcast %977 : vector<1x16xf32> to vector<2x16xf32>
    %979 = arith.mulf %852, %978 : vector<2x16xf32>
    %c6_258 = arith.constant 6 : index
    %c0_259 = arith.constant 0 : index
    %980 = vector.load %arg6[%c6_258, %c0_259] : memref<12x16xf32, #tpu.memory_space<vmem>>, vector<1x16xf32>
    %981 = vector.broadcast %980 : vector<1x16xf32> to vector<2x16xf32>
    %982 = arith.mulf %855, %981 : vector<2x16xf32>
    %c7_260 = arith.constant 7 : index
    %c0_261 = arith.constant 0 : index
    %983 = vector.load %arg6[%c7_260, %c0_261] : memref<12x16xf32, #tpu.memory_space<vmem>>, vector<1x16xf32>
    %984 = vector.broadcast %983 : vector<1x16xf32> to vector<2x16xf32>
    %985 = arith.mulf %858, %984 : vector<2x16xf32>
    %986 = arith.addf %976, %979 : vector<2x16xf32>
    %987 = arith.addf %982, %985 : vector<2x16xf32>
    %988 = arith.addf %986, %987 : vector<2x16xf32>
    %989 = arith.addf %963, %966 : vector<2x16xf32>
    %990 = arith.addf %969, %972 : vector<2x16xf32>
    %991 = arith.addf %989, %990 : vector<2x16xf32>
    %992 = vector.broadcast %973 : vector<1x16xf32> to vector<2x16xf32>
    %993 = arith.addf %991, %992 : vector<2x16xf32>
    %994 = arith.addf %988, %993 : vector<2x16xf32>
    %995 = math.tanh %994 : vector<2x16xf32>
    %996 = vector.broadcast %0 : vector<1x16xf32> to vector<2x16xf32>
    %997 = arith.mulf %995, %996 : vector<2x16xf32>
    %998 = vector.broadcast %1 : vector<1x16xf32> to vector<2x16xf32>
    %999 = arith.addf %997, %998 : vector<2x16xf32>
    %1000 = vector.extract_strided_slice %999 {offsets = [0, 0], sizes = [2, 4], strides = [1, 1]} : vector<2x16xf32> to vector<2x4xf32>
    %1001 = vector.extract_strided_slice %999 {offsets = [0, 4], sizes = [2, 4], strides = [1, 1]} : vector<2x16xf32> to vector<2x4xf32>
    %1002 = vector.extract_strided_slice %999 {offsets = [0, 8], sizes = [2, 4], strides = [1, 1]} : vector<2x16xf32> to vector<2x4xf32>
    %1003 = vector.extract_strided_slice %999 {offsets = [0, 12], sizes = [2, 4], strides = [1, 1]} : vector<2x16xf32> to vector<2x4xf32>
    %1004 = arith.mulf %1001, %844 : vector<2x4xf32>
    %1005 = arith.mulf %1000, %1002 : vector<2x4xf32>
    %1006 = arith.addf %1004, %1005 : vector<2x4xf32>
    %1007 = math.tanh %1006 : vector<2x4xf32>
    %1008 = arith.mulf %1003, %1007 : vector<2x4xf32>
    %1009 = vector.extract_strided_slice %1008 {offsets = [0, 0], sizes = [2, 1], strides = [1, 1]} : vector<2x4xf32> to vector<2x1xf32>
    %1010 = vector.shape_cast %1009 : vector<2x1xf32> to vector<2x1xf32>
    %1011 = vector.broadcast %1010 : vector<2x1xf32> to vector<2x16xf32>
    %1012 = vector.extract_strided_slice %1008 {offsets = [0, 1], sizes = [2, 1], strides = [1, 1]} : vector<2x4xf32> to vector<2x1xf32>
    %1013 = vector.shape_cast %1012 : vector<2x1xf32> to vector<2x1xf32>
    %1014 = vector.broadcast %1013 : vector<2x1xf32> to vector<2x16xf32>
    %1015 = vector.extract_strided_slice %1008 {offsets = [0, 2], sizes = [2, 1], strides = [1, 1]} : vector<2x4xf32> to vector<2x1xf32>
    %1016 = vector.shape_cast %1015 : vector<2x1xf32> to vector<2x1xf32>
    %1017 = vector.broadcast %1016 : vector<2x1xf32> to vector<2x16xf32>
    %1018 = vector.extract_strided_slice %1008 {offsets = [0, 3], sizes = [2, 1], strides = [1, 1]} : vector<2x4xf32> to vector<2x1xf32>
    %1019 = vector.shape_cast %1018 : vector<2x1xf32> to vector<2x1xf32>
    %1020 = vector.broadcast %1019 : vector<2x1xf32> to vector<2x16xf32>
    %c4_262 = arith.constant 4 : index
    %c0_263 = arith.constant 0 : index
    %1021 = vector.load %arg5[%c4_262, %c0_263] : memref<8x16xf32, #tpu.memory_space<vmem>>, vector<1x16xf32>
    %1022 = vector.broadcast %1021 : vector<1x16xf32> to vector<2x16xf32>
    %1023 = arith.mulf %1011, %1022 : vector<2x16xf32>
    %c5_264 = arith.constant 5 : index
    %c0_265 = arith.constant 0 : index
    %1024 = vector.load %arg5[%c5_264, %c0_265] : memref<8x16xf32, #tpu.memory_space<vmem>>, vector<1x16xf32>
    %1025 = vector.broadcast %1024 : vector<1x16xf32> to vector<2x16xf32>
    %1026 = arith.mulf %1014, %1025 : vector<2x16xf32>
    %c6_266 = arith.constant 6 : index
    %c0_267 = arith.constant 0 : index
    %1027 = vector.load %arg5[%c6_266, %c0_267] : memref<8x16xf32, #tpu.memory_space<vmem>>, vector<1x16xf32>
    %1028 = vector.broadcast %1027 : vector<1x16xf32> to vector<2x16xf32>
    %1029 = arith.mulf %1017, %1028 : vector<2x16xf32>
    %c7_268 = arith.constant 7 : index
    %c0_269 = arith.constant 0 : index
    %1030 = vector.load %arg5[%c7_268, %c0_269] : memref<8x16xf32, #tpu.memory_space<vmem>>, vector<1x16xf32>
    %1031 = vector.broadcast %1030 : vector<1x16xf32> to vector<2x16xf32>
    %1032 = arith.mulf %1020, %1031 : vector<2x16xf32>
    %c1_270 = arith.constant 1 : index
    %c0_271 = arith.constant 0 : index
    %1033 = vector.load %arg7[%c1_270, %c0_271] : memref<2x16xf32, #tpu.memory_space<vmem>>, vector<1x16xf32>
    %c8_272 = arith.constant 8 : index
    %c0_273 = arith.constant 0 : index
    %1034 = vector.load %arg6[%c8_272, %c0_273] : memref<12x16xf32, #tpu.memory_space<vmem>>, vector<1x16xf32>
    %1035 = vector.broadcast %1034 : vector<1x16xf32> to vector<2x16xf32>
    %1036 = arith.mulf %909, %1035 : vector<2x16xf32>
    %c9_274 = arith.constant 9 : index
    %c0_275 = arith.constant 0 : index
    %1037 = vector.load %arg6[%c9_274, %c0_275] : memref<12x16xf32, #tpu.memory_space<vmem>>, vector<1x16xf32>
    %1038 = vector.broadcast %1037 : vector<1x16xf32> to vector<2x16xf32>
    %1039 = arith.mulf %912, %1038 : vector<2x16xf32>
    %c10_276 = arith.constant 10 : index
    %c0_277 = arith.constant 0 : index
    %1040 = vector.load %arg6[%c10_276, %c0_277] : memref<12x16xf32, #tpu.memory_space<vmem>>, vector<1x16xf32>
    %1041 = vector.broadcast %1040 : vector<1x16xf32> to vector<2x16xf32>
    %1042 = arith.mulf %915, %1041 : vector<2x16xf32>
    %c11_278 = arith.constant 11 : index
    %c0_279 = arith.constant 0 : index
    %1043 = vector.load %arg6[%c11_278, %c0_279] : memref<12x16xf32, #tpu.memory_space<vmem>>, vector<1x16xf32>
    %1044 = vector.broadcast %1043 : vector<1x16xf32> to vector<2x16xf32>
    %1045 = arith.mulf %918, %1044 : vector<2x16xf32>
    %1046 = arith.addf %1036, %1039 : vector<2x16xf32>
    %1047 = arith.addf %1042, %1045 : vector<2x16xf32>
    %1048 = arith.addf %1046, %1047 : vector<2x16xf32>
    %1049 = arith.addf %1023, %1026 : vector<2x16xf32>
    %1050 = arith.addf %1029, %1032 : vector<2x16xf32>
    %1051 = arith.addf %1049, %1050 : vector<2x16xf32>
    %1052 = vector.broadcast %1033 : vector<1x16xf32> to vector<2x16xf32>
    %1053 = arith.addf %1051, %1052 : vector<2x16xf32>
    %1054 = arith.addf %1048, %1053 : vector<2x16xf32>
    %1055 = math.tanh %1054 : vector<2x16xf32>
    %1056 = vector.broadcast %0 : vector<1x16xf32> to vector<2x16xf32>
    %1057 = arith.mulf %1055, %1056 : vector<2x16xf32>
    %1058 = vector.broadcast %1 : vector<1x16xf32> to vector<2x16xf32>
    %1059 = arith.addf %1057, %1058 : vector<2x16xf32>
    %1060 = vector.extract_strided_slice %1059 {offsets = [0, 0], sizes = [2, 4], strides = [1, 1]} : vector<2x16xf32> to vector<2x4xf32>
    %1061 = vector.extract_strided_slice %1059 {offsets = [0, 4], sizes = [2, 4], strides = [1, 1]} : vector<2x16xf32> to vector<2x4xf32>
    %1062 = vector.extract_strided_slice %1059 {offsets = [0, 8], sizes = [2, 4], strides = [1, 1]} : vector<2x16xf32> to vector<2x4xf32>
    %1063 = vector.extract_strided_slice %1059 {offsets = [0, 12], sizes = [2, 4], strides = [1, 1]} : vector<2x16xf32> to vector<2x4xf32>
    %1064 = arith.mulf %1061, %904 : vector<2x4xf32>
    %1065 = arith.mulf %1060, %1062 : vector<2x4xf32>
    %1066 = arith.addf %1064, %1065 : vector<2x4xf32>
    %1067 = math.tanh %1066 : vector<2x4xf32>
    %1068 = arith.mulf %1063, %1067 : vector<2x4xf32>
    %1069 = vector.extract_strided_slice %1068 {offsets = [0, 0], sizes = [2, 1], strides = [1, 1]} : vector<2x4xf32> to vector<2x1xf32>
    %1070 = vector.shape_cast %1069 : vector<2x1xf32> to vector<2x1xf32>
    %1071 = vector.broadcast %1070 : vector<2x1xf32> to vector<2x16xf32>
    %1072 = vector.extract_strided_slice %1068 {offsets = [0, 1], sizes = [2, 1], strides = [1, 1]} : vector<2x4xf32> to vector<2x1xf32>
    %1073 = vector.shape_cast %1072 : vector<2x1xf32> to vector<2x1xf32>
    %1074 = vector.broadcast %1073 : vector<2x1xf32> to vector<2x16xf32>
    %1075 = vector.extract_strided_slice %1068 {offsets = [0, 2], sizes = [2, 1], strides = [1, 1]} : vector<2x4xf32> to vector<2x1xf32>
    %1076 = vector.shape_cast %1075 : vector<2x1xf32> to vector<2x1xf32>
    %1077 = vector.broadcast %1076 : vector<2x1xf32> to vector<2x16xf32>
    %1078 = vector.extract_strided_slice %1068 {offsets = [0, 3], sizes = [2, 1], strides = [1, 1]} : vector<2x4xf32> to vector<2x1xf32>
    %1079 = vector.shape_cast %1078 : vector<2x1xf32> to vector<2x1xf32>
    %1080 = vector.broadcast %1079 : vector<2x1xf32> to vector<2x16xf32>
    %c0_280 = arith.constant 0 : index
    %c0_281 = arith.constant 0 : index
    %1081 = vector.load %arg6[%c0_280, %c0_281] : memref<12x16xf32, #tpu.memory_space<vmem>>, vector<1x16xf32>
    %1082 = vector.broadcast %1081 : vector<1x16xf32> to vector<2x16xf32>
    %1083 = arith.mulf %951, %1082 : vector<2x16xf32>
    %c1_282 = arith.constant 1 : index
    %c0_283 = arith.constant 0 : index
    %1084 = vector.load %arg6[%c1_282, %c0_283] : memref<12x16xf32, #tpu.memory_space<vmem>>, vector<1x16xf32>
    %1085 = vector.broadcast %1084 : vector<1x16xf32> to vector<2x16xf32>
    %1086 = arith.mulf %954, %1085 : vector<2x16xf32>
    %c2_284 = arith.constant 2 : index
    %c0_285 = arith.constant 0 : index
    %1087 = vector.load %arg6[%c2_284, %c0_285] : memref<12x16xf32, #tpu.memory_space<vmem>>, vector<1x16xf32>
    %1088 = vector.broadcast %1087 : vector<1x16xf32> to vector<2x16xf32>
    %1089 = arith.mulf %957, %1088 : vector<2x16xf32>
    %c3_286 = arith.constant 3 : index
    %c0_287 = arith.constant 0 : index
    %1090 = vector.load %arg6[%c3_286, %c0_287] : memref<12x16xf32, #tpu.memory_space<vmem>>, vector<1x16xf32>
    %1091 = vector.broadcast %1090 : vector<1x16xf32> to vector<2x16xf32>
    %1092 = arith.mulf %960, %1091 : vector<2x16xf32>
    %1093 = arith.addf %1083, %1086 : vector<2x16xf32>
    %1094 = arith.addf %1089, %1092 : vector<2x16xf32>
    %1095 = arith.addf %1093, %1094 : vector<2x16xf32>
    %1096 = arith.addf %1095, %53 : vector<2x16xf32>
    %1097 = math.tanh %1096 : vector<2x16xf32>
    %1098 = vector.broadcast %0 : vector<1x16xf32> to vector<2x16xf32>
    %1099 = arith.mulf %1097, %1098 : vector<2x16xf32>
    %1100 = vector.broadcast %1 : vector<1x16xf32> to vector<2x16xf32>
    %1101 = arith.addf %1099, %1100 : vector<2x16xf32>
    %1102 = vector.extract_strided_slice %1101 {offsets = [0, 0], sizes = [2, 4], strides = [1, 1]} : vector<2x16xf32> to vector<2x4xf32>
    %1103 = vector.extract_strided_slice %1101 {offsets = [0, 4], sizes = [2, 4], strides = [1, 1]} : vector<2x16xf32> to vector<2x4xf32>
    %1104 = vector.extract_strided_slice %1101 {offsets = [0, 8], sizes = [2, 4], strides = [1, 1]} : vector<2x16xf32> to vector<2x4xf32>
    %1105 = vector.extract_strided_slice %1101 {offsets = [0, 12], sizes = [2, 4], strides = [1, 1]} : vector<2x16xf32> to vector<2x4xf32>
    %1106 = arith.mulf %1103, %946 : vector<2x4xf32>
    %1107 = arith.mulf %1102, %1104 : vector<2x4xf32>
    %1108 = arith.addf %1106, %1107 : vector<2x4xf32>
    %1109 = math.tanh %1108 : vector<2x4xf32>
    %1110 = arith.mulf %1105, %1109 : vector<2x4xf32>
    %1111 = vector.extract_strided_slice %1110 {offsets = [0, 0], sizes = [2, 1], strides = [1, 1]} : vector<2x4xf32> to vector<2x1xf32>
    %1112 = vector.shape_cast %1111 : vector<2x1xf32> to vector<2x1xf32>
    %1113 = vector.broadcast %1112 : vector<2x1xf32> to vector<2x16xf32>
    %1114 = vector.extract_strided_slice %1110 {offsets = [0, 1], sizes = [2, 1], strides = [1, 1]} : vector<2x4xf32> to vector<2x1xf32>
    %1115 = vector.shape_cast %1114 : vector<2x1xf32> to vector<2x1xf32>
    %1116 = vector.broadcast %1115 : vector<2x1xf32> to vector<2x16xf32>
    %1117 = vector.extract_strided_slice %1110 {offsets = [0, 2], sizes = [2, 1], strides = [1, 1]} : vector<2x4xf32> to vector<2x1xf32>
    %1118 = vector.shape_cast %1117 : vector<2x1xf32> to vector<2x1xf32>
    %1119 = vector.broadcast %1118 : vector<2x1xf32> to vector<2x16xf32>
    %1120 = vector.extract_strided_slice %1110 {offsets = [0, 3], sizes = [2, 1], strides = [1, 1]} : vector<2x4xf32> to vector<2x1xf32>
    %1121 = vector.shape_cast %1120 : vector<2x1xf32> to vector<2x1xf32>
    %1122 = vector.broadcast %1121 : vector<2x1xf32> to vector<2x16xf32>
    %c0_288 = arith.constant 0 : index
    %c0_289 = arith.constant 0 : index
    %1123 = vector.load %arg5[%c0_288, %c0_289] : memref<8x16xf32, #tpu.memory_space<vmem>>, vector<1x16xf32>
    %1124 = vector.broadcast %1123 : vector<1x16xf32> to vector<2x16xf32>
    %1125 = arith.mulf %1113, %1124 : vector<2x16xf32>
    %c1_290 = arith.constant 1 : index
    %c0_291 = arith.constant 0 : index
    %1126 = vector.load %arg5[%c1_290, %c0_291] : memref<8x16xf32, #tpu.memory_space<vmem>>, vector<1x16xf32>
    %1127 = vector.broadcast %1126 : vector<1x16xf32> to vector<2x16xf32>
    %1128 = arith.mulf %1116, %1127 : vector<2x16xf32>
    %c2_292 = arith.constant 2 : index
    %c0_293 = arith.constant 0 : index
    %1129 = vector.load %arg5[%c2_292, %c0_293] : memref<8x16xf32, #tpu.memory_space<vmem>>, vector<1x16xf32>
    %1130 = vector.broadcast %1129 : vector<1x16xf32> to vector<2x16xf32>
    %1131 = arith.mulf %1119, %1130 : vector<2x16xf32>
    %c3_294 = arith.constant 3 : index
    %c0_295 = arith.constant 0 : index
    %1132 = vector.load %arg5[%c3_294, %c0_295] : memref<8x16xf32, #tpu.memory_space<vmem>>, vector<1x16xf32>
    %1133 = vector.broadcast %1132 : vector<1x16xf32> to vector<2x16xf32>
    %1134 = arith.mulf %1122, %1133 : vector<2x16xf32>
    %c0_296 = arith.constant 0 : index
    %c0_297 = arith.constant 0 : index
    %1135 = vector.load %arg7[%c0_296, %c0_297] : memref<2x16xf32, #tpu.memory_space<vmem>>, vector<1x16xf32>
    %c4_298 = arith.constant 4 : index
    %c0_299 = arith.constant 0 : index
    %1136 = vector.load %arg6[%c4_298, %c0_299] : memref<12x16xf32, #tpu.memory_space<vmem>>, vector<1x16xf32>
    %1137 = vector.broadcast %1136 : vector<1x16xf32> to vector<2x16xf32>
    %1138 = arith.mulf %1011, %1137 : vector<2x16xf32>
    %c5_300 = arith.constant 5 : index
    %c0_301 = arith.constant 0 : index
    %1139 = vector.load %arg6[%c5_300, %c0_301] : memref<12x16xf32, #tpu.memory_space<vmem>>, vector<1x16xf32>
    %1140 = vector.broadcast %1139 : vector<1x16xf32> to vector<2x16xf32>
    %1141 = arith.mulf %1014, %1140 : vector<2x16xf32>
    %c6_302 = arith.constant 6 : index
    %c0_303 = arith.constant 0 : index
    %1142 = vector.load %arg6[%c6_302, %c0_303] : memref<12x16xf32, #tpu.memory_space<vmem>>, vector<1x16xf32>
    %1143 = vector.broadcast %1142 : vector<1x16xf32> to vector<2x16xf32>
    %1144 = arith.mulf %1017, %1143 : vector<2x16xf32>
    %c7_304 = arith.constant 7 : index
    %c0_305 = arith.constant 0 : index
    %1145 = vector.load %arg6[%c7_304, %c0_305] : memref<12x16xf32, #tpu.memory_space<vmem>>, vector<1x16xf32>
    %1146 = vector.broadcast %1145 : vector<1x16xf32> to vector<2x16xf32>
    %1147 = arith.mulf %1020, %1146 : vector<2x16xf32>
    %1148 = arith.addf %1138, %1141 : vector<2x16xf32>
    %1149 = arith.addf %1144, %1147 : vector<2x16xf32>
    %1150 = arith.addf %1148, %1149 : vector<2x16xf32>
    %1151 = arith.addf %1125, %1128 : vector<2x16xf32>
    %1152 = arith.addf %1131, %1134 : vector<2x16xf32>
    %1153 = arith.addf %1151, %1152 : vector<2x16xf32>
    %1154 = vector.broadcast %1135 : vector<1x16xf32> to vector<2x16xf32>
    %1155 = arith.addf %1153, %1154 : vector<2x16xf32>
    %1156 = arith.addf %1150, %1155 : vector<2x16xf32>
    %1157 = math.tanh %1156 : vector<2x16xf32>
    %1158 = vector.broadcast %0 : vector<1x16xf32> to vector<2x16xf32>
    %1159 = arith.mulf %1157, %1158 : vector<2x16xf32>
    %1160 = vector.broadcast %1 : vector<1x16xf32> to vector<2x16xf32>
    %1161 = arith.addf %1159, %1160 : vector<2x16xf32>
    %1162 = vector.extract_strided_slice %1161 {offsets = [0, 0], sizes = [2, 4], strides = [1, 1]} : vector<2x16xf32> to vector<2x4xf32>
    %1163 = vector.extract_strided_slice %1161 {offsets = [0, 4], sizes = [2, 4], strides = [1, 1]} : vector<2x16xf32> to vector<2x4xf32>
    %1164 = vector.extract_strided_slice %1161 {offsets = [0, 8], sizes = [2, 4], strides = [1, 1]} : vector<2x16xf32> to vector<2x4xf32>
    %1165 = vector.extract_strided_slice %1161 {offsets = [0, 12], sizes = [2, 4], strides = [1, 1]} : vector<2x16xf32> to vector<2x4xf32>
    %1166 = arith.mulf %1163, %1006 : vector<2x4xf32>
    %1167 = arith.mulf %1162, %1164 : vector<2x4xf32>
    %1168 = arith.addf %1166, %1167 : vector<2x4xf32>
    %1169 = math.tanh %1168 : vector<2x4xf32>
    %1170 = arith.mulf %1165, %1169 : vector<2x4xf32>
    %1171 = vector.extract_strided_slice %1170 {offsets = [0, 0], sizes = [2, 1], strides = [1, 1]} : vector<2x4xf32> to vector<2x1xf32>
    %1172 = vector.shape_cast %1171 : vector<2x1xf32> to vector<2x1xf32>
    %1173 = vector.broadcast %1172 : vector<2x1xf32> to vector<2x16xf32>
    %1174 = vector.extract_strided_slice %1170 {offsets = [0, 1], sizes = [2, 1], strides = [1, 1]} : vector<2x4xf32> to vector<2x1xf32>
    %1175 = vector.shape_cast %1174 : vector<2x1xf32> to vector<2x1xf32>
    %1176 = vector.broadcast %1175 : vector<2x1xf32> to vector<2x16xf32>
    %1177 = vector.extract_strided_slice %1170 {offsets = [0, 2], sizes = [2, 1], strides = [1, 1]} : vector<2x4xf32> to vector<2x1xf32>
    %1178 = vector.shape_cast %1177 : vector<2x1xf32> to vector<2x1xf32>
    %1179 = vector.broadcast %1178 : vector<2x1xf32> to vector<2x16xf32>
    %1180 = vector.extract_strided_slice %1170 {offsets = [0, 3], sizes = [2, 1], strides = [1, 1]} : vector<2x4xf32> to vector<2x1xf32>
    %1181 = vector.shape_cast %1180 : vector<2x1xf32> to vector<2x1xf32>
    %1182 = vector.broadcast %1181 : vector<2x1xf32> to vector<2x16xf32>
    %c4_306 = arith.constant 4 : index
    %c0_307 = arith.constant 0 : index
    %1183 = vector.load %arg5[%c4_306, %c0_307] : memref<8x16xf32, #tpu.memory_space<vmem>>, vector<1x16xf32>
    %1184 = vector.broadcast %1183 : vector<1x16xf32> to vector<2x16xf32>
    %1185 = arith.mulf %1173, %1184 : vector<2x16xf32>
    %c5_308 = arith.constant 5 : index
    %c0_309 = arith.constant 0 : index
    %1186 = vector.load %arg5[%c5_308, %c0_309] : memref<8x16xf32, #tpu.memory_space<vmem>>, vector<1x16xf32>
    %1187 = vector.broadcast %1186 : vector<1x16xf32> to vector<2x16xf32>
    %1188 = arith.mulf %1176, %1187 : vector<2x16xf32>
    %c6_310 = arith.constant 6 : index
    %c0_311 = arith.constant 0 : index
    %1189 = vector.load %arg5[%c6_310, %c0_311] : memref<8x16xf32, #tpu.memory_space<vmem>>, vector<1x16xf32>
    %1190 = vector.broadcast %1189 : vector<1x16xf32> to vector<2x16xf32>
    %1191 = arith.mulf %1179, %1190 : vector<2x16xf32>
    %c7_312 = arith.constant 7 : index
    %c0_313 = arith.constant 0 : index
    %1192 = vector.load %arg5[%c7_312, %c0_313] : memref<8x16xf32, #tpu.memory_space<vmem>>, vector<1x16xf32>
    %1193 = vector.broadcast %1192 : vector<1x16xf32> to vector<2x16xf32>
    %1194 = arith.mulf %1182, %1193 : vector<2x16xf32>
    %c1_314 = arith.constant 1 : index
    %c0_315 = arith.constant 0 : index
    %1195 = vector.load %arg7[%c1_314, %c0_315] : memref<2x16xf32, #tpu.memory_space<vmem>>, vector<1x16xf32>
    %c8_316 = arith.constant 8 : index
    %c0_317 = arith.constant 0 : index
    %1196 = vector.load %arg6[%c8_316, %c0_317] : memref<12x16xf32, #tpu.memory_space<vmem>>, vector<1x16xf32>
    %1197 = vector.broadcast %1196 : vector<1x16xf32> to vector<2x16xf32>
    %1198 = arith.mulf %1071, %1197 : vector<2x16xf32>
    %c9_318 = arith.constant 9 : index
    %c0_319 = arith.constant 0 : index
    %1199 = vector.load %arg6[%c9_318, %c0_319] : memref<12x16xf32, #tpu.memory_space<vmem>>, vector<1x16xf32>
    %1200 = vector.broadcast %1199 : vector<1x16xf32> to vector<2x16xf32>
    %1201 = arith.mulf %1074, %1200 : vector<2x16xf32>
    %c10_320 = arith.constant 10 : index
    %c0_321 = arith.constant 0 : index
    %1202 = vector.load %arg6[%c10_320, %c0_321] : memref<12x16xf32, #tpu.memory_space<vmem>>, vector<1x16xf32>
    %1203 = vector.broadcast %1202 : vector<1x16xf32> to vector<2x16xf32>
    %1204 = arith.mulf %1077, %1203 : vector<2x16xf32>
    %c11_322 = arith.constant 11 : index
    %c0_323 = arith.constant 0 : index
    %1205 = vector.load %arg6[%c11_322, %c0_323] : memref<12x16xf32, #tpu.memory_space<vmem>>, vector<1x16xf32>
    %1206 = vector.broadcast %1205 : vector<1x16xf32> to vector<2x16xf32>
    %1207 = arith.mulf %1080, %1206 : vector<2x16xf32>
    %1208 = arith.addf %1198, %1201 : vector<2x16xf32>
    %1209 = arith.addf %1204, %1207 : vector<2x16xf32>
    %1210 = arith.addf %1208, %1209 : vector<2x16xf32>
    %1211 = arith.addf %1185, %1188 : vector<2x16xf32>
    %1212 = arith.addf %1191, %1194 : vector<2x16xf32>
    %1213 = arith.addf %1211, %1212 : vector<2x16xf32>
    %1214 = vector.broadcast %1195 : vector<1x16xf32> to vector<2x16xf32>
    %1215 = arith.addf %1213, %1214 : vector<2x16xf32>
    %1216 = arith.addf %1210, %1215 : vector<2x16xf32>
    %1217 = math.tanh %1216 : vector<2x16xf32>
    %1218 = vector.broadcast %0 : vector<1x16xf32> to vector<2x16xf32>
    %1219 = arith.mulf %1217, %1218 : vector<2x16xf32>
    %1220 = vector.broadcast %1 : vector<1x16xf32> to vector<2x16xf32>
    %1221 = arith.addf %1219, %1220 : vector<2x16xf32>
    %1222 = vector.extract_strided_slice %1221 {offsets = [0, 0], sizes = [2, 4], strides = [1, 1]} : vector<2x16xf32> to vector<2x4xf32>
    %1223 = vector.extract_strided_slice %1221 {offsets = [0, 4], sizes = [2, 4], strides = [1, 1]} : vector<2x16xf32> to vector<2x4xf32>
    %1224 = vector.extract_strided_slice %1221 {offsets = [0, 8], sizes = [2, 4], strides = [1, 1]} : vector<2x16xf32> to vector<2x4xf32>
    %1225 = vector.extract_strided_slice %1221 {offsets = [0, 12], sizes = [2, 4], strides = [1, 1]} : vector<2x16xf32> to vector<2x4xf32>
    %1226 = arith.mulf %1223, %1066 : vector<2x4xf32>
    %1227 = arith.mulf %1222, %1224 : vector<2x4xf32>
    %1228 = arith.addf %1226, %1227 : vector<2x4xf32>
    %1229 = math.tanh %1228 : vector<2x4xf32>
    %1230 = arith.mulf %1225, %1229 : vector<2x4xf32>
    %1231 = vector.extract_strided_slice %1230 {offsets = [0, 0], sizes = [2, 1], strides = [1, 1]} : vector<2x4xf32> to vector<2x1xf32>
    %1232 = vector.shape_cast %1231 : vector<2x1xf32> to vector<2x1xf32>
    %1233 = vector.broadcast %1232 : vector<2x1xf32> to vector<2x16xf32>
    %1234 = vector.extract_strided_slice %1230 {offsets = [0, 1], sizes = [2, 1], strides = [1, 1]} : vector<2x4xf32> to vector<2x1xf32>
    %1235 = vector.shape_cast %1234 : vector<2x1xf32> to vector<2x1xf32>
    %1236 = vector.broadcast %1235 : vector<2x1xf32> to vector<2x16xf32>
    %1237 = vector.extract_strided_slice %1230 {offsets = [0, 2], sizes = [2, 1], strides = [1, 1]} : vector<2x4xf32> to vector<2x1xf32>
    %1238 = vector.shape_cast %1237 : vector<2x1xf32> to vector<2x1xf32>
    %1239 = vector.broadcast %1238 : vector<2x1xf32> to vector<2x16xf32>
    %1240 = vector.extract_strided_slice %1230 {offsets = [0, 3], sizes = [2, 1], strides = [1, 1]} : vector<2x4xf32> to vector<2x1xf32>
    %1241 = vector.shape_cast %1240 : vector<2x1xf32> to vector<2x1xf32>
    %1242 = vector.broadcast %1241 : vector<2x1xf32> to vector<2x16xf32>
    %c0_324 = arith.constant 0 : index
    %c0_325 = arith.constant 0 : index
    %1243 = vector.load %arg6[%c0_324, %c0_325] : memref<12x16xf32, #tpu.memory_space<vmem>>, vector<1x16xf32>
    %1244 = vector.broadcast %1243 : vector<1x16xf32> to vector<2x16xf32>
    %1245 = arith.mulf %1113, %1244 : vector<2x16xf32>
    %c1_326 = arith.constant 1 : index
    %c0_327 = arith.constant 0 : index
    %1246 = vector.load %arg6[%c1_326, %c0_327] : memref<12x16xf32, #tpu.memory_space<vmem>>, vector<1x16xf32>
    %1247 = vector.broadcast %1246 : vector<1x16xf32> to vector<2x16xf32>
    %1248 = arith.mulf %1116, %1247 : vector<2x16xf32>
    %c2_328 = arith.constant 2 : index
    %c0_329 = arith.constant 0 : index
    %1249 = vector.load %arg6[%c2_328, %c0_329] : memref<12x16xf32, #tpu.memory_space<vmem>>, vector<1x16xf32>
    %1250 = vector.broadcast %1249 : vector<1x16xf32> to vector<2x16xf32>
    %1251 = arith.mulf %1119, %1250 : vector<2x16xf32>
    %c3_330 = arith.constant 3 : index
    %c0_331 = arith.constant 0 : index
    %1252 = vector.load %arg6[%c3_330, %c0_331] : memref<12x16xf32, #tpu.memory_space<vmem>>, vector<1x16xf32>
    %1253 = vector.broadcast %1252 : vector<1x16xf32> to vector<2x16xf32>
    %1254 = arith.mulf %1122, %1253 : vector<2x16xf32>
    %1255 = arith.addf %1245, %1248 : vector<2x16xf32>
    %1256 = arith.addf %1251, %1254 : vector<2x16xf32>
    %1257 = arith.addf %1255, %1256 : vector<2x16xf32>
    %1258 = arith.addf %1257, %60 : vector<2x16xf32>
    %1259 = math.tanh %1258 : vector<2x16xf32>
    %1260 = vector.broadcast %0 : vector<1x16xf32> to vector<2x16xf32>
    %1261 = arith.mulf %1259, %1260 : vector<2x16xf32>
    %1262 = vector.broadcast %1 : vector<1x16xf32> to vector<2x16xf32>
    %1263 = arith.addf %1261, %1262 : vector<2x16xf32>
    %1264 = vector.extract_strided_slice %1263 {offsets = [0, 0], sizes = [2, 4], strides = [1, 1]} : vector<2x16xf32> to vector<2x4xf32>
    %1265 = vector.extract_strided_slice %1263 {offsets = [0, 4], sizes = [2, 4], strides = [1, 1]} : vector<2x16xf32> to vector<2x4xf32>
    %1266 = vector.extract_strided_slice %1263 {offsets = [0, 8], sizes = [2, 4], strides = [1, 1]} : vector<2x16xf32> to vector<2x4xf32>
    %1267 = vector.extract_strided_slice %1263 {offsets = [0, 12], sizes = [2, 4], strides = [1, 1]} : vector<2x16xf32> to vector<2x4xf32>
    %1268 = arith.mulf %1265, %1108 : vector<2x4xf32>
    %1269 = arith.mulf %1264, %1266 : vector<2x4xf32>
    %1270 = arith.addf %1268, %1269 : vector<2x4xf32>
    %1271 = math.tanh %1270 : vector<2x4xf32>
    %1272 = arith.mulf %1267, %1271 : vector<2x4xf32>
    %1273 = vector.extract_strided_slice %1272 {offsets = [0, 0], sizes = [2, 1], strides = [1, 1]} : vector<2x4xf32> to vector<2x1xf32>
    %1274 = vector.shape_cast %1273 : vector<2x1xf32> to vector<2x1xf32>
    %1275 = vector.broadcast %1274 : vector<2x1xf32> to vector<2x16xf32>
    %1276 = vector.extract_strided_slice %1272 {offsets = [0, 1], sizes = [2, 1], strides = [1, 1]} : vector<2x4xf32> to vector<2x1xf32>
    %1277 = vector.shape_cast %1276 : vector<2x1xf32> to vector<2x1xf32>
    %1278 = vector.broadcast %1277 : vector<2x1xf32> to vector<2x16xf32>
    %1279 = vector.extract_strided_slice %1272 {offsets = [0, 2], sizes = [2, 1], strides = [1, 1]} : vector<2x4xf32> to vector<2x1xf32>
    %1280 = vector.shape_cast %1279 : vector<2x1xf32> to vector<2x1xf32>
    %1281 = vector.broadcast %1280 : vector<2x1xf32> to vector<2x16xf32>
    %1282 = vector.extract_strided_slice %1272 {offsets = [0, 3], sizes = [2, 1], strides = [1, 1]} : vector<2x4xf32> to vector<2x1xf32>
    %1283 = vector.shape_cast %1282 : vector<2x1xf32> to vector<2x1xf32>
    %1284 = vector.broadcast %1283 : vector<2x1xf32> to vector<2x16xf32>
    %c0_332 = arith.constant 0 : index
    %c0_333 = arith.constant 0 : index
    %1285 = vector.load %arg5[%c0_332, %c0_333] : memref<8x16xf32, #tpu.memory_space<vmem>>, vector<1x16xf32>
    %1286 = vector.broadcast %1285 : vector<1x16xf32> to vector<2x16xf32>
    %1287 = arith.mulf %1275, %1286 : vector<2x16xf32>
    %c1_334 = arith.constant 1 : index
    %c0_335 = arith.constant 0 : index
    %1288 = vector.load %arg5[%c1_334, %c0_335] : memref<8x16xf32, #tpu.memory_space<vmem>>, vector<1x16xf32>
    %1289 = vector.broadcast %1288 : vector<1x16xf32> to vector<2x16xf32>
    %1290 = arith.mulf %1278, %1289 : vector<2x16xf32>
    %c2_336 = arith.constant 2 : index
    %c0_337 = arith.constant 0 : index
    %1291 = vector.load %arg5[%c2_336, %c0_337] : memref<8x16xf32, #tpu.memory_space<vmem>>, vector<1x16xf32>
    %1292 = vector.broadcast %1291 : vector<1x16xf32> to vector<2x16xf32>
    %1293 = arith.mulf %1281, %1292 : vector<2x16xf32>
    %c3_338 = arith.constant 3 : index
    %c0_339 = arith.constant 0 : index
    %1294 = vector.load %arg5[%c3_338, %c0_339] : memref<8x16xf32, #tpu.memory_space<vmem>>, vector<1x16xf32>
    %1295 = vector.broadcast %1294 : vector<1x16xf32> to vector<2x16xf32>
    %1296 = arith.mulf %1284, %1295 : vector<2x16xf32>
    %c0_340 = arith.constant 0 : index
    %c0_341 = arith.constant 0 : index
    %1297 = vector.load %arg7[%c0_340, %c0_341] : memref<2x16xf32, #tpu.memory_space<vmem>>, vector<1x16xf32>
    %c4_342 = arith.constant 4 : index
    %c0_343 = arith.constant 0 : index
    %1298 = vector.load %arg6[%c4_342, %c0_343] : memref<12x16xf32, #tpu.memory_space<vmem>>, vector<1x16xf32>
    %1299 = vector.broadcast %1298 : vector<1x16xf32> to vector<2x16xf32>
    %1300 = arith.mulf %1173, %1299 : vector<2x16xf32>
    %c5_344 = arith.constant 5 : index
    %c0_345 = arith.constant 0 : index
    %1301 = vector.load %arg6[%c5_344, %c0_345] : memref<12x16xf32, #tpu.memory_space<vmem>>, vector<1x16xf32>
    %1302 = vector.broadcast %1301 : vector<1x16xf32> to vector<2x16xf32>
    %1303 = arith.mulf %1176, %1302 : vector<2x16xf32>
    %c6_346 = arith.constant 6 : index
    %c0_347 = arith.constant 0 : index
    %1304 = vector.load %arg6[%c6_346, %c0_347] : memref<12x16xf32, #tpu.memory_space<vmem>>, vector<1x16xf32>
    %1305 = vector.broadcast %1304 : vector<1x16xf32> to vector<2x16xf32>
    %1306 = arith.mulf %1179, %1305 : vector<2x16xf32>
    %c7_348 = arith.constant 7 : index
    %c0_349 = arith.constant 0 : index
    %1307 = vector.load %arg6[%c7_348, %c0_349] : memref<12x16xf32, #tpu.memory_space<vmem>>, vector<1x16xf32>
    %1308 = vector.broadcast %1307 : vector<1x16xf32> to vector<2x16xf32>
    %1309 = arith.mulf %1182, %1308 : vector<2x16xf32>
    %1310 = arith.addf %1300, %1303 : vector<2x16xf32>
    %1311 = arith.addf %1306, %1309 : vector<2x16xf32>
    %1312 = arith.addf %1310, %1311 : vector<2x16xf32>
    %1313 = arith.addf %1287, %1290 : vector<2x16xf32>
    %1314 = arith.addf %1293, %1296 : vector<2x16xf32>
    %1315 = arith.addf %1313, %1314 : vector<2x16xf32>
    %1316 = vector.broadcast %1297 : vector<1x16xf32> to vector<2x16xf32>
    %1317 = arith.addf %1315, %1316 : vector<2x16xf32>
    %1318 = arith.addf %1312, %1317 : vector<2x16xf32>
    %1319 = math.tanh %1318 : vector<2x16xf32>
    %1320 = vector.broadcast %0 : vector<1x16xf32> to vector<2x16xf32>
    %1321 = arith.mulf %1319, %1320 : vector<2x16xf32>
    %1322 = vector.broadcast %1 : vector<1x16xf32> to vector<2x16xf32>
    %1323 = arith.addf %1321, %1322 : vector<2x16xf32>
    %1324 = vector.extract_strided_slice %1323 {offsets = [0, 0], sizes = [2, 4], strides = [1, 1]} : vector<2x16xf32> to vector<2x4xf32>
    %1325 = vector.extract_strided_slice %1323 {offsets = [0, 4], sizes = [2, 4], strides = [1, 1]} : vector<2x16xf32> to vector<2x4xf32>
    %1326 = vector.extract_strided_slice %1323 {offsets = [0, 8], sizes = [2, 4], strides = [1, 1]} : vector<2x16xf32> to vector<2x4xf32>
    %1327 = vector.extract_strided_slice %1323 {offsets = [0, 12], sizes = [2, 4], strides = [1, 1]} : vector<2x16xf32> to vector<2x4xf32>
    %1328 = arith.mulf %1325, %1168 : vector<2x4xf32>
    %1329 = arith.mulf %1324, %1326 : vector<2x4xf32>
    %1330 = arith.addf %1328, %1329 : vector<2x4xf32>
    %1331 = math.tanh %1330 : vector<2x4xf32>
    %1332 = arith.mulf %1327, %1331 : vector<2x4xf32>
    %1333 = vector.extract_strided_slice %1332 {offsets = [0, 0], sizes = [2, 1], strides = [1, 1]} : vector<2x4xf32> to vector<2x1xf32>
    %1334 = vector.shape_cast %1333 : vector<2x1xf32> to vector<2x1xf32>
    %1335 = vector.broadcast %1334 : vector<2x1xf32> to vector<2x16xf32>
    %1336 = vector.extract_strided_slice %1332 {offsets = [0, 1], sizes = [2, 1], strides = [1, 1]} : vector<2x4xf32> to vector<2x1xf32>
    %1337 = vector.shape_cast %1336 : vector<2x1xf32> to vector<2x1xf32>
    %1338 = vector.broadcast %1337 : vector<2x1xf32> to vector<2x16xf32>
    %1339 = vector.extract_strided_slice %1332 {offsets = [0, 2], sizes = [2, 1], strides = [1, 1]} : vector<2x4xf32> to vector<2x1xf32>
    %1340 = vector.shape_cast %1339 : vector<2x1xf32> to vector<2x1xf32>
    %1341 = vector.broadcast %1340 : vector<2x1xf32> to vector<2x16xf32>
    %1342 = vector.extract_strided_slice %1332 {offsets = [0, 3], sizes = [2, 1], strides = [1, 1]} : vector<2x4xf32> to vector<2x1xf32>
    %1343 = vector.shape_cast %1342 : vector<2x1xf32> to vector<2x1xf32>
    %1344 = vector.broadcast %1343 : vector<2x1xf32> to vector<2x16xf32>
    %c4_350 = arith.constant 4 : index
    %c0_351 = arith.constant 0 : index
    %1345 = vector.load %arg5[%c4_350, %c0_351] : memref<8x16xf32, #tpu.memory_space<vmem>>, vector<1x16xf32>
    %1346 = vector.broadcast %1345 : vector<1x16xf32> to vector<2x16xf32>
    %1347 = arith.mulf %1335, %1346 : vector<2x16xf32>
    %c5_352 = arith.constant 5 : index
    %c0_353 = arith.constant 0 : index
    %1348 = vector.load %arg5[%c5_352, %c0_353] : memref<8x16xf32, #tpu.memory_space<vmem>>, vector<1x16xf32>
    %1349 = vector.broadcast %1348 : vector<1x16xf32> to vector<2x16xf32>
    %1350 = arith.mulf %1338, %1349 : vector<2x16xf32>
    %c6_354 = arith.constant 6 : index
    %c0_355 = arith.constant 0 : index
    %1351 = vector.load %arg5[%c6_354, %c0_355] : memref<8x16xf32, #tpu.memory_space<vmem>>, vector<1x16xf32>
    %1352 = vector.broadcast %1351 : vector<1x16xf32> to vector<2x16xf32>
    %1353 = arith.mulf %1341, %1352 : vector<2x16xf32>
    %c7_356 = arith.constant 7 : index
    %c0_357 = arith.constant 0 : index
    %1354 = vector.load %arg5[%c7_356, %c0_357] : memref<8x16xf32, #tpu.memory_space<vmem>>, vector<1x16xf32>
    %1355 = vector.broadcast %1354 : vector<1x16xf32> to vector<2x16xf32>
    %1356 = arith.mulf %1344, %1355 : vector<2x16xf32>
    %c1_358 = arith.constant 1 : index
    %c0_359 = arith.constant 0 : index
    %1357 = vector.load %arg7[%c1_358, %c0_359] : memref<2x16xf32, #tpu.memory_space<vmem>>, vector<1x16xf32>
    %c8_360 = arith.constant 8 : index
    %c0_361 = arith.constant 0 : index
    %1358 = vector.load %arg6[%c8_360, %c0_361] : memref<12x16xf32, #tpu.memory_space<vmem>>, vector<1x16xf32>
    %1359 = vector.broadcast %1358 : vector<1x16xf32> to vector<2x16xf32>
    %1360 = arith.mulf %1233, %1359 : vector<2x16xf32>
    %c9_362 = arith.constant 9 : index
    %c0_363 = arith.constant 0 : index
    %1361 = vector.load %arg6[%c9_362, %c0_363] : memref<12x16xf32, #tpu.memory_space<vmem>>, vector<1x16xf32>
    %1362 = vector.broadcast %1361 : vector<1x16xf32> to vector<2x16xf32>
    %1363 = arith.mulf %1236, %1362 : vector<2x16xf32>
    %c10_364 = arith.constant 10 : index
    %c0_365 = arith.constant 0 : index
    %1364 = vector.load %arg6[%c10_364, %c0_365] : memref<12x16xf32, #tpu.memory_space<vmem>>, vector<1x16xf32>
    %1365 = vector.broadcast %1364 : vector<1x16xf32> to vector<2x16xf32>
    %1366 = arith.mulf %1239, %1365 : vector<2x16xf32>
    %c11_366 = arith.constant 11 : index
    %c0_367 = arith.constant 0 : index
    %1367 = vector.load %arg6[%c11_366, %c0_367] : memref<12x16xf32, #tpu.memory_space<vmem>>, vector<1x16xf32>
    %1368 = vector.broadcast %1367 : vector<1x16xf32> to vector<2x16xf32>
    %1369 = arith.mulf %1242, %1368 : vector<2x16xf32>
    %1370 = arith.addf %1360, %1363 : vector<2x16xf32>
    %1371 = arith.addf %1366, %1369 : vector<2x16xf32>
    %1372 = arith.addf %1370, %1371 : vector<2x16xf32>
    %1373 = arith.addf %1347, %1350 : vector<2x16xf32>
    %1374 = arith.addf %1353, %1356 : vector<2x16xf32>
    %1375 = arith.addf %1373, %1374 : vector<2x16xf32>
    %1376 = vector.broadcast %1357 : vector<1x16xf32> to vector<2x16xf32>
    %1377 = arith.addf %1375, %1376 : vector<2x16xf32>
    %1378 = arith.addf %1372, %1377 : vector<2x16xf32>
    %1379 = math.tanh %1378 : vector<2x16xf32>
    %1380 = vector.broadcast %0 : vector<1x16xf32> to vector<2x16xf32>
    %1381 = arith.mulf %1379, %1380 : vector<2x16xf32>
    %1382 = vector.broadcast %1 : vector<1x16xf32> to vector<2x16xf32>
    %1383 = arith.addf %1381, %1382 : vector<2x16xf32>
    %1384 = vector.extract_strided_slice %1383 {offsets = [0, 0], sizes = [2, 4], strides = [1, 1]} : vector<2x16xf32> to vector<2x4xf32>
    %1385 = vector.extract_strided_slice %1383 {offsets = [0, 4], sizes = [2, 4], strides = [1, 1]} : vector<2x16xf32> to vector<2x4xf32>
    %1386 = vector.extract_strided_slice %1383 {offsets = [0, 8], sizes = [2, 4], strides = [1, 1]} : vector<2x16xf32> to vector<2x4xf32>
    %1387 = vector.extract_strided_slice %1383 {offsets = [0, 12], sizes = [2, 4], strides = [1, 1]} : vector<2x16xf32> to vector<2x4xf32>
    %1388 = arith.mulf %1385, %1228 : vector<2x4xf32>
    %1389 = arith.mulf %1384, %1386 : vector<2x4xf32>
    %1390 = arith.addf %1388, %1389 : vector<2x4xf32>
    %1391 = math.tanh %1390 : vector<2x4xf32>
    %1392 = arith.mulf %1387, %1391 : vector<2x4xf32>
    %c0_368 = arith.constant 0 : index
    %c0_369 = arith.constant 0 : index
    %c0_370 = arith.constant 0 : index
    %1393 = vector.load %arg13[%c0_368, %c0_369, %c0_370] : memref<3x2x4xf32, #tpu.memory_space<vmem>>, vector<1x2x4xf32>
    %1394 = vector.shape_cast %1393 : vector<1x2x4xf32> to vector<2x4xf32>
    %1395 = vector.shape_cast %1272 : vector<2x4xf32> to vector<1x2x4xf32>
    tpu.vector_store %arg13[%c0_368, %c0_369, %c0_370], %1395 {strides = array<i32>} : memref<3x2x4xf32, #tpu.memory_space<vmem>>, vector<1x2x4xf32>,
    %c0_371 = arith.constant 0 : index
    %c0_372 = arith.constant 0 : index
    %c0_373 = arith.constant 0 : index
    %1396 = vector.load %arg14[%c0_371, %c0_372, %c0_373] : memref<3x2x4xf32, #tpu.memory_space<vmem>>, vector<1x2x4xf32>
    %1397 = vector.shape_cast %1396 : vector<1x2x4xf32> to vector<2x4xf32>
    %1398 = vector.shape_cast %1270 : vector<2x4xf32> to vector<1x2x4xf32>
    tpu.vector_store %arg14[%c0_371, %c0_372, %c0_373], %1398 {strides = array<i32>} : memref<3x2x4xf32, #tpu.memory_space<vmem>>, vector<1x2x4xf32>,
    %c1_374 = arith.constant 1 : index
    %c0_375 = arith.constant 0 : index
    %c0_376 = arith.constant 0 : index
    %1399 = vector.load %arg13[%c1_374, %c0_375, %c0_376] : memref<3x2x4xf32, #tpu.memory_space<vmem>>, vector<1x2x4xf32>
    %1400 = vector.shape_cast %1399 : vector<1x2x4xf32> to vector<2x4xf32>
    %1401 = vector.shape_cast %1332 : vector<2x4xf32> to vector<1x2x4xf32>
    tpu.vector_store %arg13[%c1_374, %c0_375, %c0_376], %1401 {strides = array<i32>} : memref<3x2x4xf32, #tpu.memory_space<vmem>>, vector<1x2x4xf32>,
    %c1_377 = arith.constant 1 : index
    %c0_378 = arith.constant 0 : index
    %c0_379 = arith.constant 0 : index
    %1402 = vector.load %arg14[%c1_377, %c0_378, %c0_379] : memref<3x2x4xf32, #tpu.memory_space<vmem>>, vector<1x2x4xf32>
    %1403 = vector.shape_cast %1402 : vector<1x2x4xf32> to vector<2x4xf32>
    %1404 = vector.shape_cast %1330 : vector<2x4xf32> to vector<1x2x4xf32>
    tpu.vector_store %arg14[%c1_377, %c0_378, %c0_379], %1404 {strides = array<i32>} : memref<3x2x4xf32, #tpu.memory_space<vmem>>, vector<1x2x4xf32>,
    %c2_380 = arith.constant 2 : index
    %c0_381 = arith.constant 0 : index
    %c0_382 = arith.constant 0 : index
    %1405 = vector.load %arg13[%c2_380, %c0_381, %c0_382] : memref<3x2x4xf32, #tpu.memory_space<vmem>>, vector<1x2x4xf32>
    %1406 = vector.shape_cast %1405 : vector<1x2x4xf32> to vector<2x4xf32>
    %1407 = vector.shape_cast %1392 : vector<2x4xf32> to vector<1x2x4xf32>
    tpu.vector_store %arg13[%c2_380, %c0_381, %c0_382], %1407 {strides = array<i32>} : memref<3x2x4xf32, #tpu.memory_space<vmem>>, vector<1x2x4xf32>,
    %c2_383 = arith.constant 2 : index
    %c0_384 = arith.constant 0 : index
    %c0_385 = arith.constant 0 : index
    %1408 = vector.load %arg14[%c2_383, %c0_384, %c0_385] : memref<3x2x4xf32, #tpu.memory_space<vmem>>, vector<1x2x4xf32>
    %1409 = vector.shape_cast %1408 : vector<1x2x4xf32> to vector<2x4xf32>
    %1410 = vector.shape_cast %1390 : vector<2x4xf32> to vector<1x2x4xf32>
    tpu.vector_store %arg14[%c2_383, %c0_384, %c0_385], %1410 {strides = array<i32>} : memref<3x2x4xf32, #tpu.memory_space<vmem>>, vector<1x2x4xf32>,
    %c0_386 = arith.constant 0 : index
    %c0_387 = arith.constant 0 : index
    %1411 = vector.load %arg10[%c0_386, %c0_387] : memref<1x4xf32, #tpu.memory_space<vmem>>, vector<1x4xf32>
    %c0_388 = arith.constant 0 : index
    %c0_389 = arith.constant 0 : index
    %1412 = vector.load %arg11[%c0_388, %c0_389] : memref<1x1xf32, #tpu.memory_space<vmem>>, vector<1x1xf32>
    %1413 = vector.broadcast %1411 : vector<1x4xf32> to vector<2x4xf32>
    %1414 = arith.mulf %1392, %1413 : vector<2x4xf32>
    %cst = arith.constant dense<0.000000e+00> : vector<2xf32>
    %1415 = vector.multi_reduction <add>, %1414, %cst [1] : vector<2x4xf32> to vector<2xf32>
    %1416 = vector.shape_cast %1415 : vector<2xf32> to vector<2x1xf32>
    %1417 = vector.broadcast %1412 : vector<1x1xf32> to vector<2x1xf32>
    %1418 = arith.addf %1416, %1417 : vector<2x1xf32>
    %cst_390 = arith.constant 9.99999993E-9 : f32
    %1419 = vector.broadcast %cst_390 : f32 to vector<2x1xf32>
    %1420 = arith.addf %1418, %1419 : vector<2x1xf32>
    %c0_391 = arith.constant 0 : index
    %c0_392 = arith.constant 0 : index
    %1421 = vector.load %arg12[%c0_391, %c0_392] : memref<2x1xf32, #tpu.memory_space<vmem>>, vector<2x1xf32>
    tpu.vector_store %arg12[%c0_391, %c0_392], %1420 {strides = array<i32>} : memref<2x1xf32, #tpu.memory_space<vmem>>, vector<2x1xf32>,
    return
  }
}

</mosaic_0001>

<llo_original>
// kernel: tpu_custom_call.1
$region0: #{tpu_custom_call.1}
  #allocation0 [shape = 'u32[]', space=smem, size = 0x4, offset = 0x4, fixed_abs, tag = 'smem constant byte address 0x4 - core index']
  #allocation1 [shape = 'u32[144,128]{1,0:T(1,128)}', space=vmem, size = 0x12000, scoped, tag = 'internal scratch']
  #allocation2 [shape = 'f32[1,1]{1,0:T(1,128)S(1)}', space=vmem, size = 0x200, scoped, tag = 'scoped memory for tpu_custom_call.1']
  %s0 = inlined_call_operand.vmem [shape: f32[2,8], index: 0, kind: input, shape index: {}]
  %s1 = inlined_call_operand.hbm [shape: f32[3,2,4], index: 1, kind: input, shape index: {}]
  %s2 = inlined_call_operand.hbm [shape: f32[3,2,4], index: 2, kind: input, shape index: {}]
  %s3 = inlined_call_operand.hbm [shape: f32[1,16], index: 3, kind: input, shape index: {}]
  %s4 = inlined_call_operand.hbm [shape: f32[1,16], index: 4, kind: input, shape index: {}]
  %s5 = inlined_call_operand.vmem [shape: f32[8,16], index: 5, kind: input, shape index: {}]
  %s6 = inlined_call_operand.hbm [shape: f32[12,16], index: 6, kind: input, shape index: {}]
  %s7 = inlined_call_operand.vmem [shape: f32[2,16], index: 7, kind: input, shape index: {}]
  %s8 = inlined_call_operand.vmem [shape: f32[1,16], index: 8, kind: input, shape index: {}]
  %s9 = inlined_call_operand.vmem [shape: f32[1,16], index: 9, kind: input, shape index: {}]
  %s10 = inlined_call_operand.vmem [shape: f32[1,4], index: 10, kind: input, shape index: {}]
  %s11 = inlined_call_operand.<no memory space> [shape: f32[1,1], index: 11, kind: input, shape index: {}]
  %s12 = inlined_call_operand.vmem [shape: f32[2,1], index: 12, kind: output, shape index: {0}]
  %s13 = inlined_call_operand.hbm [shape: f32[3,2,4], index: 13, kind: output, shape index: {1}]
  %s14 = inlined_call_operand.hbm [shape: f32[3,2,4], index: 14, kind: output, shape index: {2}]
  %15 = xla_tuple %s12, %s13, %s14
  %s16 = sld [smem:[#allocation0]]
  $region94: #{tpu_custom_call.1} parent=0
    _
  %s18 = ssub.s32 1, %s16
  %s19 = scalar_select 0, %s18, %s16
  %v20 = vstv %s11
  %21 = vst [vmem:[#allocation2] sm:$0x1] %v20
  $region1: #{tpu_custom_call.1} parent=0
    #allocation3 [shape = 'u8[3072]{0}', space=vmem, size = 0xc00, scoped, tag = 'input window, operand 1, single buffered']
    #allocation4 [shape = 's32[1]{0}', space=sflag, size = 0x4, scoped, tag = 'scoped memory for tpu_custom_call.1']
    #allocation5 [shape = 's32[1]{0}', space=sflag, size = 0x4, scoped, tag = 'scoped memory for tpu_custom_call.1']
    #allocation6 [shape = 'u8[3072]{0}', space=vmem, size = 0xc00, scoped, tag = 'input window, operand 2, single buffered']
    #allocation7 [shape = 's32[1]{0}', space=sflag, size = 0x4, scoped, tag = 'scoped memory for tpu_custom_call.1']
    #allocation8 [shape = 'u8[512]{0}', space=vmem, size = 0x400, scoped, tag = 'input window, operand 3, single buffered']
    #allocation9 [shape = 'u8[512]{0}', space=vmem, size = 0x400, scoped, tag = 'input window, operand 4, single buffered']
    #allocation10 [shape = 's32[1]{0}', space=sflag, size = 0x4, scoped, tag = 'scoped memory for tpu_custom_call.1']
    #allocation11 [shape = 'u8[8192]{0}', space=vmem, size = 0x2000, scoped, tag = 'input window, operand 6, single buffered']
    #allocation12 [shape = 'u8[3072]{0}', space=vmem, size = 0xc00, scoped, tag = 'output window, operand 1, single buffered']
    #allocation13 [shape = 'u8[3072]{0}', space=vmem, size = 0xc00, scoped, tag = 'output window, operand 2, single buffered']
    #allocation14 [shape = 's32[1]{0}', space=sflag, size = 0x4, scoped, tag = 'scoped memory for tpu_custom_call.1']
    %22 = vsyncpa [#allocation4], 0
    %23 = vsyncpa [#allocation7], 0
    %24 = vsyncpa [#allocation10], 0
    %25 = vsyncpa [#allocation5], 0
    %26 = vsyncpa [#allocation14], 0
    // Predicated region
    $region2: #{tpu_custom_call.1} parent=1 // pred_check
      _
    $region3: #{tpu_custom_call.1} parent=1 // pred_check_branch
      %28 = sbr.rel (0) target = $region5
    $region4: #{tpu_custom_call.1} parent=1 // pred_region
      _
    $region5: #{tpu_custom_call.1} parent=1 // pred_fallthru
      _
    // Predicated region
    $region6: #{tpu_custom_call.1} parent=1 // pred_check
      _
    $region7: #{tpu_custom_call.1} parent=1 // pred_check_branch
      %30 = sbr.rel (0) target = $region9
    $region8: #{tpu_custom_call.1} parent=1 // pred_region
      %s32 = ssub.s32 96, 96
      %33 = vsyncadd [#allocation4], %s32
      %s34 = sshll.u32 [#allocation3], 4
      %s35 = int_to_ptr.vmem [resolvable:$true] %s34
      %40 = dma.hbm_to_vmem [thread:$0]  %s1, 96, %s35, [#allocation4], 32, 32, 2
    $region9: #{tpu_custom_call.1} parent=1 // pred_fallthru
      _
    // Predicated region
    $region10: #{tpu_custom_call.1} parent=1 // pred_check
      _
    $region11: #{tpu_custom_call.1} parent=1 // pred_check_branch
      %42 = sbr.rel (0) target = $region13
    $region12: #{tpu_custom_call.1} parent=1 // pred_region
      %s44 = ssub.s32 96, 96
      %45 = vsyncadd [#allocation7], %s44
      %s46 = sshll.u32 [#allocation6], 4
      %s47 = int_to_ptr.vmem [resolvable:$true] %s46
      %52 = dma.hbm_to_vmem [thread:$0]  %s2, 96, %s47, [#allocation7], 32, 32, 2
    $region13: #{tpu_custom_call.1} parent=1 // pred_fallthru
      _
    // Predicated region
    $region14: #{tpu_custom_call.1} parent=1 // pred_check
      _
    $region15: #{tpu_custom_call.1} parent=1 // pred_check_branch
      %54 = sbr.rel (0) target = $region17
    $region16: #{tpu_custom_call.1} parent=1 // pred_region
      %s56 = ssub.s32 16, 16
      %57 = vsyncadd [#allocation7], %s56
      %s59 = sshll.u32 [#allocation8], 4
      %s60 = int_to_ptr.vmem [resolvable:$true] %s59
      %62 = dma.hbm_to_vmem [thread:$0]  %s3, 16, %s60, [#allocation7]
    $region17: #{tpu_custom_call.1} parent=1 // pred_fallthru
      _
    // Predicated region
    $region18: #{tpu_custom_call.1} parent=1 // pred_check
      _
    $region19: #{tpu_custom_call.1} parent=1 // pred_check_branch
      %64 = sbr.rel (0) target = $region21
    $region20: #{tpu_custom_call.1} parent=1 // pred_region
      %s66 = ssub.s32 16, 16
      %67 = vsyncadd [#allocation10], %s66
      %s69 = sshll.u32 [#allocation9], 4
      %s70 = int_to_ptr.vmem [resolvable:$true] %s69
      %72 = dma.hbm_to_vmem [thread:$0]  %s4, 16, %s70, [#allocation10]
    $region21: #{tpu_custom_call.1} parent=1 // pred_fallthru
      _
    // Predicated region
    $region22: #{tpu_custom_call.1} parent=1 // pred_check
      _
    $region23: #{tpu_custom_call.1} parent=1 // pred_check_branch
      %74 = sbr.rel (0) target = $region25
    $region24: #{tpu_custom_call.1} parent=1 // pred_region
      _
    $region25: #{tpu_custom_call.1} parent=1 // pred_fallthru
      _
    // Predicated region
    $region26: #{tpu_custom_call.1} parent=1 // pred_check
      _
    $region27: #{tpu_custom_call.1} parent=1 // pred_check_branch
      %76 = sbr.rel (0) target = $region29
    $region28: #{tpu_custom_call.1} parent=1 // pred_region
      %s78 = ssub.s32 256, 256
      %79 = vsyncadd [#allocation10], %s78
      %s80 = sshll.u32 [#allocation11], 4
      %s81 = int_to_ptr.vmem [resolvable:$true] %s80
      %86 = dma.hbm_to_vmem [thread:$0]  %s6, 256, %s81, [#allocation10], 128, 128, 8
    $region29: #{tpu_custom_call.1} parent=1 // pred_fallthru
      _
    // Predicated region
    $region30: #{tpu_custom_call.1} parent=1 // pred_check
      _
    $region31: #{tpu_custom_call.1} parent=1 // pred_check_branch
      %88 = sbr.rel (0) target = $region33
    $region32: #{tpu_custom_call.1} parent=1 // pred_region
      _
    $region33: #{tpu_custom_call.1} parent=1 // pred_fallthru
      _
    // Predicated region
    $region34: #{tpu_custom_call.1} parent=1 // pred_check
      _
    $region35: #{tpu_custom_call.1} parent=1 // pred_check_branch
      %90 = sbr.rel (0) target = $region37
    $region36: #{tpu_custom_call.1} parent=1 // pred_region
      _
    $region37: #{tpu_custom_call.1} parent=1 // pred_fallthru
      _
    // Predicated region
    $region38: #{tpu_custom_call.1} parent=1 // pred_check
      _
    $region39: #{tpu_custom_call.1} parent=1 // pred_check_branch
      %92 = sbr.rel (0) target = $region41
    $region40: #{tpu_custom_call.1} parent=1 // pred_region
      _
    $region41: #{tpu_custom_call.1} parent=1 // pred_fallthru
      _
    // Predicated region
    $region42: #{tpu_custom_call.1} parent=1 // pred_check
      _
    $region43: #{tpu_custom_call.1} parent=1 // pred_check_branch
      %94 = sbr.rel (0) target = $region45
    $region44: #{tpu_custom_call.1} parent=1 // pred_region
      _
    $region45: #{tpu_custom_call.1} parent=1 // pred_fallthru
      _
    // Predicated region
    $region46: #{tpu_custom_call.1} parent=1 // pred_check
      _
    $region47: #{tpu_custom_call.1} parent=1 // pred_check_branch
      %96 = sbr.rel (0) target = $region49
    $region48: #{tpu_custom_call.1} parent=1 // pred_region
      _
    $region49: #{tpu_custom_call.1} parent=1 // pred_fallthru
      _
    // Predicated region
    $region50: #{tpu_custom_call.1} parent=1 // pred_check
      _
    $region51: #{tpu_custom_call.1} parent=1 // pred_check_branch
      %98 = sbr.rel (0) target = $region53
    $region52: #{tpu_custom_call.1} parent=1 // pred_region
      %99 = dma.done [#allocation4], 96
    $region53: #{tpu_custom_call.1} parent=1 // pred_fallthru
      _
    // Predicated region
    $region54: #{tpu_custom_call.1} parent=1 // pred_check
      _
    $region55: #{tpu_custom_call.1} parent=1 // pred_check_branch
      %101 = sbr.rel (0) target = $region57
    $region56: #{tpu_custom_call.1} parent=1 // pred_region
      %102 = dma.done [#allocation7], 96
    $region57: #{tpu_custom_call.1} parent=1 // pred_fallthru
      _
    // Predicated region
    $region58: #{tpu_custom_call.1} parent=1 // pred_check
      _
    $region59: #{tpu_custom_call.1} parent=1 // pred_check_branch
      %104 = sbr.rel (0) target = $region61
    $region60: #{tpu_custom_call.1} parent=1 // pred_region
      %105 = dma.done [#allocation7], 16
    $region61: #{tpu_custom_call.1} parent=1 // pred_fallthru
      _
    // Predicated region
    $region62: #{tpu_custom_call.1} parent=1 // pred_check
      _
    $region63: #{tpu_custom_call.1} parent=1 // pred_check_branch
      %107 = sbr.rel (0) target = $region65
    $region64: #{tpu_custom_call.1} parent=1 // pred_region
      %108 = dma.done [#allocation10], 16
    $region65: #{tpu_custom_call.1} parent=1 // pred_fallthru
      _
    // Predicated region
    $region66: #{tpu_custom_call.1} parent=1 // pred_check
      _
    $region67: #{tpu_custom_call.1} parent=1 // pred_check_branch
      %110 = sbr.rel (0) target = $region69
    $region68: #{tpu_custom_call.1} parent=1 // pred_region
      %111 = dma.done [#allocation10], 256
    $region69: #{tpu_custom_call.1} parent=1 // pred_fallthru
      _
    %v112 = vld [vmem:[%s8] sm:$0x1]
    %v113 = vld [vmem:[%s9] sm:$0x1]
    %v114 = vld [vmem:[%s0] sm:$0x3]
    %v115 = vld [vmem:[#allocation8] sm:$0x1]
    %v116 = vld [vmem:[#allocation9] sm:$0x1]
    %118 = vset.pattern.permute.xlu0 0
    %119 = vperm.xlu0 %118, %v114
    %v120 = vpop.permute.xlu0 %119
    %v123 = vlaneseq
    %v124 = vshrl.u32 %v123, 7
    %v125 = vsub.s32 0, %v124
    %v126 = vrot.slane %v115, %v125
    %v128 = vmul.f32 %v120, %v126
    %v130 = vlaneseq
    %v131 = vshrl.u32 %v130, 7
    %v132 = vsub.s32 0, %v131
    %v133 = vrot.slane %v116, %v132
    %v135 = vadd.f32 %v133, %v128
    %136 = vset.pattern.permute.xlu0 1
    %137 = vperm.xlu0 %136, %v114
    %v138 = vpop.permute.xlu0 %137
    %v140 = vmul.f32 %v138, %v126
    %v141 = vadd.f32 %v133, %v140
    %142 = vset.pattern.permute.xlu0 2
    %143 = vperm.xlu0 %142, %v114
    %v144 = vpop.permute.xlu0 %143
    %v146 = vmul.f32 %v144, %v126
    %v147 = vadd.f32 %v133, %v146
    %148 = vset.pattern.permute.xlu0 3
    %149 = vperm.xlu0 %148, %v114
    %v150 = vpop.permute.xlu0 %149
    %v152 = vmul.f32 %v150, %v126
    %v153 = vadd.f32 %v133, %v152
    %154 = vset.pattern.permute.xlu0 4
    %155 = vperm.xlu0 %154, %v114
    %v156 = vpop.permute.xlu0 %155
    %v158 = vmul.f32 %v156, %v126
    %v159 = vadd.f32 %v133, %v158
    %160 = vset.pattern.permute.xlu0 5
    %161 = vperm.xlu0 %160, %v114
    %v162 = vpop.permute.xlu0 %161
    %v164 = vmul.f32 %v162, %v126
    %v165 = vadd.f32 %v133, %v164
    %166 = vset.pattern.permute.xlu0 6
    %167 = vperm.xlu0 %166, %v114
    %v168 = vpop.permute.xlu0 %167
    %v170 = vmul.f32 %v168, %v126
    %v171 = vadd.f32 %v133, %v170
    %172 = vset.pattern.permute.xlu0 7
    %173 = vperm.xlu0 %172, %v114
    %v174 = vpop.permute.xlu0 %173
    %v176 = vmul.f32 %v174, %v126
    %v177 = vadd.f32 %v133, %v176
    %v178 = vld [vmem:[#allocation3] sm:$0x3]
    %s179 = scalar_lea.vmem [#allocation3], 2
    %v180 = vld [vmem:[%s179] sm:$0x3]
    %s181 = scalar_lea.vmem [#allocation3], 4
    %v182 = vld [vmem:[%s181] sm:$0x3]
    %v183 = vld [vmem:[#allocation6] sm:$0x3]
    %s184 = scalar_lea.vmem [#allocation6], 2
    %v185 = vld [vmem:[%s184] sm:$0x3]
    %s186 = scalar_lea.vmem [#allocation6], 4
    %v187 = vld [vmem:[%s186] sm:$0x3]
    %189 = vset.pattern.permute.xlu0 0
    %190 = vperm.xlu0 %189, %v178
    %v191 = vpop.permute.xlu0 %190
    %193 = vset.pattern.permute.xlu0 1
    %194 = vperm.xlu0 %193, %v178
    %v195 = vpop.permute.xlu0 %194
    %197 = vset.pattern.permute.xlu0 2
    %198 = vperm.xlu0 %197, %v178
    %v199 = vpop.permute.xlu0 %198
    %201 = vset.pattern.permute.xlu0 3
    %202 = vperm.xlu0 %201, %v178
    %v203 = vpop.permute.xlu0 %202
    %206 = vset.pattern.permute.xlu0 0
    %207 = vperm.xlu0 %206, %v180
    %v208 = vpop.permute.xlu0 %207
    %210 = vset.pattern.permute.xlu0 1
    %211 = vperm.xlu0 %210, %v180
    %v212 = vpop.permute.xlu0 %211
    %214 = vset.pattern.permute.xlu0 2
    %215 = vperm.xlu0 %214, %v180
    %v216 = vpop.permute.xlu0 %215
    %218 = vset.pattern.permute.xlu0 3
    %219 = vperm.xlu0 %218, %v180
    %v220 = vpop.permute.xlu0 %219
    %223 = vset.pattern.permute.xlu0 0
    %224 = vperm.xlu0 %223, %v182
    %v225 = vpop.permute.xlu0 %224
    %227 = vset.pattern.permute.xlu0 1
    %228 = vperm.xlu0 %227, %v182
    %v229 = vpop.permute.xlu0 %228
    %231 = vset.pattern.permute.xlu0 2
    %232 = vperm.xlu0 %231, %v182
    %v233 = vpop.permute.xlu0 %232
    %235 = vset.pattern.permute.xlu0 3
    %236 = vperm.xlu0 %235, %v182
    %v237 = vpop.permute.xlu0 %236
    %v239 = vld [vmem:[#allocation11] sm:$0x1]
    %v240 = vlaneseq
    %v241 = vshrl.u32 %v240, 7
    %v242 = vsub.s32 0, %v241
    %v243 = vrot.slane %v239, %v242
    %v244 = vmul.f32 %v191, %v243
    %v245 = vld [vmem:[#allocation11 + $0x1] sm:$0x1]
    %v246 = vlaneseq
    %v247 = vshrl.u32 %v246, 7
    %v248 = vsub.s32 0, %v247
    %v249 = vrot.slane %v245, %v248
    %v250 = vmul.f32 %v195, %v249
    %v251 = vld [vmem:[#allocation11 + $0x2] sm:$0x1]
    %v252 = vlaneseq
    %v253 = vshrl.u32 %v252, 7
    %v254 = vsub.s32 0, %v253
    %v255 = vrot.slane %v251, %v254
    %v256 = vmul.f32 %v199, %v255
    %v257 = vld [vmem:[#allocation11 + $0x3] sm:$0x1]
    %v258 = vlaneseq
    %v259 = vshrl.u32 %v258, 7
    %v260 = vsub.s32 0, %v259
    %v261 = vrot.slane %v257, %v260
    %v262 = vmul.f32 %v203, %v261
    %v263 = vadd.f32 %v244, %v250
    %v264 = vadd.f32 %v256, %v262
    %v265 = vadd.f32 %v263, %v264
    %v266 = vadd.f32 %v265, %v135
    %v267 = vtanh.pop %v266
    %v269 = vlaneseq
    %v270 = vshrl.u32 %v269, 7
    %v271 = vsub.s32 0, %v270
    %v272 = vrot.slane %v112, %v271
    %v274 = vmul.f32 %v267, %v272
    %v276 = vlaneseq
    %v277 = vshrl.u32 %v276, 7
    %v278 = vsub.s32 0, %v277
    %v279 = vrot.slane %v113, %v278
    %v281 = vadd.f32 %v274, %v279
    %283 = vrot.lane.b32.xlu0 %v183, 4
    %v284 = vpop.permute.xlu0 %283
    %v286 = vmul.f32 %v281, %v284
    %288 = vrot.lane.b32.xlu0 %v281, 120
    %v289 = vpop.permute.xlu0 %288
    %v291 = vmul.f32 %v281, %v289
    %293 = vrot.lane.b32.xlu0 %v291, 4
    %v294 = vpop.permute.xlu0 %293
    %v296 = vadd.f32 %v286, %v294
    %v297 = vtanh.pop %v296
    %299 = vrot.lane.b32.xlu0 %v297, 8
    %v300 = vpop.permute.xlu0 %299
    %v302 = vmul.f32 %v281, %v300
    %304 = vset.pattern.permute.xlu0 12
    %305 = vperm.xlu0 %304, %v302
    %v306 = vpop.permute.xlu0 %305
    %308 = vset.pattern.permute.xlu0 13
    %309 = vperm.xlu0 %308, %v302
    %v310 = vpop.permute.xlu0 %309
    %312 = vset.pattern.permute.xlu0 14
    %313 = vperm.xlu0 %312, %v302
    %v314 = vpop.permute.xlu0 %313
    %316 = vset.pattern.permute.xlu0 15
    %317 = vperm.xlu0 %316, %v302
    %v318 = vpop.permute.xlu0 %317
    %v320 = vld [vmem:[%s5] sm:$0x1]
    %v321 = vlaneseq
    %v322 = vshrl.u32 %v321, 7
    %v323 = vsub.s32 0, %v322
    %v324 = vrot.slane %v320, %v323
    %v325 = vmul.f32 %v306, %v324
    %v326 = vld [vmem:[%s5 + $0x1] sm:$0x1]
    %v327 = vlaneseq
    %v328 = vshrl.u32 %v327, 7
    %v329 = vsub.s32 0, %v328
    %v330 = vrot.slane %v326, %v329
    %v331 = vmul.f32 %v310, %v330
    %v332 = vld [vmem:[%s5 + $0x2] sm:$0x1]
    %v333 = vlaneseq
    %v334 = vshrl.u32 %v333, 7
    %v335 = vsub.s32 0, %v334
    %v336 = vrot.slane %v332, %v335
    %v337 = vmul.f32 %v314, %v336
    %v338 = vld [vmem:[%s5 + $0x3] sm:$0x1]
    %v339 = vlaneseq
    %v340 = vshrl.u32 %v339, 7
    %v341 = vsub.s32 0, %v340
    %v342 = vrot.slane %v338, %v341
    %v343 = vmul.f32 %v318, %v342
    %v344 = vld [vmem:[%s7] sm:$0x1]
    %v345 = vld [vmem:[#allocation11 + $0x4] sm:$0x1]
    %v346 = vlaneseq
    %v347 = vshrl.u32 %v346, 7
    %v348 = vsub.s32 0, %v347
    %v349 = vrot.slane %v345, %v348
    %v350 = vmul.f32 %v208, %v349
    %v351 = vld [vmem:[#allocation11 + $0x5] sm:$0x1]
    %v352 = vlaneseq
    %v353 = vshrl.u32 %v352, 7
    %v354 = vsub.s32 0, %v353
    %v355 = vrot.slane %v351, %v354
    %v356 = vmul.f32 %v212, %v355
    %v357 = vld [vmem:[#allocation11 + $0x6] sm:$0x1]
    %v358 = vlaneseq
    %v359 = vshrl.u32 %v358, 7
    %v360 = vsub.s32 0, %v359
    %v361 = vrot.slane %v357, %v360
    %v362 = vmul.f32 %v216, %v361
    %v363 = vld [vmem:[#allocation11 + $0x7] sm:$0x1]
    %v364 = vlaneseq
    %v365 = vshrl.u32 %v364, 7
    %v366 = vsub.s32 0, %v365
    %v367 = vrot.slane %v363, %v366
    %v368 = vmul.f32 %v220, %v367
    %v369 = vadd.f32 %v350, %v356
    %v370 = vadd.f32 %v362, %v368
    %v371 = vadd.f32 %v369, %v370
    %v372 = vadd.f32 %v325, %v331
    %v373 = vadd.f32 %v337, %v343
    %v374 = vadd.f32 %v372, %v373
    %v375 = vlaneseq
    %v376 = vshrl.u32 %v375, 7
    %v377 = vsub.s32 0, %v376
    %v378 = vrot.slane %v344, %v377
    %v379 = vadd.f32 %v374, %v378
    %v380 = vadd.f32 %v371, %v379
    %v381 = vtanh.pop %v380
    %v382 = vmul.f32 %v381, %v272
    %v383 = vadd.f32 %v382, %v279
    %385 = vrot.lane.b32.xlu0 %v185, 4
    %v386 = vpop.permute.xlu0 %385
    %v388 = vmul.f32 %v383, %v386
    %390 = vrot.lane.b32.xlu0 %v383, 120
    %v391 = vpop.permute.xlu0 %390
    %v393 = vmul.f32 %v383, %v391
    %395 = vrot.lane.b32.xlu0 %v393, 4
    %v396 = vpop.permute.xlu0 %395
    %v398 = vadd.f32 %v388, %v396
    %v399 = vtanh.pop %v398
    %401 = vrot.lane.b32.xlu0 %v399, 8
    %v402 = vpop.permute.xlu0 %401
    %v404 = vmul.f32 %v383, %v402
    %406 = vset.pattern.permute.xlu0 12
    %407 = vperm.xlu0 %406, %v404
    %v408 = vpop.permute.xlu0 %407
    %410 = vset.pattern.permute.xlu0 13
    %411 = vperm.xlu0 %410, %v404
    %v412 = vpop.permute.xlu0 %411
    %414 = vset.pattern.permute.xlu0 14
    %415 = vperm.xlu0 %414, %v404
    %v416 = vpop.permute.xlu0 %415
    %418 = vset.pattern.permute.xlu0 15
    %419 = vperm.xlu0 %418, %v404
    %v420 = vpop.permute.xlu0 %419
    %v422 = vld [vmem:[%s5 + $0x4] sm:$0x1]
    %v423 = vlaneseq
    %v424 = vshrl.u32 %v423, 7
    %v425 = vsub.s32 0, %v424
    %v426 = vrot.slane %v422, %v425
    %v427 = vmul.f32 %v408, %v426
    %v428 = vld [vmem:[%s5 + $0x5] sm:$0x1]
    %v429 = vlaneseq
    %v430 = vshrl.u32 %v429, 7
    %v431 = vsub.s32 0, %v430
    %v432 = vrot.slane %v428, %v431
    %v433 = vmul.f32 %v412, %v432
    %v434 = vld [vmem:[%s5 + $0x6] sm:$0x1]
    %v435 = vlaneseq
    %v436 = vshrl.u32 %v435, 7
    %v437 = vsub.s32 0, %v436
    %v438 = vrot.slane %v434, %v437
    %v439 = vmul.f32 %v416, %v438
    %v440 = vld [vmem:[%s5 + $0x7] sm:$0x1]
    %v441 = vlaneseq
    %v442 = vshrl.u32 %v441, 7
    %v443 = vsub.s32 0, %v442
    %v444 = vrot.slane %v440, %v443
    %v445 = vmul.f32 %v420, %v444
    %v446 = vld [vmem:[%s7 + $0x1] sm:$0x1]
    %v447 = vld [vmem:[#allocation11 + $0x8] sm:$0x1]
    %v448 = vlaneseq
    %v449 = vshrl.u32 %v448, 7
    %v450 = vsub.s32 0, %v449
    %v451 = vrot.slane %v447, %v450
    %v452 = vmul.f32 %v225, %v451
    %v453 = vld [vmem:[#allocation11 + $0x9] sm:$0x1]
    %v454 = vlaneseq
    %v455 = vshrl.u32 %v454, 7
    %v456 = vsub.s32 0, %v455
    %v457 = vrot.slane %v453, %v456
    %v458 = vmul.f32 %v229, %v457
    %v459 = vld [vmem:[#allocation11 + $0xa] sm:$0x1]
    %v460 = vlaneseq
    %v461 = vshrl.u32 %v460, 7
    %v462 = vsub.s32 0, %v461
    %v463 = vrot.slane %v459, %v462
    %v464 = vmul.f32 %v233, %v463
    %v465 = vld [vmem:[#allocation11 + $0xb] sm:$0x1]
    %v466 = vlaneseq
    %v467 = vshrl.u32 %v466, 7
    %v468 = vsub.s32 0, %v467
    %v469 = vrot.slane %v465, %v468
    %v470 = vmul.f32 %v237, %v469
    %v471 = vadd.f32 %v452, %v458
    %v472 = vadd.f32 %v464, %v470
    %v473 = vadd.f32 %v471, %v472
    %v474 = vadd.f32 %v427, %v433
    %v475 = vadd.f32 %v439, %v445
    %v476 = vadd.f32 %v474, %v475
    %v477 = vlaneseq
    %v478 = vshrl.u32 %v477, 7
    %v479 = vsub.s32 0, %v478
    %v480 = vrot.slane %v446, %v479
    %v481 = vadd.f32 %v476, %v480
    %v482 = vadd.f32 %v473, %v481
    %v483 = vtanh.pop %v482
    %v484 = vmul.f32 %v483, %v272
    %v485 = vadd.f32 %v484, %v279
    %487 = vrot.lane.b32.xlu0 %v187, 4
    %v488 = vpop.permute.xlu0 %487
    %v490 = vmul.f32 %v485, %v488
    %492 = vrot.lane.b32.xlu0 %v485, 120
    %v493 = vpop.permute.xlu0 %492
    %v495 = vmul.f32 %v485, %v493
    %497 = vrot.lane.b32.xlu0 %v495, 4
    %v498 = vpop.permute.xlu0 %497
    %v500 = vadd.f32 %v490, %v498
    %v501 = vtanh.pop %v500
    %503 = vrot.lane.b32.xlu0 %v501, 8
    %v504 = vpop.permute.xlu0 %503
    %v506 = vmul.f32 %v485, %v504
    %508 = vset.pattern.permute.xlu0 12
    %509 = vperm.xlu0 %508, %v506
    %v510 = vpop.permute.xlu0 %509
    %512 = vset.pattern.permute.xlu0 13
    %513 = vperm.xlu0 %512, %v506
    %v514 = vpop.permute.xlu0 %513
    %516 = vset.pattern.permute.xlu0 14
    %517 = vperm.xlu0 %516, %v506
    %v518 = vpop.permute.xlu0 %517
    %520 = vset.pattern.permute.xlu0 15
    %521 = vperm.xlu0 %520, %v506
    %v522 = vpop.permute.xlu0 %521
    %v524 = vmul.f32 %v306, %v243
    %v525 = vmul.f32 %v310, %v249
    %v526 = vmul.f32 %v314, %v255
    %v527 = vmul.f32 %v318, %v261
    %v528 = vadd.f32 %v524, %v525
    %v529 = vadd.f32 %v526, %v527
    %v530 = vadd.f32 %v528, %v529
    %v531 = vadd.f32 %v530, %v141
    %v532 = vtanh.pop %v531
    %v533 = vmul.f32 %v532, %v272
    %v534 = vadd.f32 %v533, %v279
    %v535 = vmul.f32 %v534, %v296
    %537 = vrot.lane.b32.xlu0 %v534, 120
    %v538 = vpop.permute.xlu0 %537
    %v540 = vmul.f32 %v534, %v538
    %542 = vrot.lane.b32.xlu0 %v540, 4
    %v543 = vpop.permute.xlu0 %542
    %v545 = vadd.f32 %v535, %v543
    %v546 = vtanh.pop %v545
    %548 = vrot.lane.b32.xlu0 %v546, 8
    %v549 = vpop.permute.xlu0 %548
    %v551 = vmul.f32 %v534, %v549
    %553 = vset.pattern.permute.xlu0 12
    %554 = vperm.xlu0 %553, %v551
    %v555 = vpop.permute.xlu0 %554
    %557 = vset.pattern.permute.xlu0 13
    %558 = vperm.xlu0 %557, %v551
    %v559 = vpop.permute.xlu0 %558
    %561 = vset.pattern.permute.xlu0 14
    %562 = vperm.xlu0 %561, %v551
    %v563 = vpop.permute.xlu0 %562
    %565 = vset.pattern.permute.xlu0 15
    %566 = vperm.xlu0 %565, %v551
    %v567 = vpop.permute.xlu0 %566
    %v569 = vmul.f32 %v555, %v324
    %v570 = vmul.f32 %v559, %v330
    %v571 = vmul.f32 %v563, %v336
    %v572 = vmul.f32 %v567, %v342
    %v573 = vmul.f32 %v408, %v349
    %v574 = vmul.f32 %v412, %v355
    %v575 = vmul.f32 %v416, %v361
    %v576 = vmul.f32 %v420, %v367
    %v577 = vadd.f32 %v573, %v574
    %v578 = vadd.f32 %v575, %v576
    %v579 = vadd.f32 %v577, %v578
    %v580 = vadd.f32 %v569, %v570
    %v581 = vadd.f32 %v571, %v572
    %v582 = vadd.f32 %v580, %v581
    %v583 = vadd.f32 %v582, %v378
    %v584 = vadd.f32 %v579, %v583
    %v585 = vtanh.pop %v584
    %v586 = vmul.f32 %v585, %v272
    %v587 = vadd.f32 %v586, %v279
    %v588 = vmul.f32 %v587, %v398
    %590 = vrot.lane.b32.xlu0 %v587, 120
    %v591 = vpop.permute.xlu0 %590
    %v593 = vmul.f32 %v587, %v591
    %595 = vrot.lane.b32.xlu0 %v593, 4
    %v596 = vpop.permute.xlu0 %595
    %v598 = vadd.f32 %v588, %v596
    %v599 = vtanh.pop %v598
    %601 = vrot.lane.b32.xlu0 %v599, 8
    %v602 = vpop.permute.xlu0 %601
    %v604 = vmul.f32 %v587, %v602
    %606 = vset.pattern.permute.xlu0 12
    %607 = vperm.xlu0 %606, %v604
    %v608 = vpop.permute.xlu0 %607
    %610 = vset.pattern.permute.xlu0 13
    %611 = vperm.xlu0 %610, %v604
    %v612 = vpop.permute.xlu0 %611
    %614 = vset.pattern.permute.xlu0 14
    %615 = vperm.xlu0 %614, %v604
    %v616 = vpop.permute.xlu0 %615
    %618 = vset.pattern.permute.xlu0 15
    %619 = vperm.xlu0 %618, %v604
    %v620 = vpop.permute.xlu0 %619
    %v622 = vmul.f32 %v608, %v426
    %v623 = vmul.f32 %v612, %v432
    %v624 = vmul.f32 %v616, %v438
    %v625 = vmul.f32 %v620, %v444
    %v626 = vmul.f32 %v510, %v451
    %v627 = vmul.f32 %v514, %v457
    %v628 = vmul.f32 %v518, %v463
    %v629 = vmul.f32 %v522, %v469
    %v630 = vadd.f32 %v626, %v627
    %v631 = vadd.f32 %v628, %v629
    %v632 = vadd.f32 %v630, %v631
    %v633 = vadd.f32 %v622, %v623
    %v634 = vadd.f32 %v624, %v625
    %v635 = vadd.f32 %v633, %v634
    %v636 = vadd.f32 %v635, %v480
    %v637 = vadd.f32 %v632, %v636
    %v638 = vtanh.pop %v637
    %v639 = vmul.f32 %v638, %v272
    %v640 = vadd.f32 %v639, %v279
    %v641 = vmul.f32 %v640, %v500
    %643 = vrot.lane.b32.xlu0 %v640, 120
    %v644 = vpop.permute.xlu0 %643
    %v646 = vmul.f32 %v640, %v644
    %648 = vrot.lane.b32.xlu0 %v646, 4
    %v649 = vpop.permute.xlu0 %648
    %v651 = vadd.f32 %v641, %v649
    %v652 = vtanh.pop %v651
    %654 = vrot.lane.b32.xlu0 %v652, 8
    %v655 = vpop.permute.xlu0 %654
    %v657 = vmul.f32 %v640, %v655
    %659 = vset.pattern.permute.xlu0 12
    %660 = vperm.xlu0 %659, %v657
    %v661 = vpop.permute.xlu0 %660
    %663 = vset.pattern.permute.xlu0 13
    %664 = vperm.xlu0 %663, %v657
    %v665 = vpop.permute.xlu0 %664
    %667 = vset.pattern.permute.xlu0 14
    %668 = vperm.xlu0 %667, %v657
    %v669 = vpop.permute.xlu0 %668
    %671 = vset.pattern.permute.xlu0 15
    %672 = vperm.xlu0 %671, %v657
    %v673 = vpop.permute.xlu0 %672
    %v675 = vmul.f32 %v555, %v243
    %v676 = vmul.f32 %v559, %v249
    %v677 = vmul.f32 %v563, %v255
    %v678 = vmul.f32 %v567, %v261
    %v679 = vadd.f32 %v675, %v676
    %v680 = vadd.f32 %v677, %v678
    %v681 = vadd.f32 %v679, %v680
    %v682 = vadd.f32 %v681, %v147
    %v683 = vtanh.pop %v682
    %v684 = vmul.f32 %v683, %v272
    %v685 = vadd.f32 %v684, %v279
    %v686 = vmul.f32 %v685, %v545
    %688 = vrot.lane.b32.xlu0 %v685, 120
    %v689 = vpop.permute.xlu0 %688
    %v691 = vmul.f32 %v685, %v689
    %693 = vrot.lane.b32.xlu0 %v691, 4
    %v694 = vpop.permute.xlu0 %693
    %v696 = vadd.f32 %v686, %v694
    %v697 = vtanh.pop %v696
    %699 = vrot.lane.b32.xlu0 %v697, 8
    %v700 = vpop.permute.xlu0 %699
    %v702 = vmul.f32 %v685, %v700
    %704 = vset.pattern.permute.xlu0 12
    %705 = vperm.xlu0 %704, %v702
    %v706 = vpop.permute.xlu0 %705
    %708 = vset.pattern.permute.xlu0 13
    %709 = vperm.xlu0 %708, %v702
    %v710 = vpop.permute.xlu0 %709
    %712 = vset.pattern.permute.xlu0 14
    %713 = vperm.xlu0 %712, %v702
    %v714 = vpop.permute.xlu0 %713
    %716 = vset.pattern.permute.xlu0 15
    %717 = vperm.xlu0 %716, %v702
    %v718 = vpop.permute.xlu0 %717
    %v720 = vmul.f32 %v706, %v324
    %v721 = vmul.f32 %v710, %v330
    %v722 = vmul.f32 %v714, %v336
    %v723 = vmul.f32 %v718, %v342
    %v724 = vmul.f32 %v608, %v349
    %v725 = vmul.f32 %v612, %v355
    %v726 = vmul.f32 %v616, %v361
    %v727 = vmul.f32 %v620, %v367
    %v728 = vadd.f32 %v724, %v725
    %v729 = vadd.f32 %v726, %v727
    %v730 = vadd.f32 %v728, %v729
    %v731 = vadd.f32 %v720, %v721
    %v732 = vadd.f32 %v722, %v723
    %v733 = vadd.f32 %v731, %v732
    %v734 = vadd.f32 %v733, %v378
    %v735 = vadd.f32 %v730, %v734
    %v736 = vtanh.pop %v735
    %v737 = vmul.f32 %v736, %v272
    %v738 = vadd.f32 %v737, %v279
    %v739 = vmul.f32 %v738, %v598
    %741 = vrot.lane.b32.xlu0 %v738, 120
    %v742 = vpop.permute.xlu0 %741
    %v744 = vmul.f32 %v738, %v742
    %746 = vrot.lane.b32.xlu0 %v744, 4
    %v747 = vpop.permute.xlu0 %746
    %v749 = vadd.f32 %v739, %v747
    %v750 = vtanh.pop %v749
    %752 = vrot.lane.b32.xlu0 %v750, 8
    %v753 = vpop.permute.xlu0 %752
    %v755 = vmul.f32 %v738, %v753
    %757 = vset.pattern.permute.xlu0 12
    %758 = vperm.xlu0 %757, %v755
    %v759 = vpop.permute.xlu0 %758
    %761 = vset.pattern.permute.xlu0 13
    %762 = vperm.xlu0 %761, %v755
    %v763 = vpop.permute.xlu0 %762
    %765 = vset.pattern.permute.xlu0 14
    %766 = vperm.xlu0 %765, %v755
    %v767 = vpop.permute.xlu0 %766
    %769 = vset.pattern.permute.xlu0 15
    %770 = vperm.xlu0 %769, %v755
    %v771 = vpop.permute.xlu0 %770
    %v773 = vmul.f32 %v759, %v426
    %v774 = vmul.f32 %v763, %v432
    %v775 = vmul.f32 %v767, %v438
    %v776 = vmul.f32 %v771, %v444
    %v777 = vmul.f32 %v661, %v451
    %v778 = vmul.f32 %v665, %v457
    %v779 = vmul.f32 %v669, %v463
    %v780 = vmul.f32 %v673, %v469
    %v781 = vadd.f32 %v777, %v778
    %v782 = vadd.f32 %v779, %v780
    %v783 = vadd.f32 %v781, %v782
    %v784 = vadd.f32 %v773, %v774
    %v785 = vadd.f32 %v775, %v776
    %v786 = vadd.f32 %v784, %v785
    %v787 = vadd.f32 %v786, %v480
    %v788 = vadd.f32 %v783, %v787
    %v789 = vtanh.pop %v788
    %v790 = vmul.f32 %v789, %v272
    %v791 = vadd.f32 %v790, %v279
    %v792 = vmul.f32 %v791, %v651
    %794 = vrot.lane.b32.xlu0 %v791, 120
    %v795 = vpop.permute.xlu0 %794
    %v797 = vmul.f32 %v791, %v795
    %799 = vrot.lane.b32.xlu0 %v797, 4
    %v800 = vpop.permute.xlu0 %799
    %v802 = vadd.f32 %v792, %v800
    %v803 = vtanh.pop %v802
    %805 = vrot.lane.b32.xlu0 %v803, 8
    %v806 = vpop.permute.xlu0 %805
    %v808 = vmul.f32 %v791, %v806
    %810 = vset.pattern.permute.xlu0 12
    %811 = vperm.xlu0 %810, %v808
    %v812 = vpop.permute.xlu0 %811
    %814 = vset.pattern.permute.xlu0 13
    %815 = vperm.xlu0 %814, %v808
    %v816 = vpop.permute.xlu0 %815
    %818 = vset.pattern.permute.xlu0 14
    %819 = vperm.xlu0 %818, %v808
    %v820 = vpop.permute.xlu0 %819
    %822 = vset.pattern.permute.xlu0 15
    %823 = vperm.xlu0 %822, %v808
    %v824 = vpop.permute.xlu0 %823
    %v826 = vmul.f32 %v706, %v243
    %v827 = vmul.f32 %v710, %v249
    %v828 = vmul.f32 %v714, %v255
    %v829 = vmul.f32 %v718, %v261
    %v830 = vadd.f32 %v826, %v827
    %v831 = vadd.f32 %v828, %v829
    %v832 = vadd.f32 %v830, %v831
    %v833 = vadd.f32 %v832, %v153
    %v834 = vtanh.pop %v833
    %v835 = vmul.f32 %v834, %v272
    %v836 = vadd.f32 %v835, %v279
    %v837 = vmul.f32 %v836, %v696
    %839 = vrot.lane.b32.xlu0 %v836, 120
    %v840 = vpop.permute.xlu0 %839
    %v842 = vmul.f32 %v836, %v840
    %844 = vrot.lane.b32.xlu0 %v842, 4
    %v845 = vpop.permute.xlu0 %844
    %v847 = vadd.f32 %v837, %v845
    %v848 = vtanh.pop %v847
    %850 = vrot.lane.b32.xlu0 %v848, 8
    %v851 = vpop.permute.xlu0 %850
    %v853 = vmul.f32 %v836, %v851
    %855 = vset.pattern.permute.xlu0 12
    %856 = vperm.xlu0 %855, %v853
    %v857 = vpop.permute.xlu0 %856
    %859 = vset.pattern.permute.xlu0 13
    %860 = vperm.xlu0 %859, %v853
    %v861 = vpop.permute.xlu0 %860
    %863 = vset.pattern.permute.xlu0 14
    %864 = vperm.xlu0 %863, %v853
    %v865 = vpop.permute.xlu0 %864
    %867 = vset.pattern.permute.xlu0 15
    %868 = vperm.xlu0 %867, %v853
    %v869 = vpop.permute.xlu0 %868
    %v871 = vmul.f32 %v857, %v324
    %v872 = vmul.f32 %v861, %v330
    %v873 = vmul.f32 %v865, %v336
    %v874 = vmul.f32 %v869, %v342
    %v875 = vmul.f32 %v759, %v349
    %v876 = vmul.f32 %v763, %v355
    %v877 = vmul.f32 %v767, %v361
    %v878 = vmul.f32 %v771, %v367
    %v879 = vadd.f32 %v875, %v876
    %v880 = vadd.f32 %v877, %v878
    %v881 = vadd.f32 %v879, %v880
    %v882 = vadd.f32 %v871, %v872
    %v883 = vadd.f32 %v873, %v874
    %v884 = vadd.f32 %v882, %v883
    %v885 = vadd.f32 %v884, %v378
    %v886 = vadd.f32 %v881, %v885
    %v887 = vtanh.pop %v886
    %v888 = vmul.f32 %v887, %v272
    %v889 = vadd.f32 %v888, %v279
    %v890 = vmul.f32 %v889, %v749
    %892 = vrot.lane.b32.xlu0 %v889, 120
    %v893 = vpop.permute.xlu0 %892
    %v895 = vmul.f32 %v889, %v893
    %897 = vrot.lane.b32.xlu0 %v895, 4
    %v898 = vpop.permute.xlu0 %897
    %v900 = vadd.f32 %v890, %v898
    %v901 = vtanh.pop %v900
    %903 = vrot.lane.b32.xlu0 %v901, 8
    %v904 = vpop.permute.xlu0 %903
    %v906 = vmul.f32 %v889, %v904
    %908 = vset.pattern.permute.xlu0 12
    %909 = vperm.xlu0 %908, %v906
    %v910 = vpop.permute.xlu0 %909
    %912 = vset.pattern.permute.xlu0 13
    %913 = vperm.xlu0 %912, %v906
    %v914 = vpop.permute.xlu0 %913
    %916 = vset.pattern.permute.xlu0 14
    %917 = vperm.xlu0 %916, %v906
    %v918 = vpop.permute.xlu0 %917
    %920 = vset.pattern.permute.xlu0 15
    %921 = vperm.xlu0 %920, %v906
    %v922 = vpop.permute.xlu0 %921
    %v924 = vmul.f32 %v910, %v426
    %v925 = vmul.f32 %v914, %v432
    %v926 = vmul.f32 %v918, %v438
    %v927 = vmul.f32 %v922, %v444
    %v928 = vmul.f32 %v812, %v451
    %v929 = vmul.f32 %v816, %v457
    %v930 = vmul.f32 %v820, %v463
    %v931 = vmul.f32 %v824, %v469
    %v932 = vadd.f32 %v928, %v929
    %v933 = vadd.f32 %v930, %v931
    %v934 = vadd.f32 %v932, %v933
    %v935 = vadd.f32 %v924, %v925
    %v936 = vadd.f32 %v926, %v927
    %v937 = vadd.f32 %v935, %v936
    %v938 = vadd.f32 %v937, %v480
    %v939 = vadd.f32 %v934, %v938
    %v940 = vtanh.pop %v939
    %v941 = vmul.f32 %v940, %v272
    %v942 = vadd.f32 %v941, %v279
    %v943 = vmul.f32 %v942, %v802
    %945 = vrot.lane.b32.xlu0 %v942, 120
    %v946 = vpop.permute.xlu0 %945
    %v948 = vmul.f32 %v942, %v946
    %950 = vrot.lane.b32.xlu0 %v948, 4
    %v951 = vpop.permute.xlu0 %950
    %v953 = vadd.f32 %v943, %v951
    %v954 = vtanh.pop %v953
    %956 = vrot.lane.b32.xlu0 %v954, 8
    %v957 = vpop.permute.xlu0 %956
    %v959 = vmul.f32 %v942, %v957
    %961 = vset.pattern.permute.xlu0 12
    %962 = vperm.xlu0 %961, %v959
    %v963 = vpop.permute.xlu0 %962
    %965 = vset.pattern.permute.xlu0 13
    %966 = vperm.xlu0 %965, %v959
    %v967 = vpop.permute.xlu0 %966
    %969 = vset.pattern.permute.xlu0 14
    %970 = vperm.xlu0 %969, %v959
    %v971 = vpop.permute.xlu0 %970
    %973 = vset.pattern.permute.xlu0 15
    %974 = vperm.xlu0 %973, %v959
    %v975 = vpop.permute.xlu0 %974
    %v977 = vmul.f32 %v857, %v243
    %v978 = vmul.f32 %v861, %v249
    %v979 = vmul.f32 %v865, %v255
    %v980 = vmul.f32 %v869, %v261
    %v981 = vadd.f32 %v977, %v978
    %v982 = vadd.f32 %v979, %v980
    %v983 = vadd.f32 %v981, %v982
    %v984 = vadd.f32 %v983, %v159
    %v985 = vtanh.pop %v984
    %v986 = vmul.f32 %v985, %v272
    %v987 = vadd.f32 %v986, %v279
    %v988 = vmul.f32 %v987, %v847
    %990 = vrot.lane.b32.xlu0 %v987, 120
    %v991 = vpop.permute.xlu0 %990
    %v993 = vmul.f32 %v987, %v991
    %995 = vrot.lane.b32.xlu0 %v993, 4
    %v996 = vpop.permute.xlu0 %995
    %v998 = vadd.f32 %v988, %v996
    %v999 = vtanh.pop %v998
    %1001 = vrot.lane.b32.xlu0 %v999, 8
    %v1002 = vpop.permute.xlu0 %1001
    %v1004 = vmul.f32 %v987, %v1002
    %1006 = vset.pattern.permute.xlu0 12
    %1007 = vperm.xlu0 %1006, %v1004
    %v1008 = vpop.permute.xlu0 %1007
    %1010 = vset.pattern.permute.xlu0 13
    %1011 = vperm.xlu0 %1010, %v1004
    %v1012 = vpop.permute.xlu0 %1011
    %1014 = vset.pattern.permute.xlu0 14
    %1015 = vperm.xlu0 %1014, %v1004
    %v1016 = vpop.permute.xlu0 %1015
    %1018 = vset.pattern.permute.xlu0 15
    %1019 = vperm.xlu0 %1018, %v1004
    %v1020 = vpop.permute.xlu0 %1019
    %v1022 = vmul.f32 %v1008, %v324
    %v1023 = vmul.f32 %v1012, %v330
    %v1024 = vmul.f32 %v1016, %v336
    %v1025 = vmul.f32 %v1020, %v342
    %v1026 = vmul.f32 %v910, %v349
    %v1027 = vmul.f32 %v914, %v355
    %v1028 = vmul.f32 %v918, %v361
    %v1029 = vmul.f32 %v922, %v367
    %v1030 = vadd.f32 %v1026, %v1027
    %v1031 = vadd.f32 %v1028, %v1029
    %v1032 = vadd.f32 %v1030, %v1031
    %v1033 = vadd.f32 %v1022, %v1023
    %v1034 = vadd.f32 %v1024, %v1025
    %v1035 = vadd.f32 %v1033, %v1034
    %v1036 = vadd.f32 %v1035, %v378
    %v1037 = vadd.f32 %v1032, %v1036
    %v1038 = vtanh.pop %v1037
    %v1039 = vmul.f32 %v1038, %v272
    %v1040 = vadd.f32 %v1039, %v279
    %v1041 = vmul.f32 %v1040, %v900
    %1043 = vrot.lane.b32.xlu0 %v1040, 120
    %v1044 = vpop.permute.xlu0 %1043
    %v1046 = vmul.f32 %v1040, %v1044
    %1048 = vrot.lane.b32.xlu0 %v1046, 4
    %v1049 = vpop.permute.xlu0 %1048
    %v1051 = vadd.f32 %v1041, %v1049
    %v1052 = vtanh.pop %v1051
    %1054 = vrot.lane.b32.xlu0 %v1052, 8
    %v1055 = vpop.permute.xlu0 %1054
    %v1057 = vmul.f32 %v1040, %v1055
    %1059 = vset.pattern.permute.xlu0 12
    %1060 = vperm.xlu0 %1059, %v1057
    %v1061 = vpop.permute.xlu0 %1060
    %1063 = vset.pattern.permute.xlu0 13
    %1064 = vperm.xlu0 %1063, %v1057
    %v1065 = vpop.permute.xlu0 %1064
    %1067 = vset.pattern.permute.xlu0 14
    %1068 = vperm.xlu0 %1067, %v1057
    %v1069 = vpop.permute.xlu0 %1068
    %1071 = vset.pattern.permute.xlu0 15
    %1072 = vperm.xlu0 %1071, %v1057
    %v1073 = vpop.permute.xlu0 %1072
    %v1075 = vmul.f32 %v1061, %v426
    %v1076 = vmul.f32 %v1065, %v432
    %v1077 = vmul.f32 %v1069, %v438
    %v1078 = vmul.f32 %v1073, %v444
    %v1079 = vmul.f32 %v963, %v451
    %v1080 = vmul.f32 %v967, %v457
    %v1081 = vmul.f32 %v971, %v463
    %v1082 = vmul.f32 %v975, %v469
    %v1083 = vadd.f32 %v1079, %v1080
    %v1084 = vadd.f32 %v1081, %v1082
    %v1085 = vadd.f32 %v1083, %v1084
    %v1086 = vadd.f32 %v1075, %v1076
    %v1087 = vadd.f32 %v1077, %v1078
    %v1088 = vadd.f32 %v1086, %v1087
    %v1089 = vadd.f32 %v1088, %v480
    %v1090 = vadd.f32 %v1085, %v1089
    %v1091 = vtanh.pop %v1090
    %v1092 = vmul.f32 %v1091, %v272
    %v1093 = vadd.f32 %v1092, %v279
    %v1094 = vmul.f32 %v1093, %v953
    %1096 = vrot.lane.b32.xlu0 %v1093, 120
    %v1097 = vpop.permute.xlu0 %1096
    %v1099 = vmul.f32 %v1093, %v1097
    %1101 = vrot.lane.b32.xlu0 %v1099, 4
    %v1102 = vpop.permute.xlu0 %1101
    %v1104 = vadd.f32 %v1094, %v1102
    %v1105 = vtanh.pop %v1104
    %1107 = vrot.lane.b32.xlu0 %v1105, 8
    %v1108 = vpop.permute.xlu0 %1107
    %v1110 = vmul.f32 %v1093, %v1108
    %1112 = vset.pattern.permute.xlu0 12
    %1113 = vperm.xlu0 %1112, %v1110
    %v1114 = vpop.permute.xlu0 %1113
    %1116 = vset.pattern.permute.xlu0 13
    %1117 = vperm.xlu0 %1116, %v1110
    %v1118 = vpop.permute.xlu0 %1117
    %1120 = vset.pattern.permute.xlu0 14
    %1121 = vperm.xlu0 %1120, %v1110
    %v1122 = vpop.permute.xlu0 %1121
    %1124 = vset.pattern.permute.xlu0 15
    %1125 = vperm.xlu0 %1124, %v1110
    %v1126 = vpop.permute.xlu0 %1125
    %v1128 = vmul.f32 %v1008, %v243
    %v1129 = vmul.f32 %v1012, %v249
    %v1130 = vmul.f32 %v1016, %v255
    %v1131 = vmul.f32 %v1020, %v261
    %v1132 = vadd.f32 %v1128, %v1129
    %v1133 = vadd.f32 %v1130, %v1131
    %v1134 = vadd.f32 %v1132, %v1133
    %v1135 = vadd.f32 %v1134, %v165
    %v1136 = vtanh.pop %v1135
    %v1137 = vmul.f32 %v1136, %v272
    %v1138 = vadd.f32 %v1137, %v279
    %v1139 = vmul.f32 %v1138, %v998
    %1141 = vrot.lane.b32.xlu0 %v1138, 120
    %v1142 = vpop.permute.xlu0 %1141
    %v1144 = vmul.f32 %v1138, %v1142
    %1146 = vrot.lane.b32.xlu0 %v1144, 4
    %v1147 = vpop.permute.xlu0 %1146
    %v1149 = vadd.f32 %v1139, %v1147
    %v1150 = vtanh.pop %v1149
    %1152 = vrot.lane.b32.xlu0 %v1150, 8
    %v1153 = vpop.permute.xlu0 %1152
    %v1155 = vmul.f32 %v1138, %v1153
    %1157 = vset.pattern.permute.xlu0 12
    %1158 = vperm.xlu0 %1157, %v1155
    %v1159 = vpop.permute.xlu0 %1158
    %1161 = vset.pattern.permute.xlu0 13
    %1162 = vperm.xlu0 %1161, %v1155
    %v1163 = vpop.permute.xlu0 %1162
    %1165 = vset.pattern.permute.xlu0 14
    %1166 = vperm.xlu0 %1165, %v1155
    %v1167 = vpop.permute.xlu0 %1166
    %1169 = vset.pattern.permute.xlu0 15
    %1170 = vperm.xlu0 %1169, %v1155
    %v1171 = vpop.permute.xlu0 %1170
    %v1173 = vmul.f32 %v1159, %v324
    %v1174 = vmul.f32 %v1163, %v330
    %v1175 = vmul.f32 %v1167, %v336
    %v1176 = vmul.f32 %v1171, %v342
    %v1177 = vmul.f32 %v1061, %v349
    %v1178 = vmul.f32 %v1065, %v355
    %v1179 = vmul.f32 %v1069, %v361
    %v1180 = vmul.f32 %v1073, %v367
    %v1181 = vadd.f32 %v1177, %v1178
    %v1182 = vadd.f32 %v1179, %v1180
    %v1183 = vadd.f32 %v1181, %v1182
    %v1184 = vadd.f32 %v1173, %v1174
    %v1185 = vadd.f32 %v1175, %v1176
    %v1186 = vadd.f32 %v1184, %v1185
    %v1187 = vadd.f32 %v1186, %v378
    %v1188 = vadd.f32 %v1183, %v1187
    %v1189 = vtanh.pop %v1188
    %v1190 = vmul.f32 %v1189, %v272
    %v1191 = vadd.f32 %v1190, %v279
    %v1192 = vmul.f32 %v1191, %v1051
    %1194 = vrot.lane.b32.xlu0 %v1191, 120
    %v1195 = vpop.permute.xlu0 %1194
    %v1197 = vmul.f32 %v1191, %v1195
    %1199 = vrot.lane.b32.xlu0 %v1197, 4
    %v1200 = vpop.permute.xlu0 %1199
    %v1202 = vadd.f32 %v1192, %v1200
    %v1203 = vtanh.pop %v1202
    %1205 = vrot.lane.b32.xlu0 %v1203, 8
    %v1206 = vpop.permute.xlu0 %1205
    %v1208 = vmul.f32 %v1191, %v1206
    %1210 = vset.pattern.permute.xlu0 12
    %1211 = vperm.xlu0 %1210, %v1208
    %v1212 = vpop.permute.xlu0 %1211
    %1214 = vset.pattern.permute.xlu0 13
    %1215 = vperm.xlu0 %1214, %v1208
    %v1216 = vpop.permute.xlu0 %1215
    %1218 = vset.pattern.permute.xlu0 14
    %1219 = vperm.xlu0 %1218, %v1208
    %v1220 = vpop.permute.xlu0 %1219
    %1222 = vset.pattern.permute.xlu0 15
    %1223 = vperm.xlu0 %1222, %v1208
    %v1224 = vpop.permute.xlu0 %1223
    %v1226 = vmul.f32 %v1212, %v426
    %v1227 = vmul.f32 %v1216, %v432
    %v1228 = vmul.f32 %v1220, %v438
    %v1229 = vmul.f32 %v1224, %v444
    %v1230 = vmul.f32 %v1114, %v451
    %v1231 = vmul.f32 %v1118, %v457
    %v1232 = vmul.f32 %v1122, %v463
    %v1233 = vmul.f32 %v1126, %v469
    %v1234 = vadd.f32 %v1230, %v1231
    %v1235 = vadd.f32 %v1232, %v1233
    %v1236 = vadd.f32 %v1234, %v1235
    %v1237 = vadd.f32 %v1226, %v1227
    %v1238 = vadd.f32 %v1228, %v1229
    %v1239 = vadd.f32 %v1237, %v1238
    %v1240 = vadd.f32 %v1239, %v480
    %v1241 = vadd.f32 %v1236, %v1240
    %v1242 = vtanh.pop %v1241
    %v1243 = vmul.f32 %v1242, %v272
    %v1244 = vadd.f32 %v1243, %v279
    %v1245 = vmul.f32 %v1244, %v1104
    %1247 = vrot.lane.b32.xlu0 %v1244, 120
    %v1248 = vpop.permute.xlu0 %1247
    %v1250 = vmul.f32 %v1244, %v1248
    %1252 = vrot.lane.b32.xlu0 %v1250, 4
    %v1253 = vpop.permute.xlu0 %1252
    %v1255 = vadd.f32 %v1245, %v1253
    %v1256 = vtanh.pop %v1255
    %1258 = vrot.lane.b32.xlu0 %v1256, 8
    %v1259 = vpop.permute.xlu0 %1258
    %v1261 = vmul.f32 %v1244, %v1259
    %1263 = vset.pattern.permute.xlu0 12
    %1264 = vperm.xlu0 %1263, %v1261
    %v1265 = vpop.permute.xlu0 %1264
    %1267 = vset.pattern.permute.xlu0 13
    %1268 = vperm.xlu0 %1267, %v1261
    %v1269 = vpop.permute.xlu0 %1268
    %1271 = vset.pattern.permute.xlu0 14
    %1272 = vperm.xlu0 %1271, %v1261
    %v1273 = vpop.permute.xlu0 %1272
    %1275 = vset.pattern.permute.xlu0 15
    %1276 = vperm.xlu0 %1275, %v1261
    %v1277 = vpop.permute.xlu0 %1276
    %v1279 = vmul.f32 %v1159, %v243
    %v1280 = vmul.f32 %v1163, %v249
    %v1281 = vmul.f32 %v1167, %v255
    %v1282 = vmul.f32 %v1171, %v261
    %v1283 = vadd.f32 %v1279, %v1280
    %v1284 = vadd.f32 %v1281, %v1282
    %v1285 = vadd.f32 %v1283, %v1284
    %v1286 = vadd.f32 %v1285, %v171
    %v1287 = vtanh.pop %v1286
    %v1288 = vmul.f32 %v1287, %v272
    %v1289 = vadd.f32 %v1288, %v279
    %v1290 = vmul.f32 %v1289, %v1149
    %1292 = vrot.lane.b32.xlu0 %v1289, 120
    %v1293 = vpop.permute.xlu0 %1292
    %v1295 = vmul.f32 %v1289, %v1293
    %1297 = vrot.lane.b32.xlu0 %v1295, 4
    %v1298 = vpop.permute.xlu0 %1297
    %v1300 = vadd.f32 %v1290, %v1298
    %v1301 = vtanh.pop %v1300
    %1303 = vrot.lane.b32.xlu0 %v1301, 8
    %v1304 = vpop.permute.xlu0 %1303
    %v1306 = vmul.f32 %v1289, %v1304
    %1308 = vset.pattern.permute.xlu0 12
    %1309 = vperm.xlu0 %1308, %v1306
    %v1310 = vpop.permute.xlu0 %1309
    %1312 = vset.pattern.permute.xlu0 13
    %1313 = vperm.xlu0 %1312, %v1306
    %v1314 = vpop.permute.xlu0 %1313
    %1316 = vset.pattern.permute.xlu0 14
    %1317 = vperm.xlu0 %1316, %v1306
    %v1318 = vpop.permute.xlu0 %1317
    %1320 = vset.pattern.permute.xlu0 15
    %1321 = vperm.xlu0 %1320, %v1306
    %v1322 = vpop.permute.xlu0 %1321
    %v1324 = vmul.f32 %v1310, %v324
    %v1325 = vmul.f32 %v1314, %v330
    %v1326 = vmul.f32 %v1318, %v336
    %v1327 = vmul.f32 %v1322, %v342
    %v1328 = vmul.f32 %v1212, %v349
    %v1329 = vmul.f32 %v1216, %v355
    %v1330 = vmul.f32 %v1220, %v361
    %v1331 = vmul.f32 %v1224, %v367
    %v1332 = vadd.f32 %v1328, %v1329
    %v1333 = vadd.f32 %v1330, %v1331
    %v1334 = vadd.f32 %v1332, %v1333
    %v1335 = vadd.f32 %v1324, %v1325
    %v1336 = vadd.f32 %v1326, %v1327
    %v1337 = vadd.f32 %v1335, %v1336
    %v1338 = vadd.f32 %v1337, %v378
    %v1339 = vadd.f32 %v1334, %v1338
    %v1340 = vtanh.pop %v1339
    %v1341 = vmul.f32 %v1340, %v272
    %v1342 = vadd.f32 %v1341, %v279
    %v1343 = vmul.f32 %v1342, %v1202
    %1345 = vrot.lane.b32.xlu0 %v1342, 120
    %v1346 = vpop.permute.xlu0 %1345
    %v1348 = vmul.f32 %v1342, %v1346
    %1350 = vrot.lane.b32.xlu0 %v1348, 4
    %v1351 = vpop.permute.xlu0 %1350
    %v1353 = vadd.f32 %v1343, %v1351
    %v1354 = vtanh.pop %v1353
    %1356 = vrot.lane.b32.xlu0 %v1354, 8
    %v1357 = vpop.permute.xlu0 %1356
    %v1359 = vmul.f32 %v1342, %v1357
    %1361 = vset.pattern.permute.xlu0 12
    %1362 = vperm.xlu0 %1361, %v1359
    %v1363 = vpop.permute.xlu0 %1362
    %1365 = vset.pattern.permute.xlu0 13
    %1366 = vperm.xlu0 %1365, %v1359
    %v1367 = vpop.permute.xlu0 %1366
    %1369 = vset.pattern.permute.xlu0 14
    %1370 = vperm.xlu0 %1369, %v1359
    %v1371 = vpop.permute.xlu0 %1370
    %1373 = vset.pattern.permute.xlu0 15
    %1374 = vperm.xlu0 %1373, %v1359
    %v1375 = vpop.permute.xlu0 %1374
    %v1377 = vmul.f32 %v1363, %v426
    %v1378 = vmul.f32 %v1367, %v432
    %v1379 = vmul.f32 %v1371, %v438
    %v1380 = vmul.f32 %v1375, %v444
    %v1381 = vmul.f32 %v1265, %v451
    %v1382 = vmul.f32 %v1269, %v457
    %v1383 = vmul.f32 %v1273, %v463
    %v1384 = vmul.f32 %v1277, %v469
    %v1385 = vadd.f32 %v1381, %v1382
    %v1386 = vadd.f32 %v1383, %v1384
    %v1387 = vadd.f32 %v1385, %v1386
    %v1388 = vadd.f32 %v1377, %v1378
    %v1389 = vadd.f32 %v1379, %v1380
    %v1390 = vadd.f32 %v1388, %v1389
    %v1391 = vadd.f32 %v1390, %v480
    %v1392 = vadd.f32 %v1387, %v1391
    %v1393 = vtanh.pop %v1392
    %v1394 = vmul.f32 %v1393, %v272
    %v1395 = vadd.f32 %v1394, %v279
    %v1396 = vmul.f32 %v1395, %v1255
    %1398 = vrot.lane.b32.xlu0 %v1395, 120
    %v1399 = vpop.permute.xlu0 %1398
    %v1401 = vmul.f32 %v1395, %v1399
    %1403 = vrot.lane.b32.xlu0 %v1401, 4
    %v1404 = vpop.permute.xlu0 %1403
    %v1406 = vadd.f32 %v1396, %v1404
    %v1407 = vtanh.pop %v1406
    %1409 = vrot.lane.b32.xlu0 %v1407, 8
    %v1410 = vpop.permute.xlu0 %1409
    %v1412 = vmul.f32 %v1395, %v1410
    %1414 = vset.pattern.permute.xlu0 12
    %1415 = vperm.xlu0 %1414, %v1412
    %v1416 = vpop.permute.xlu0 %1415
    %1418 = vset.pattern.permute.xlu0 13
    %1419 = vperm.xlu0 %1418, %v1412
    %v1420 = vpop.permute.xlu0 %1419
    %1422 = vset.pattern.permute.xlu0 14
    %1423 = vperm.xlu0 %1422, %v1412
    %v1424 = vpop.permute.xlu0 %1423
    %1426 = vset.pattern.permute.xlu0 15
    %1427 = vperm.xlu0 %1426, %v1412
    %v1428 = vpop.permute.xlu0 %1427
    %v1430 = vmul.f32 %v1310, %v243
    %v1431 = vmul.f32 %v1314, %v249
    %v1432 = vmul.f32 %v1318, %v255
    %v1433 = vmul.f32 %v1322, %v261
    %v1434 = vadd.f32 %v1430, %v1431
    %v1435 = vadd.f32 %v1432, %v1433
    %v1436 = vadd.f32 %v1434, %v1435
    %v1437 = vadd.f32 %v1436, %v177
    %v1438 = vtanh.pop %v1437
    %v1439 = vmul.f32 %v1438, %v272
    %v1440 = vadd.f32 %v1439, %v279
    %v1441 = vmul.f32 %v1440, %v1300
    %1443 = vrot.lane.b32.xlu0 %v1440, 120
    %v1444 = vpop.permute.xlu0 %1443
    %v1446 = vmul.f32 %v1440, %v1444
    %1448 = vrot.lane.b32.xlu0 %v1446, 4
    %v1449 = vpop.permute.xlu0 %1448
    %v1451 = vadd.f32 %v1441, %v1449
    %v1452 = vtanh.pop %v1451
    %1454 = vrot.lane.b32.xlu0 %v1452, 8
    %v1455 = vpop.permute.xlu0 %1454
    %v1457 = vmul.f32 %v1440, %v1455
    %1459 = vset.pattern.permute.xlu0 12
    %1460 = vperm.xlu0 %1459, %v1457
    %v1461 = vpop.permute.xlu0 %1460
    %1463 = vset.pattern.permute.xlu0 13
    %1464 = vperm.xlu0 %1463, %v1457
    %v1465 = vpop.permute.xlu0 %1464
    %1467 = vset.pattern.permute.xlu0 14
    %1468 = vperm.xlu0 %1467, %v1457
    %v1469 = vpop.permute.xlu0 %1468
    %1471 = vset.pattern.permute.xlu0 15
    %1472 = vperm.xlu0 %1471, %v1457
    %v1473 = vpop.permute.xlu0 %1472
    %v1475 = vmul.f32 %v1461, %v324
    %v1476 = vmul.f32 %v1465, %v330
    %v1477 = vmul.f32 %v1469, %v336
    %v1478 = vmul.f32 %v1473, %v342
    %v1479 = vmul.f32 %v1363, %v349
    %v1480 = vmul.f32 %v1367, %v355
    %v1481 = vmul.f32 %v1371, %v361
    %v1482 = vmul.f32 %v1375, %v367
    %v1483 = vadd.f32 %v1479, %v1480
    %v1484 = vadd.f32 %v1481, %v1482
    %v1485 = vadd.f32 %v1483, %v1484
    %v1486 = vadd.f32 %v1475, %v1476
    %v1487 = vadd.f32 %v1477, %v1478
    %v1488 = vadd.f32 %v1486, %v1487
    %v1489 = vadd.f32 %v1488, %v378
    %v1490 = vadd.f32 %v1485, %v1489
    %v1491 = vtanh.pop %v1490
    %v1492 = vmul.f32 %v1491, %v272
    %v1493 = vadd.f32 %v1492, %v279
    %v1494 = vmul.f32 %v1493, %v1353
    %1496 = vrot.lane.b32.xlu0 %v1493, 120
    %v1497 = vpop.permute.xlu0 %1496
    %v1499 = vmul.f32 %v1493, %v1497
    %1501 = vrot.lane.b32.xlu0 %v1499, 4
    %v1502 = vpop.permute.xlu0 %1501
    %v1504 = vadd.f32 %v1494, %v1502
    %v1505 = vtanh.pop %v1504
    %1507 = vrot.lane.b32.xlu0 %v1505, 8
    %v1508 = vpop.permute.xlu0 %1507
    %v1510 = vmul.f32 %v1493, %v1508
    %1512 = vset.pattern.permute.xlu0 12
    %1513 = vperm.xlu0 %1512, %v1510
    %v1514 = vpop.permute.xlu0 %1513
    %1516 = vset.pattern.permute.xlu0 13
    %1517 = vperm.xlu0 %1516, %v1510
    %v1518 = vpop.permute.xlu0 %1517
    %1520 = vset.pattern.permute.xlu0 14
    %1521 = vperm.xlu0 %1520, %v1510
    %v1522 = vpop.permute.xlu0 %1521
    %1524 = vset.pattern.permute.xlu0 15
    %1525 = vperm.xlu0 %1524, %v1510
    %v1526 = vpop.permute.xlu0 %1525
    %v1528 = vmul.f32 %v1514, %v426
    %v1529 = vmul.f32 %v1518, %v432
    %v1530 = vmul.f32 %v1522, %v438
    %v1531 = vmul.f32 %v1526, %v444
    %v1532 = vmul.f32 %v1416, %v451
    %v1533 = vmul.f32 %v1420, %v457
    %v1534 = vmul.f32 %v1424, %v463
    %v1535 = vmul.f32 %v1428, %v469
    %v1536 = vadd.f32 %v1532, %v1533
    %v1537 = vadd.f32 %v1534, %v1535
    %v1538 = vadd.f32 %v1536, %v1537
    %v1539 = vadd.f32 %v1528, %v1529
    %v1540 = vadd.f32 %v1530, %v1531
    %v1541 = vadd.f32 %v1539, %v1540
    %v1542 = vadd.f32 %v1541, %v480
    %v1543 = vadd.f32 %v1538, %v1542
    %v1544 = vtanh.pop %v1543
    %v1545 = vmul.f32 %v1544, %v272
    %v1546 = vadd.f32 %v1545, %v279
    %v1547 = vmul.f32 %v1546, %v1406
    %1549 = vrot.lane.b32.xlu0 %v1546, 120
    %v1550 = vpop.permute.xlu0 %1549
    %v1552 = vmul.f32 %v1546, %v1550
    %1554 = vrot.lane.b32.xlu0 %v1552, 4
    %v1555 = vpop.permute.xlu0 %1554
    %v1557 = vadd.f32 %v1547, %v1555
    %v1558 = vtanh.pop %v1557
    %1560 = vrot.lane.b32.xlu0 %v1558, 8
    %v1561 = vpop.permute.xlu0 %1560
    %v1563 = vmul.f32 %v1546, %v1561
    %1564 = vrot.lane.b32.xlu0 %v1457, 116
    %v1565 = vpop.permute.xlu0 %1564
    %vm1567 = vcmask 25600
    %1568 = vst.msk [vmem:[#allocation12] sm:$0x3] %vm1567, %v1565
    %1570 = vrot.lane.b32.xlu0 %v1451, 124
    %v1571 = vpop.permute.xlu0 %1570
    %1573 = vst.msk [vmem:[#allocation13] sm:$0x3] %vm1567, %v1571
    %1574 = vrot.lane.b32.xlu0 %v1510, 116
    %v1575 = vpop.permute.xlu0 %1574
    %s1577 = scalar_lea.vmem [#allocation12], 2
    %1578 = vst.msk [vmem:[%s1577] sm:$0x3] %vm1567, %v1575
    %1580 = vrot.lane.b32.xlu0 %v1504, 124
    %v1581 = vpop.permute.xlu0 %1580
    %s1583 = scalar_lea.vmem [#allocation13], 2
    %1584 = vst.msk [vmem:[%s1583] sm:$0x3] %vm1567, %v1581
    %1586 = vrot.lane.b32.xlu0 %v1563, 116
    %v1587 = vpop.permute.xlu0 %1586
    %s1589 = scalar_lea.vmem [#allocation12], 4
    %1590 = vst.msk [vmem:[%s1589] sm:$0x3] %vm1567, %v1587
    %1592 = vrot.lane.b32.xlu0 %v1557, 124
    %v1593 = vpop.permute.xlu0 %1592
    %s1595 = scalar_lea.vmem [#allocation13], 4
    %1596 = vst.msk [vmem:[%s1595] sm:$0x3] %vm1567, %v1593
    %v1597 = vld [vmem:[%s10] sm:$0x1]
    %v1598 = vld [vmem:[#allocation2] sm:$0x1]
    %v1600 = vlaneseq
    %v1601 = vshrl.u32 %v1600, 7
    %v1602 = vsub.s32 0, %v1601
    %v1603 = vrot.slane %v1597, %v1602
    %1604 = vrot.lane.b32.xlu0 %v1603, 12
    %v1605 = vpop.permute.xlu0 %1604
    %v1607 = vmul.f32 %v1563, %v1605
    %1609 = vrot.lane.b32.xlu0 %v1607, 116
    %v1610 = vpop.permute.xlu0 %1609
    %v1612 = vsel %vm1567, %v1610, 0.0
    %1613 = vadd.xlane.f32.xlu0 %v1612
    %v1614 = vpop.xlane.xlu0 %1613
    %v1616 = vlaneseq
    %v1617 = vshrl.u32 %v1616, 7
    %v1618 = vsub.s32 0, %v1617
    %v1619 = vrot.slane %v1598, %v1618
    %v1621 = vadd.f32 %v1614, %v1619
    %v1622 = vadd.f32 %v1621, 1e-08
    %vm1623 = vcmask 1024
    %1624 = vst.msk [vmem:[%s12] sm:$0x3] %vm1623, %v1622
    // Predicated region
    $region70: #{tpu_custom_call.1} parent=1 // pred_check
      _
    $region71: #{tpu_custom_call.1} parent=1 // pred_check_branch
      %1626 = sbr.rel (0) target = $region73
    $region72: #{tpu_custom_call.1} parent=1 // pred_region
      _
    $region73: #{tpu_custom_call.1} parent=1 // pred_fallthru
      _
    // Predicated region
    $region74: #{tpu_custom_call.1} parent=1 // pred_check
      _
    $region75: #{tpu_custom_call.1} parent=1 // pred_check_branch
      %1628 = sbr.rel (0) target = $region77
    $region76: #{tpu_custom_call.1} parent=1 // pred_region
      %s1630 = ssub.s32 96, 96
      %1631 = vsyncadd [#allocation5], %s1630
      %s1632 = sshll.u32 [#allocation12], 4
      %s1633 = int_to_ptr.vmem [resolvable:$true] %s1632
      %1638 = dma.vmem_to_hbm [thread:$0]  %s1633, 96, %s13, [#allocation5], 32, 32, 2
    $region77: #{tpu_custom_call.1} parent=1 // pred_fallthru
      _
    // Predicated region
    $region78: #{tpu_custom_call.1} parent=1 // pred_check
      _
    $region79: #{tpu_custom_call.1} parent=1 // pred_check_branch
      %1640 = sbr.rel (0) target = $region81
    $region80: #{tpu_custom_call.1} parent=1 // pred_region
      %s1642 = ssub.s32 96, 96
      %1643 = vsyncadd [#allocation14], %s1642
      %s1644 = sshll.u32 [#allocation13], 4
      %s1645 = int_to_ptr.vmem [resolvable:$true] %s1644
      %1650 = dma.vmem_to_hbm [thread:$0]  %s1645, 96, %s14, [#allocation14], 32, 32, 2
    $region81: #{tpu_custom_call.1} parent=1 // pred_fallthru
      _
    // Predicated region
    $region82: #{tpu_custom_call.1} parent=1 // pred_check
      _
    $region83: #{tpu_custom_call.1} parent=1 // pred_check_branch
      %1652 = sbr.rel (0) target = $region85
    $region84: #{tpu_custom_call.1} parent=1 // pred_region
      _
    $region85: #{tpu_custom_call.1} parent=1 // pred_fallthru
      _
    // Predicated region
    $region86: #{tpu_custom_call.1} parent=1 // pred_check
      _
    $region87: #{tpu_custom_call.1} parent=1 // pred_check_branch
      %1654 = sbr.rel (0) target = $region89
    $region88: #{tpu_custom_call.1} parent=1 // pred_region
      %1655 = dma.done [#allocation5], 96
    $region89: #{tpu_custom_call.1} parent=1 // pred_fallthru
      _
    // Predicated region
    $region90: #{tpu_custom_call.1} parent=1 // pred_check
      _
    $region91: #{tpu_custom_call.1} parent=1 // pred_check_branch
      %1657 = sbr.rel (0) target = $region93
    $region92: #{tpu_custom_call.1} parent=1 // pred_region
      %1658 = dma.done [#allocation14], 96
    $region93: #{tpu_custom_call.1} parent=1 // pred_fallthru
      _
    %1659 = vsyncpa [#allocation4], 1
    %1660 = vsyncpa [#allocation7], 1
    %1661 = vsyncpa [#allocation10], 1
    %1662 = vsyncpa [#allocation5], 1
    %1663 = vsyncpa [#allocation14], 1

</llo_original>
